<compile_context>
chip_gen: v7x
topology: tpu7x:2x2x1
jax: 0.10.0
libtpu: 0.0.40
codegen_flags: <defaults>
</compile_context>

<pallas_src>
import functools
import math

import numpy as np

import jax
import jax.numpy as jnp
from jax import lax
from jax.experimental import pallas as pl
from jax.experimental.pallas import tpu as pltpu


# --------------------------- kernel ---------------------------

def deam_kernel(diff_ref, x_ref, sp_ref, su_ref,
                wqk_ref, bqk_ref, wv_ref, bv_ref,
                out_ref, *, C):
    """One batch element, channel-major layout.

    diff_ref / x_ref / out_ref : (1, C, H*W)   native dtype
    sp_ref  : (H*W, N) bf16   avg-pool matrix (entries 1/ds^2, N = Hp*Wp)
    su_ref  : (N, H*W) bf16   nearest-upsample matrix (entries 1.0)
    wqk_ref : (2C, C)  bf16   stacked [scale*Wq ; Wk] 1x1-conv weights (out, in)
    bqk_ref : (2C, 1)  f32    stacked [scale*bq ; bk]
    wv_ref  : (C, C)   bf16   value 1x1-conv weight
    bv_ref  : (C, 1)   f32    value bias
    """
    xin = x_ref[0]                                                          # (C, HW) native

    # ---- Fused AvgPool2d(ds) of diff and input: ONE bf16 matmul over the flat spatial dim.
    stacked = jnp.concatenate(
        [diff_ref[0].astype(jnp.bfloat16), xin.astype(jnp.bfloat16)], axis=0)   # (2C, HW)
    pooled = jnp.dot(stacked, sp_ref[...], preferred_element_type=jnp.float32)  # (2C, N) f32
    pooled_d = pooled[:C].astype(jnp.bfloat16)                                  # (C, N)
    pooled_x = pooled[C:].astype(jnp.bfloat16)                                  # (C, N)

    # ---- Fused query/key 1x1 convs (scale folded into the q half), value 1x1 conv.
    qk = jnp.dot(wqk_ref[...], pooled_d,
                 preferred_element_type=jnp.float32) + bqk_ref[...]             # (2C, N) f32
    q = qk[:C].astype(jnp.bfloat16)
    k = qk[C:].astype(jnp.bfloat16)
    v = jnp.dot(wv_ref[...], pooled_x,
                preferred_element_type=jnp.float32) + bv_ref[...]               # (C, N) f32

    # ---- scaled dot-product attention over the N pooled positions (scale already in q).
    # energy[i, j] = sum_c q[c, i] * k[c, j]   — contract channel axis of both, no .T.
    energy = lax.dot_general(q, k, (((0,), (0,)), ((), ())),
                             preferred_element_type=jnp.float32)                # (N, N) f32
    m = jnp.max(energy, axis=-1, keepdims=True)
    p = jnp.exp(energy - m)
    att = p * pl.reciprocal(jnp.sum(p, axis=-1, keepdims=True), approx=True)    # softmax(-1)

    # out_pooled[c, i] = sum_j v[c, j] * att[i, j]   (torch: bmm(value, att^T)), no .T.
    out_pooled = lax.dot_general(v.astype(jnp.bfloat16), att.astype(jnp.bfloat16),
                                 (((1,), (1,)), ((), ())),
                                 preferred_element_type=jnp.float32)            # (C, N) f32

    # ---- nearest-neighbour x ds upsample as a matmul, f32 residual add, lane-dense store.
    up = jnp.dot(out_pooled.astype(jnp.bfloat16), su_ref[...],
                 preferred_element_type=jnp.float32)                            # (C, HW) f32
    out_ref[0] = (up + xin.astype(jnp.float32)).astype(out_ref.dtype)


# --------------------------- constant pooling / upsample matrices ---------------------------

@functools.lru_cache(maxsize=None)
def _pool_upsample_mats(H, W, ds):
    """Built once per (H, W, ds) in numpy, stored as bf16 jit constants."""
    Hp, Wp = H // ds, W // ds
    HW, N = H * W, Hp * Wp
    s = np.arange(HW)
    p_of_s = (s // W // ds) * Wp + (s % W) // ds           # pooled window of each pixel
    cols = np.arange(N)
    sp = (p_of_s[:, None] == cols[None, :]).astype(np.float32) / float(ds * ds)  # (HW, N)
    su = (cols[:, None] == p_of_s[None, :]).astype(np.float32)                   # (N, HW)
    return (jnp.asarray(sp, dtype=jnp.bfloat16),
            jnp.asarray(su, dtype=jnp.bfloat16))


# --------------------------- wrapper ---------------------------

def deam_forward(x, diff, params, *, ds=8):
    B, C, H, W = x.shape
    assert H % ds == 0 and W % ds == 0, "spatial dims must be divisible by ds"
    HW = H * W

    # NCHW -> (B, C, H*W): free row-major reshape, no HBM transpose, no dtype up-cast.
    x2 = x.reshape(B, C, HW)
    d2 = diff.reshape(B, C, HW)

    sp, su = _pool_upsample_mats(H, W, ds)

    # Fold key_channel**-0.5 into the query weights/bias; stack q/k weights for one matmul.
    scale = float(C) ** -0.5
    wqk = jnp.concatenate([params['wq'] * scale, params['wk']], axis=0).astype(jnp.bfloat16)
    bqk = jnp.concatenate([params['bq'] * scale, params['bk']],
                          axis=0).reshape(2 * C, 1).astype(jnp.float32)
    wv = params['wv'].astype(jnp.bfloat16)
    bv = params['bv'].reshape(C, 1).astype(jnp.float32)

    batched = pl.BlockSpec((1, C, HW), lambda n: (n, 0, 0))

    def const2d(a):
        return pl.BlockSpec(a.shape, lambda n: (0, 0))

    kernel = functools.partial(deam_kernel, C=C)
    out2 = pl.pallas_call(
        kernel,
        out_shape=jax.ShapeDtypeStruct((B, C, HW), x.dtype),
        grid=(B,),
        in_specs=[batched, batched,
                  const2d(sp), const2d(su),
                  const2d(wqk), const2d(bqk),
                  const2d(wv), const2d(bv)],
        out_specs=batched,
        compiler_params=pltpu.CompilerParams(dimension_semantics=("parallel",)),
    )(d2, x2, sp, su, wqk, bqk, wv, bv)
    return out2.reshape(B, C, H, W)


# --------------------------- pure-JAX reference (for validation) ---------------------------

def deam_reference(x, diff, params, *, ds=8):
    B, C, H, W = x.shape
    Hp, Wp = H // ds, W // ds

    def pool(t):
        return t.reshape(B, C, Hp, ds, Wp, ds).mean(axis=(3, 5))

    def conv1x1(t, w, b):
        return jnp.einsum('oc,bchw->bohw', w, t) + b[None, :, None, None]

    dp, xp = pool(diff), pool(x)
    q = conv1x1(dp, params['wq'], params['bq']).reshape(B, C, -1)   # (B, C, N)
    k = conv1x1(dp, params['wk'], params['bk']).reshape(B, C, -1)
    v = conv1x1(xp, params['wv'], params['bv']).reshape(B, C, -1)
    energy = jnp.einsum('bci,bcj->bij', q, k) * (float(C) ** -0.5)
    att = jax.nn.softmax(energy, axis=-1)
    outp = jnp.einsum('bcj,bij->bci', v, att).reshape(B, C, Hp, Wp)
    up = jnp.repeat(jnp.repeat(outp, ds, axis=2), ds, axis=3)       # nearest interpolate
    return up + x


# --------------------------- deterministic params & demo ---------------------------

def init_params(key, c):
    ks = jax.random.split(key, 6)
    bound = 1.0 / math.sqrt(c)

    def u(k, shape):
        return jax.random.uniform(k, shape, jnp.float32, -bound, bound)

    return {
        'wq': u(ks[0], (c, c)), 'bq': u(ks[1], (c,)),
        'wk': u(ks[2], (c, c)), 'bk': u(ks[3], (c,)),
        'wv': u(ks[4], (c, c)), 'bv': u(ks[5], (c,)),
    }


if __name__ == "__main__":
    B, C, H, W, DS = 2, 32, 64, 64, 8      # pooled map 8x8 -> N = 64 attention positions
    key = jax.random.PRNGKey(0)
    kp, kx, kd = jax.random.split(key, 3)
    params = init_params(kp, C)
    x = jax.random.normal(kx, (B, C, H, W), jnp.float32)
    diff = jax.random.normal(kd, (B, C, H, W), jnp.float32)

    fwd = jax.jit(functools.partial(deam_forward, ds=DS))
    out = jax.block_until_ready(fwd(x, diff, params))

    assert out.shape == (B, C, H, W), out.shape
    assert bool(jnp.all(jnp.isfinite(out)))

    ref = deam_reference(x, diff, params, ds=DS)
    err = float(jnp.max(jnp.abs(out - ref)))
    # bf16 matmul operands with f32 accumulation -> a few e-3 expected; 3e-2 is a safe bound.
    assert err < 3e-2, f"max abs err {err}"
    print("KERNEL_OK")
</pallas_src>

<mosaic_0001>
module attributes {stable_mosaic.version = 11 : i64} {
  func.func @deam_kernel(%arg0: i32, %arg1: memref<1x32x4096xf32, #tpu.memory_space<vmem>>, %arg2: memref<1x32x4096xf32, #tpu.memory_space<vmem>>, %arg3: memref<4096x64xbf16, #tpu.memory_space<vmem>>, %arg4: memref<64x4096xbf16, #tpu.memory_space<vmem>>, %arg5: memref<64x32xbf16, #tpu.memory_space<vmem>>, %arg6: memref<64x1xf32, #tpu.memory_space<vmem>>, %arg7: memref<32x32xbf16, #tpu.memory_space<vmem>>, %arg8: memref<32x1xf32, #tpu.memory_space<vmem>>, %arg9: memref<1x32x4096xf32, #tpu.memory_space<vmem>>) attributes {dimension_semantics = [#tpu.dimension_semantics<parallel>], iteration_bounds = array<i64: 2>, scalar_prefetch = 0 : i64, scratch_operands = 0 : i64, tpu.core_type = #tpu.core_type<tc>, window_params = [{transform_indices = @transform_0, window_bounds = array<i64: 1, 32, 4096>}, {transform_indices = @transform_1, window_bounds = array<i64: 1, 32, 4096>}, {pipeline_mode = #tpu.pipeline_mode<synchronous>, transform_indices = @transform_2, window_bounds = array<i64: 4096, 64>}, {pipeline_mode = #tpu.pipeline_mode<synchronous>, transform_indices = @transform_3, window_bounds = array<i64: 64, 4096>}, {pipeline_mode = #tpu.pipeline_mode<synchronous>, transform_indices = @transform_4, window_bounds = array<i64: 64, 32>}, {pipeline_mode = #tpu.pipeline_mode<synchronous>, transform_indices = @transform_5, window_bounds = array<i64: 64, 1>}, {pipeline_mode = #tpu.pipeline_mode<synchronous>, transform_indices = @transform_6, window_bounds = array<i64: 32, 32>}, {pipeline_mode = #tpu.pipeline_mode<synchronous>, transform_indices = @transform_7, window_bounds = array<i64: 32, 1>}, {transform_indices = @transform_8, window_bounds = array<i64: 1, 32, 4096>}]} {
    %c0 = arith.constant 0 : index
    %c0_0 = arith.constant 0 : index
    %c0_1 = arith.constant 0 : index
    %0 = vector.load %arg2[%c0, %c0_0, %c0_1] : memref<1x32x4096xf32, #tpu.memory_space<vmem>>, vector<1x32x4096xf32>
    %1 = vector.shape_cast %0 : vector<1x32x4096xf32> to vector<32x4096xf32>
    %c0_2 = arith.constant 0 : index
    %c0_3 = arith.constant 0 : index
    %c0_4 = arith.constant 0 : index
    %2 = vector.load %arg1[%c0_2, %c0_3, %c0_4] : memref<1x32x4096xf32, #tpu.memory_space<vmem>>, vector<1x32x4096xf32>
    %3 = vector.shape_cast %2 : vector<1x32x4096xf32> to vector<32x4096xf32>
    %4 = arith.truncf %3 : vector<32x4096xf32> to vector<32x4096xbf16>
    %5 = arith.truncf %1 : vector<32x4096xf32> to vector<32x4096xbf16>
    %6 = tpu.concatenate %4, %5 in 0 : vector<32x4096xbf16>, vector<32x4096xbf16> -> vector<64x4096xbf16>
    %c0_5 = arith.constant 0 : index
    %c0_6 = arith.constant 0 : index
    %7 = vector.load %arg3[%c0_5, %c0_6] : memref<4096x64xbf16, #tpu.memory_space<vmem>>, vector<4096x64xbf16>
    %cst = arith.constant dense<0.000000e+00> : vector<64x64xf32>
    %8 = tpu.matmul %6, %7, %cst {dimension_numbers = #tpu.dot_dimension_numbers<[1], [0], [0], [1], [0, 0, 1, 1], [], []>} : vector<64x4096xbf16>, vector<4096x64xbf16>, vector<64x64xf32> -> vector<64x64xf32>
    %9 = vector.extract_strided_slice %8 {offsets = [0, 0], sizes = [32, 64], strides = [1, 1]} : vector<64x64xf32> to vector<32x64xf32>
    %10 = arith.truncf %9 : vector<32x64xf32> to vector<32x64xbf16>
    %11 = vector.extract_strided_slice %8 {offsets = [32, 0], sizes = [32, 64], strides = [1, 1]} : vector<64x64xf32> to vector<32x64xf32>
    %12 = arith.truncf %11 : vector<32x64xf32> to vector<32x64xbf16>
    %c0_7 = arith.constant 0 : index
    %c0_8 = arith.constant 0 : index
    %13 = vector.load %arg5[%c0_7, %c0_8] : memref<64x32xbf16, #tpu.memory_space<vmem>>, vector<64x32xbf16>
    %cst_9 = arith.constant dense<0.000000e+00> : vector<64x64xf32>
    %14 = tpu.matmul %13, %10, %cst_9 {dimension_numbers = #tpu.dot_dimension_numbers<[1], [0], [0], [1], [0, 0, 1, 1], [], []>} : vector<64x32xbf16>, vector<32x64xbf16>, vector<64x64xf32> -> vector<64x64xf32>
    %c0_10 = arith.constant 0 : index
    %c0_11 = arith.constant 0 : index
    %15 = vector.load %arg6[%c0_10, %c0_11] : memref<64x1xf32, #tpu.memory_space<vmem>>, vector<64x1xf32>
    %16 = vector.broadcast %15 : vector<64x1xf32> to vector<64x64xf32>
    %17 = arith.addf %14, %16 : vector<64x64xf32>
    %18 = vector.extract_strided_slice %17 {offsets = [0, 0], sizes = [32, 64], strides = [1, 1]} : vector<64x64xf32> to vector<32x64xf32>
    %19 = arith.truncf %18 : vector<32x64xf32> to vector<32x64xbf16>
    %20 = vector.extract_strided_slice %17 {offsets = [32, 0], sizes = [32, 64], strides = [1, 1]} : vector<64x64xf32> to vector<32x64xf32>
    %21 = arith.truncf %20 : vector<32x64xf32> to vector<32x64xbf16>
    %c0_12 = arith.constant 0 : index
    %c0_13 = arith.constant 0 : index
    %22 = vector.load %arg7[%c0_12, %c0_13] : memref<32x32xbf16, #tpu.memory_space<vmem>>, vector<32x32xbf16>
    %cst_14 = arith.constant dense<0.000000e+00> : vector<32x64xf32>
    %23 = tpu.matmul %22, %12, %cst_14 {dimension_numbers = #tpu.dot_dimension_numbers<[1], [0], [0], [1], [0, 0, 1, 1], [], []>} : vector<32x32xbf16>, vector<32x64xbf16>, vector<32x64xf32> -> vector<32x64xf32>
    %c0_15 = arith.constant 0 : index
    %c0_16 = arith.constant 0 : index
    %24 = vector.load %arg8[%c0_15, %c0_16] : memref<32x1xf32, #tpu.memory_space<vmem>>, vector<32x1xf32>
    %25 = vector.broadcast %24 : vector<32x1xf32> to vector<32x64xf32>
    %26 = arith.addf %23, %25 : vector<32x64xf32>
    %cst_17 = arith.constant dense<0.000000e+00> : vector<64x64xf32>
    %27 = tpu.matmul %19, %21, %cst_17 {dimension_numbers = #tpu.dot_dimension_numbers<[0], [0], [1], [1], [0, 1, 1, 1], [], []>} : vector<32x64xbf16>, vector<32x64xbf16>, vector<64x64xf32> -> vector<64x64xf32>
    %cst_18 = arith.constant dense<0xFF800000> : vector<64xf32>
    %28 = vector.multi_reduction <maximumf>, %27, %cst_18 [1] : vector<64x64xf32> to vector<64xf32>
    %29 = vector.shape_cast %28 : vector<64xf32> to vector<64x1xf32>
    %30 = vector.broadcast %29 : vector<64x1xf32> to vector<64x64xf32>
    %31 = arith.subf %27, %30 : vector<64x64xf32>
    %32 = math.exp %31 : vector<64x64xf32>
    %cst_19 = arith.constant dense<0.000000e+00> : vector<64xf32>
    %33 = vector.multi_reduction <add>, %32, %cst_19 [1] : vector<64x64xf32> to vector<64xf32>
    %34 = vector.shape_cast %33 : vector<64xf32> to vector<64x1xf32>
    %35 = tpu.reciprocal %34 {approx = true} : vector<64x1xf32> -> vector<64x1xf32>
    %36 = vector.broadcast %35 : vector<64x1xf32> to vector<64x64xf32>
    %37 = arith.mulf %32, %36 : vector<64x64xf32>
    %38 = arith.truncf %26 : vector<32x64xf32> to vector<32x64xbf16>
    %39 = arith.truncf %37 : vector<64x64xf32> to vector<64x64xbf16>
    %cst_20 = arith.constant dense<0.000000e+00> : vector<32x64xf32>
    %40 = tpu.matmul %38, %39, %cst_20 {dimension_numbers = #tpu.dot_dimension_numbers<[1], [1], [0], [0], [0, 0, 1, 0], [], []>} : vector<32x64xbf16>, vector<64x64xbf16>, vector<32x64xf32> -> vector<32x64xf32>
    %41 = arith.truncf %40 : vector<32x64xf32> to vector<32x64xbf16>
    %c0_21 = arith.constant 0 : index
    %c0_22 = arith.constant 0 : index
    %42 = vector.load %arg4[%c0_21, %c0_22] : memref<64x4096xbf16, #tpu.memory_space<vmem>>, vector<64x4096xbf16>
    %cst_23 = arith.constant dense<0.000000e+00> : vector<32x4096xf32>
    %43 = tpu.matmul %41, %42, %cst_23 {dimension_numbers = #tpu.dot_dimension_numbers<[1], [0], [0], [1], [0, 0, 1, 1], [], []>} : vector<32x64xbf16>, vector<64x4096xbf16>, vector<32x4096xf32> -> vector<32x4096xf32>
    %44 = arith.addf %43, %1 : vector<32x4096xf32>
    %c0_24 = arith.constant 0 : index
    %c0_25 = arith.constant 0 : index
    %c0_26 = arith.constant 0 : index
    %45 = vector.load %arg9[%c0_24, %c0_25, %c0_26] : memref<1x32x4096xf32, #tpu.memory_space<vmem>>, vector<1x32x4096xf32>
    %46 = vector.shape_cast %45 : vector<1x32x4096xf32> to vector<32x4096xf32>
    %47 = vector.shape_cast %44 : vector<32x4096xf32> to vector<1x32x4096xf32>
    tpu.vector_store %arg9[%c0_24, %c0_25, %c0_26], %47 {strides = array<i32>} : memref<1x32x4096xf32, #tpu.memory_space<vmem>>, vector<1x32x4096xf32>,
    return
  }
  func.func @transform_0(%arg0: i32) -> (i32, i32, i32) {
    %c0_i32 = arith.constant 0 : i32
    %c0_i32_0 = arith.constant 0 : i32
    %c0_i32_1 = arith.constant 0 : i32
    return %arg0, %c0_i32, %c0_i32_0 : i32, i32, i32
  }
  func.func @transform_1(%arg0: i32) -> (i32, i32, i32) {
    %c0_i32 = arith.constant 0 : i32
    %c0_i32_0 = arith.constant 0 : i32
    %c0_i32_1 = arith.constant 0 : i32
    return %arg0, %c0_i32, %c0_i32_0 : i32, i32, i32
  }
  func.func @transform_2(%arg0: i32) -> (i32, i32) {
    %c0_i32 = arith.constant 0 : i32
    %c0_i32_0 = arith.constant 0 : i32
    %c0_i32_1 = arith.constant 0 : i32
    return %c0_i32, %c0_i32_0 : i32, i32
  }
  func.func @transform_3(%arg0: i32) -> (i32, i32) {
    %c0_i32 = arith.constant 0 : i32
    %c0_i32_0 = arith.constant 0 : i32
    %c0_i32_1 = arith.constant 0 : i32
    return %c0_i32, %c0_i32_0 : i32, i32
  }
  func.func @transform_4(%arg0: i32) -> (i32, i32) {
    %c0_i32 = arith.constant 0 : i32
    %c0_i32_0 = arith.constant 0 : i32
    %c0_i32_1 = arith.constant 0 : i32
    return %c0_i32, %c0_i32_0 : i32, i32
  }
  func.func @transform_5(%arg0: i32) -> (i32, i32) {
    %c0_i32 = arith.constant 0 : i32
    %c0_i32_0 = arith.constant 0 : i32
    %c0_i32_1 = arith.constant 0 : i32
    return %c0_i32, %c0_i32_0 : i32, i32
  }
  func.func @transform_6(%arg0: i32) -> (i32, i32) {
    %c0_i32 = arith.constant 0 : i32
    %c0_i32_0 = arith.constant 0 : i32
    %c0_i32_1 = arith.constant 0 : i32
    return %c0_i32, %c0_i32_0 : i32, i32
  }
  func.func @transform_7(%arg0: i32) -> (i32, i32) {
    %c0_i32 = arith.constant 0 : i32
    %c0_i32_0 = arith.constant 0 : i32
    %c0_i32_1 = arith.constant 0 : i32
    return %c0_i32, %c0_i32_0 : i32, i32
  }
  func.func @transform_8(%arg0: i32) -> (i32, i32, i32) {
    %c0_i32 = arith.constant 0 : i32
    %c0_i32_0 = arith.constant 0 : i32
    %c0_i32_1 = arith.constant 0 : i32
    return %arg0, %c0_i32, %c0_i32_0 : i32, i32, i32
  }
}

</mosaic_0001>

<llo_original>
// kernel: deam_forward.1
$region0: #{deam_forward.1}
  #allocation0 [shape = 'u32[]', space=smem, size = 0x4, offset = 0x4, fixed_abs, tag = 'smem constant byte address 0x4 - core index']
  #allocation1 [shape = 'u32[144,128]{1,0:T(1,128)}', space=vmem, size = 0x12000, scoped, tag = 'internal scratch']
  %s0 = inlined_call_operand.vmem [shape: f32[2,32,4096], index: 0, kind: input, shape index: {}]
  %s1 = inlined_call_operand.vmem [shape: f32[2,32,4096], index: 1, kind: input, shape index: {}]
  %s2 = inlined_call_operand.vmem [shape: bf16[4096,64], index: 2, kind: input, shape index: {}]
  %s3 = inlined_call_operand.vmem [shape: bf16[64,4096], index: 3, kind: input, shape index: {}]
  %s4 = inlined_call_operand.vmem [shape: bf16[64,32], index: 4, kind: input, shape index: {}]
  %s5 = inlined_call_operand.vmem [shape: f32[64,1], index: 5, kind: input, shape index: {}]
  %s6 = inlined_call_operand.vmem [shape: bf16[32,32], index: 6, kind: input, shape index: {}]
  %s7 = inlined_call_operand.vmem [shape: f32[32,1], index: 7, kind: input, shape index: {}]
  %s8 = inlined_call_operand.vmem [shape: f32[2,32,4096], index: 8, kind: output, shape index: {}]
  %s9 = sld [smem:[#allocation0]]
  $region65: #{deam_forward.1} parent=0
    _
  %s11 = ssub.s32 1, %s9
  %s12 = scalar_select 0, %s11, %s9
  loop: start=0, step=1, limit=4
  $region2: #{deam_forward.1} parent=0 // loop_pre_header
    _
  $region3: #{deam_forward.1} parent=0 // loop_header
    %s14 = sphi 0, %s18
    %p15 = scmp.ge.s32.totalorder %s14, 4
    %s24 = sphi 0, %s26
    %s27 = sphi 0, %s24
    %s28 = sphi 0, %s27
    %s44 = sphi 0, %s28
    %s50 = sphi 0, %s52
    %s53 = sphi 0, %s50
    %s54 = sphi 0, %s53
    %s70 = sphi 0, %s54
    %s74 = sphi 0, %s74
    %s76 = sphi 0, %s74
    %s77 = sphi 0, %s76
    %s91 = sphi 0, %s77
    %s95 = sphi 0, %s95
    %s97 = sphi 0, %s95
    %s98 = sphi 0, %s97
    %s112 = sphi 0, %s98
    %s116 = sphi 0, %s116
    %s118 = sphi 0, %s116
    %s119 = sphi 0, %s118
    %s133 = sphi 0, %s119
    %s137 = sphi 0, %s137
    %s139 = sphi 0, %s137
    %s140 = sphi 0, %s139
    %s154 = sphi 0, %s140
    %s158 = sphi 0, %s158
    %s160 = sphi 0, %s158
    %s161 = sphi 0, %s160
    %s175 = sphi 0, %s161
    %s179 = sphi 0, %s179
    %s181 = sphi 0, %s179
    %s182 = sphi 0, %s181
    %s196 = sphi 0, %s182
    %s202 = sphi 0, %s204
    %s205 = sphi 0, %s202
    %s206 = sphi 0, %s205
    %s222 = sphi 0, %s206
  $region4: #{deam_forward.1} parent=0 // loop_header_branch
    %17 = sbr.rel (%p15) target = $region8
  $region5: #{deam_forward.1} parent=0 // loop_body
    %s19 = ssub.s32 %s14, 1
    %s20 = ssub.s32 %s14, 2
    %s21 = sadd.s32 %s14, 1
    %s22 = ssub.s32 %s14, %s21
    %p23 = scmp.eq.s32.totalorder %s22, 0
    %s25 = sadd.s32 %s24, 1
    %s26 = scalar_select %p23, %s24, %s25
    %p29 = pneg %p23
    %p30 = scmp.eq.s32.totalorder %s14, 1
    %p31 = por %p29, %p30
    %p32 = scmp.ne.s32.totalorder %s24, %s27
    %p33 = scmp.eq.s32.totalorder %s14, 0
    %p34 = por %p32, %p33
    %p35 = scmp.ne.s32.totalorder %s24, %s27
    %p36 = scmp.eq.s32.totalorder %s19, 1
    %p37 = por %p35, %p36
    %p38 = scmp.ne.s32.totalorder %s27, %s28
    %p39 = scmp.eq.s32.totalorder %s19, 0
    %p40 = por %p38, %p39
    %p41 = scmp.ne.s32.totalorder %s27, %s28
    %p42 = scmp.eq.s32.totalorder %s20, 1
    %p43 = por %p41, %p42
    %p45 = scmp.ne.s32.totalorder %s28, %s44
    %p46 = scmp.eq.s32.totalorder %s20, 0
    %p47 = por %p45, %p46
    %s48 = ssub.s32 %s14, %s21
    %p49 = scmp.eq.s32.totalorder %s48, 0
    %s51 = sadd.s32 %s50, 1
    %s52 = scalar_select %p49, %s50, %s51
    %p55 = pneg %p49
    %p56 = scmp.eq.s32.totalorder %s14, 1
    %p57 = por %p55, %p56
    %p58 = scmp.ne.s32.totalorder %s50, %s53
    %p59 = scmp.eq.s32.totalorder %s14, 0
    %p60 = por %p58, %p59
    %p61 = scmp.ne.s32.totalorder %s50, %s53
    %p62 = scmp.eq.s32.totalorder %s19, 1
    %p63 = por %p61, %p62
    %p64 = scmp.ne.s32.totalorder %s53, %s54
    %p65 = scmp.eq.s32.totalorder %s19, 0
    %p66 = por %p64, %p65
    %p67 = scmp.ne.s32.totalorder %s53, %s54
    %p68 = scmp.eq.s32.totalorder %s20, 1
    %p69 = por %p67, %p68
    %p71 = scmp.ne.s32.totalorder %s54, %s70
    %p72 = scmp.eq.s32.totalorder %s20, 0
    %p73 = por %p71, %p72
    %s75 = sadd.s32 %s74, 1
    %p78 = scmp.eq.s32.totalorder %s14, 1
    %p79 = scmp.ne.s32.totalorder %s74, %s76
    %p80 = scmp.eq.s32.totalorder %s14, 0
    %p81 = por %p79, %p80
    %p82 = scmp.ne.s32.totalorder %s74, %s76
    %p83 = scmp.eq.s32.totalorder %s19, 1
    %p84 = por %p82, %p83
    %p85 = scmp.ne.s32.totalorder %s76, %s77
    %p86 = scmp.eq.s32.totalorder %s19, 0
    %p87 = por %p85, %p86
    %p88 = scmp.ne.s32.totalorder %s76, %s77
    %p89 = scmp.eq.s32.totalorder %s20, 1
    %p90 = por %p88, %p89
    %p92 = scmp.ne.s32.totalorder %s77, %s91
    %p93 = scmp.eq.s32.totalorder %s20, 0
    %p94 = por %p92, %p93
    %s96 = sadd.s32 %s95, 1
    %p99 = scmp.eq.s32.totalorder %s14, 1
    %p100 = scmp.ne.s32.totalorder %s95, %s97
    %p101 = scmp.eq.s32.totalorder %s14, 0
    %p102 = por %p100, %p101
    %p103 = scmp.ne.s32.totalorder %s95, %s97
    %p104 = scmp.eq.s32.totalorder %s19, 1
    %p105 = por %p103, %p104
    %p106 = scmp.ne.s32.totalorder %s97, %s98
    %p107 = scmp.eq.s32.totalorder %s19, 0
    %p108 = por %p106, %p107
    %p109 = scmp.ne.s32.totalorder %s97, %s98
    %p110 = scmp.eq.s32.totalorder %s20, 1
    %p111 = por %p109, %p110
    %p113 = scmp.ne.s32.totalorder %s98, %s112
    %p114 = scmp.eq.s32.totalorder %s20, 0
    %p115 = por %p113, %p114
    %s117 = sadd.s32 %s116, 1
    %p120 = scmp.eq.s32.totalorder %s14, 1
    %p121 = scmp.ne.s32.totalorder %s116, %s118
    %p122 = scmp.eq.s32.totalorder %s14, 0
    %p123 = por %p121, %p122
    %p124 = scmp.ne.s32.totalorder %s116, %s118
    %p125 = scmp.eq.s32.totalorder %s19, 1
    %p126 = por %p124, %p125
    %p127 = scmp.ne.s32.totalorder %s118, %s119
    %p128 = scmp.eq.s32.totalorder %s19, 0
    %p129 = por %p127, %p128
    %p130 = scmp.ne.s32.totalorder %s118, %s119
    %p131 = scmp.eq.s32.totalorder %s20, 1
    %p132 = por %p130, %p131
    %p134 = scmp.ne.s32.totalorder %s119, %s133
    %p135 = scmp.eq.s32.totalorder %s20, 0
    %p136 = por %p134, %p135
    %s138 = sadd.s32 %s137, 1
    %p141 = scmp.eq.s32.totalorder %s14, 1
    %p142 = scmp.ne.s32.totalorder %s137, %s139
    %p143 = scmp.eq.s32.totalorder %s14, 0
    %p144 = por %p142, %p143
    %p145 = scmp.ne.s32.totalorder %s137, %s139
    %p146 = scmp.eq.s32.totalorder %s19, 1
    %p147 = por %p145, %p146
    %p148 = scmp.ne.s32.totalorder %s139, %s140
    %p149 = scmp.eq.s32.totalorder %s19, 0
    %p150 = por %p148, %p149
    %p151 = scmp.ne.s32.totalorder %s139, %s140
    %p152 = scmp.eq.s32.totalorder %s20, 1
    %p153 = por %p151, %p152
    %p155 = scmp.ne.s32.totalorder %s140, %s154
    %p156 = scmp.eq.s32.totalorder %s20, 0
    %p157 = por %p155, %p156
    %s159 = sadd.s32 %s158, 1
    %p162 = scmp.eq.s32.totalorder %s14, 1
    %p163 = scmp.ne.s32.totalorder %s158, %s160
    %p164 = scmp.eq.s32.totalorder %s14, 0
    %p165 = por %p163, %p164
    %p166 = scmp.ne.s32.totalorder %s158, %s160
    %p167 = scmp.eq.s32.totalorder %s19, 1
    %p168 = por %p166, %p167
    %p169 = scmp.ne.s32.totalorder %s160, %s161
    %p170 = scmp.eq.s32.totalorder %s19, 0
    %p171 = por %p169, %p170
    %p172 = scmp.ne.s32.totalorder %s160, %s161
    %p173 = scmp.eq.s32.totalorder %s20, 1
    %p174 = por %p172, %p173
    %p176 = scmp.ne.s32.totalorder %s161, %s175
    %p177 = scmp.eq.s32.totalorder %s20, 0
    %p178 = por %p176, %p177
    %s180 = sadd.s32 %s179, 1
    %p183 = scmp.eq.s32.totalorder %s14, 1
    %p184 = scmp.ne.s32.totalorder %s179, %s181
    %p185 = scmp.eq.s32.totalorder %s14, 0
    %p186 = por %p184, %p185
    %p187 = scmp.ne.s32.totalorder %s179, %s181
    %p188 = scmp.eq.s32.totalorder %s19, 1
    %p189 = por %p187, %p188
    %p190 = scmp.ne.s32.totalorder %s181, %s182
    %p191 = scmp.eq.s32.totalorder %s19, 0
    %p192 = por %p190, %p191
    %p193 = scmp.ne.s32.totalorder %s181, %s182
    %p194 = scmp.eq.s32.totalorder %s20, 1
    %p195 = por %p193, %p194
    %p197 = scmp.ne.s32.totalorder %s182, %s196
    %p198 = scmp.eq.s32.totalorder %s20, 0
    %p199 = por %p197, %p198
    %s200 = ssub.s32 %s14, %s21
    %p201 = scmp.eq.s32.totalorder %s200, 0
    %s203 = sadd.s32 %s202, 1
    %s204 = scalar_select %p201, %s202, %s203
    %p207 = pneg %p201
    %p208 = scmp.eq.s32.totalorder %s14, 1
    %p209 = por %p207, %p208
    %p210 = scmp.ne.s32.totalorder %s202, %s205
    %p211 = scmp.eq.s32.totalorder %s14, 0
    %p212 = por %p210, %p211
    %p213 = scmp.ne.s32.totalorder %s202, %s205
    %p214 = scmp.eq.s32.totalorder %s19, 1
    %p215 = por %p213, %p214
    %p216 = scmp.ne.s32.totalorder %s205, %s206
    %p217 = scmp.eq.s32.totalorder %s19, 0
    %p218 = por %p216, %p217
    %p219 = scmp.ne.s32.totalorder %s205, %s206
    %p220 = scmp.eq.s32.totalorder %s20, 1
    %p221 = por %p219, %p220
    %p223 = scmp.ne.s32.totalorder %s206, %s222
    %p224 = scmp.eq.s32.totalorder %s20, 0
    %p225 = por %p223, %p224
    %p226 = scmp.le.s32.totalorder 1, %s14
    %p227 = scmp.lt.s32.totalorder %s14, 3
    %p228 = pnand %p226, %p227
    %p229 = pneg %p228
    // Predicated region
    $region9: #{deam_forward.1} parent=5 // pred_check
      _
    $region10: #{deam_forward.1} parent=5 // pred_check_branch
      %231 = sbr.rel (%p228) target = $region12
    $region11: #{deam_forward.1} parent=5 // pred_region
      %s232 = ssub.s32 %s14, 1
      // Predicated region
      $region13: #{deam_forward.1} parent=11 // pred_check
        %p233 = pneg %p87
      $region14: #{deam_forward.1} parent=11 // pred_check_branch
        %235 = sbr.rel (%p233) target = $region16
      $region15: #{deam_forward.1} parent=11 // pred_region
        _
      $region16: #{deam_forward.1} parent=11 // pred_fallthru
        _
      // Predicated region
      $region17: #{deam_forward.1} parent=11 // pred_check
        %p236 = pneg %p108
      $region18: #{deam_forward.1} parent=11 // pred_check_branch
        %238 = sbr.rel (%p236) target = $region20
      $region19: #{deam_forward.1} parent=11 // pred_region
        _
      $region20: #{deam_forward.1} parent=11 // pred_fallthru
        _
      // Predicated region
      $region21: #{deam_forward.1} parent=11 // pred_check
        %p239 = pneg %p129
      $region22: #{deam_forward.1} parent=11 // pred_check_branch
        %241 = sbr.rel (%p239) target = $region24
      $region23: #{deam_forward.1} parent=11 // pred_region
        _
      $region24: #{deam_forward.1} parent=11 // pred_fallthru
        _
      // Predicated region
      $region25: #{deam_forward.1} parent=11 // pred_check
        %p242 = pneg %p150
      $region26: #{deam_forward.1} parent=11 // pred_check_branch
        %244 = sbr.rel (%p242) target = $region28
      $region27: #{deam_forward.1} parent=11 // pred_region
        _
      $region28: #{deam_forward.1} parent=11 // pred_fallthru
        _
      // Predicated region
      $region29: #{deam_forward.1} parent=11 // pred_check
        %p245 = pneg %p171
      $region30: #{deam_forward.1} parent=11 // pred_check_branch
        %247 = sbr.rel (%p245) target = $region32
      $region31: #{deam_forward.1} parent=11 // pred_region
        _
      $region32: #{deam_forward.1} parent=11 // pred_fallthru
        _
      // Predicated region
      $region33: #{deam_forward.1} parent=11 // pred_check
        %p248 = pneg %p192
      $region34: #{deam_forward.1} parent=11 // pred_check_branch
        %250 = sbr.rel (%p248) target = $region36
      $region35: #{deam_forward.1} parent=11 // pred_region
        _
      $region36: #{deam_forward.1} parent=11 // pred_fallthru
        _
    $region12: #{deam_forward.1} parent=5 // pred_fallthru
      _
    %p251 = scmp.lt.s32.totalorder %s14, 2
    // Predicated region
    $region37: #{deam_forward.1} parent=5 // pred_check
      %p252 = pneg %p251
    $region38: #{deam_forward.1} parent=5 // pred_check_branch
      %254 = sbr.rel (%p252) target = $region40
    $region39: #{deam_forward.1} parent=5 // pred_region
      // Predicated region
      $region41: #{deam_forward.1} parent=39 // pred_check
        %p255 = pneg %p34
      $region42: #{deam_forward.1} parent=39 // pred_check_branch
        %257 = sbr.rel (%p255) target = $region44
      $region43: #{deam_forward.1} parent=39 // pred_region
        %p258 = scmp.lt.s32.totalorder %s14, 1
        %s259 = scalar_select %p258, %s14, 1
        %s260 = smul.addr %s259, 128
        %s261 = smul.addr %s260, 8
        %s262 = scalar_lea.vmem %s0, %s261
      $region44: #{deam_forward.1} parent=39 // pred_fallthru
        _
      // Predicated region
      $region45: #{deam_forward.1} parent=39 // pred_check
        %p263 = pneg %p60
      $region46: #{deam_forward.1} parent=39 // pred_check_branch
        %265 = sbr.rel (%p263) target = $region48
      $region47: #{deam_forward.1} parent=39 // pred_region
        %p266 = scmp.lt.s32.totalorder %s14, 1
        %s267 = scalar_select %p266, %s14, 1
        %s268 = smul.addr %s267, 128
        %s269 = smul.addr %s268, 8
        %s270 = scalar_lea.vmem %s1, %s269
      $region48: #{deam_forward.1} parent=39 // pred_fallthru
        _
    $region40: #{deam_forward.1} parent=5 // pred_fallthru
      _
    %p271 = scmp.le.s32.totalorder 1, %s14
    %p272 = scmp.lt.s32.totalorder %s14, 3
    %p273 = pnand %p271, %p272
    %p274 = pneg %p273
    // Predicated region
    $region49: #{deam_forward.1} parent=5 // pred_check
      _
    $region50: #{deam_forward.1} parent=5 // pred_check_branch
      %276 = sbr.rel (%p273) target = $region52
    $region51: #{deam_forward.1} parent=5 // pred_region
      %s277 = ssub.s32 %s14, 1
      %p278 = scmp.lt.s32.totalorder %s19, 1
      %s279 = scalar_select %p278, %s19, 1
      %s280 = smul.addr %s279, 128
      %s281 = smul.addr %s280, 8
      %s282 = scalar_lea.vmem %s0, %s281
      %p283 = pneg %p40
      %p284 = pneg %p37
      %p285 = scmp.lt.s32.totalorder %s19, 1
      %s286 = scalar_select %p285, %s19, 1
      %s287 = smul.addr %s286, 128
      %s288 = smul.addr %s287, 8
      %s289 = scalar_lea.vmem %s1, %s288
      %p290 = pneg %p66
      %p291 = pneg %p63
      %p292 = pneg %p87
      %p293 = pneg %p84
      %p294 = pneg %p108
      %p295 = pneg %p105
      %p296 = pneg %p129
      %p297 = pneg %p126
      %p298 = pneg %p150
      %p299 = pneg %p147
      %p300 = pneg %p171
      %p301 = pneg %p168
      %p302 = pneg %p192
      %p303 = pneg %p189
      %p304 = pneg %p218
      %p305 = pneg %p215
      %p306 = scmp.lt.s32.totalorder %s19, 1
      %s307 = scalar_select %p306, %s19, 1
      %s308 = smul.addr %s307, 128
      %s309 = smul.addr %s308, 8
      %s310 = scalar_lea.vmem %s8, %s309
      %p311 = scmp.lt.s32.totalorder %s19, 1
      %s312 = scalar_select %p311, %s19, 1
      %s313 = smul.addr %s312, 128
      %s314 = smul.addr %s313, 8
      %s315 = scalar_lea.vmem %s0, %s314
      %p316 = scmp.lt.s32.totalorder %s19, 1
      %s317 = scalar_select %p316, %s19, 1
      %s318 = smul.addr %s317, 128
      %s319 = smul.addr %s318, 8
      %s320 = scalar_lea.vmem %s1, %s319
      %p321 = scmp.lt.s32.totalorder %s19, 1
      %s322 = scalar_select %p321, %s19, 1
      %s323 = smul.addr %s322, 128
      %s324 = smul.addr %s323, 8
      %s325 = scalar_lea.vmem %s8, %s324
      %v327 = vld [vmem:[%s320] sm:$0xff]
      %v328 = vld [vmem:[%s320 + $0x8] sm:$0xff]
      %v329 = vld [vmem:[%s320 + $0x10] sm:$0xff]
      %v330 = vld [vmem:[%s320 + $0x18] sm:$0xff]
      %v331 = vld [vmem:[%s320 + $0x20] sm:$0xff]
      %v332 = vld [vmem:[%s320 + $0x28] sm:$0xff]
      %v333 = vld [vmem:[%s320 + $0x30] sm:$0xff]
      %v334 = vld [vmem:[%s320 + $0x38] sm:$0xff]
      %v335 = vld [vmem:[%s320 + $0x40] sm:$0xff]
      %v336 = vld [vmem:[%s320 + $0x48] sm:$0xff]
      %v337 = vld [vmem:[%s320 + $0x50] sm:$0xff]
      %v338 = vld [vmem:[%s320 + $0x58] sm:$0xff]
      %v339 = vld [vmem:[%s320 + $0x60] sm:$0xff]
      %v340 = vld [vmem:[%s320 + $0x68] sm:$0xff]
      %v341 = vld [vmem:[%s320 + $0x70] sm:$0xff]
      %v342 = vld [vmem:[%s320 + $0x78] sm:$0xff]
      %v343 = vld [vmem:[%s320 + $0x80] sm:$0xff]
      %v344 = vld [vmem:[%s320 + $0x88] sm:$0xff]
      %v345 = vld [vmem:[%s320 + $0x90] sm:$0xff]
      %v346 = vld [vmem:[%s320 + $0x98] sm:$0xff]
      %v347 = vld [vmem:[%s320 + $0xa0] sm:$0xff]
      %v348 = vld [vmem:[%s320 + $0xa8] sm:$0xff]
      %v349 = vld [vmem:[%s320 + $0xb0] sm:$0xff]
      %v350 = vld [vmem:[%s320 + $0xb8] sm:$0xff]
      %v351 = vld [vmem:[%s320 + $0xc0] sm:$0xff]
      %v352 = vld [vmem:[%s320 + $0xc8] sm:$0xff]
      %v353 = vld [vmem:[%s320 + $0xd0] sm:$0xff]
      %v354 = vld [vmem:[%s320 + $0xd8] sm:$0xff]
      %v355 = vld [vmem:[%s320 + $0xe0] sm:$0xff]
      %v356 = vld [vmem:[%s320 + $0xe8] sm:$0xff]
      %v357 = vld [vmem:[%s320 + $0xf0] sm:$0xff]
      %v358 = vld [vmem:[%s320 + $0xf8] sm:$0xff]
      %v359 = vld [vmem:[%s320 + $0x100] sm:$0xff]
      %v360 = vld [vmem:[%s320 + $0x108] sm:$0xff]
      %v361 = vld [vmem:[%s320 + $0x110] sm:$0xff]
      %v362 = vld [vmem:[%s320 + $0x118] sm:$0xff]
      %v363 = vld [vmem:[%s320 + $0x120] sm:$0xff]
      %v364 = vld [vmem:[%s320 + $0x128] sm:$0xff]
      %v365 = vld [vmem:[%s320 + $0x130] sm:$0xff]
      %v366 = vld [vmem:[%s320 + $0x138] sm:$0xff]
      %v367 = vld [vmem:[%s320 + $0x140] sm:$0xff]
      %v368 = vld [vmem:[%s320 + $0x148] sm:$0xff]
      %v369 = vld [vmem:[%s320 + $0x150] sm:$0xff]
      %v370 = vld [vmem:[%s320 + $0x158] sm:$0xff]
      %v371 = vld [vmem:[%s320 + $0x160] sm:$0xff]
      %v372 = vld [vmem:[%s320 + $0x168] sm:$0xff]
      %v373 = vld [vmem:[%s320 + $0x170] sm:$0xff]
      %v374 = vld [vmem:[%s320 + $0x178] sm:$0xff]
      %v375 = vld [vmem:[%s320 + $0x180] sm:$0xff]
      %v376 = vld [vmem:[%s320 + $0x188] sm:$0xff]
      %v377 = vld [vmem:[%s320 + $0x190] sm:$0xff]
      %v378 = vld [vmem:[%s320 + $0x198] sm:$0xff]
      %v379 = vld [vmem:[%s320 + $0x1a0] sm:$0xff]
      %v380 = vld [vmem:[%s320 + $0x1a8] sm:$0xff]
      %v381 = vld [vmem:[%s320 + $0x1b0] sm:$0xff]
      %v382 = vld [vmem:[%s320 + $0x1b8] sm:$0xff]
      %v383 = vld [vmem:[%s320 + $0x1c0] sm:$0xff]
      %v384 = vld [vmem:[%s320 + $0x1c8] sm:$0xff]
      %v385 = vld [vmem:[%s320 + $0x1d0] sm:$0xff]
      %v386 = vld [vmem:[%s320 + $0x1d8] sm:$0xff]
      %v387 = vld [vmem:[%s320 + $0x1e0] sm:$0xff]
      %v388 = vld [vmem:[%s320 + $0x1e8] sm:$0xff]
      %v389 = vld [vmem:[%s320 + $0x1f0] sm:$0xff]
      %v390 = vld [vmem:[%s320 + $0x1f8] sm:$0xff]
      %v391 = vld [vmem:[%s320 + $0x200] sm:$0xff]
      %v392 = vld [vmem:[%s320 + $0x208] sm:$0xff]
      %v393 = vld [vmem:[%s320 + $0x210] sm:$0xff]
      %v394 = vld [vmem:[%s320 + $0x218] sm:$0xff]
      %v395 = vld [vmem:[%s320 + $0x220] sm:$0xff]
      %v396 = vld [vmem:[%s320 + $0x228] sm:$0xff]
      %v397 = vld [vmem:[%s320 + $0x230] sm:$0xff]
      %v398 = vld [vmem:[%s320 + $0x238] sm:$0xff]
      %v399 = vld [vmem:[%s320 + $0x240] sm:$0xff]
      %v400 = vld [vmem:[%s320 + $0x248] sm:$0xff]
      %v401 = vld [vmem:[%s320 + $0x250] sm:$0xff]
      %v402 = vld [vmem:[%s320 + $0x258] sm:$0xff]
      %v403 = vld [vmem:[%s320 + $0x260] sm:$0xff]
      %v404 = vld [vmem:[%s320 + $0x268] sm:$0xff]
      %v405 = vld [vmem:[%s320 + $0x270] sm:$0xff]
      %v406 = vld [vmem:[%s320 + $0x278] sm:$0xff]
      %v407 = vld [vmem:[%s320 + $0x280] sm:$0xff]
      %v408 = vld [vmem:[%s320 + $0x288] sm:$0xff]
      %v409 = vld [vmem:[%s320 + $0x290] sm:$0xff]
      %v410 = vld [vmem:[%s320 + $0x298] sm:$0xff]
      %v411 = vld [vmem:[%s320 + $0x2a0] sm:$0xff]
      %v412 = vld [vmem:[%s320 + $0x2a8] sm:$0xff]
      %v413 = vld [vmem:[%s320 + $0x2b0] sm:$0xff]
      %v414 = vld [vmem:[%s320 + $0x2b8] sm:$0xff]
      %v415 = vld [vmem:[%s320 + $0x2c0] sm:$0xff]
      %v416 = vld [vmem:[%s320 + $0x2c8] sm:$0xff]
      %v417 = vld [vmem:[%s320 + $0x2d0] sm:$0xff]
      %v418 = vld [vmem:[%s320 + $0x2d8] sm:$0xff]
      %v419 = vld [vmem:[%s320 + $0x2e0] sm:$0xff]
      %v420 = vld [vmem:[%s320 + $0x2e8] sm:$0xff]
      %v421 = vld [vmem:[%s320 + $0x2f0] sm:$0xff]
      %v422 = vld [vmem:[%s320 + $0x2f8] sm:$0xff]
      %v423 = vld [vmem:[%s320 + $0x300] sm:$0xff]
      %v424 = vld [vmem:[%s320 + $0x308] sm:$0xff]
      %v425 = vld [vmem:[%s320 + $0x310] sm:$0xff]
      %v426 = vld [vmem:[%s320 + $0x318] sm:$0xff]
      %v427 = vld [vmem:[%s320 + $0x320] sm:$0xff]
      %v428 = vld [vmem:[%s320 + $0x328] sm:$0xff]
      %v429 = vld [vmem:[%s320 + $0x330] sm:$0xff]
      %v430 = vld [vmem:[%s320 + $0x338] sm:$0xff]
      %v431 = vld [vmem:[%s320 + $0x340] sm:$0xff]
      %v432 = vld [vmem:[%s320 + $0x348] sm:$0xff]
      %v433 = vld [vmem:[%s320 + $0x350] sm:$0xff]
      %v434 = vld [vmem:[%s320 + $0x358] sm:$0xff]
      %v435 = vld [vmem:[%s320 + $0x360] sm:$0xff]
      %v436 = vld [vmem:[%s320 + $0x368] sm:$0xff]
      %v437 = vld [vmem:[%s320 + $0x370] sm:$0xff]
      %v438 = vld [vmem:[%s320 + $0x378] sm:$0xff]
      %v439 = vld [vmem:[%s320 + $0x380] sm:$0xff]
      %v440 = vld [vmem:[%s320 + $0x388] sm:$0xff]
      %v441 = vld [vmem:[%s320 + $0x390] sm:$0xff]
      %v442 = vld [vmem:[%s320 + $0x398] sm:$0xff]
      %v443 = vld [vmem:[%s320 + $0x3a0] sm:$0xff]
      %v444 = vld [vmem:[%s320 + $0x3a8] sm:$0xff]
      %v445 = vld [vmem:[%s320 + $0x3b0] sm:$0xff]
      %v446 = vld [vmem:[%s320 + $0x3b8] sm:$0xff]
      %v447 = vld [vmem:[%s320 + $0x3c0] sm:$0xff]
      %v448 = vld [vmem:[%s320 + $0x3c8] sm:$0xff]
      %v449 = vld [vmem:[%s320 + $0x3d0] sm:$0xff]
      %v450 = vld [vmem:[%s320 + $0x3d8] sm:$0xff]
      %v451 = vld [vmem:[%s320 + $0x3e0] sm:$0xff]
      %v452 = vld [vmem:[%s320 + $0x3e8] sm:$0xff]
      %v453 = vld [vmem:[%s320 + $0x3f0] sm:$0xff]
      %v454 = vld [vmem:[%s320 + $0x3f8] sm:$0xff]
      %v455 = vld [vmem:[%s315] sm:$0xff]
      %v456 = vld [vmem:[%s315 + $0x8] sm:$0xff]
      %v457 = vld [vmem:[%s315 + $0x10] sm:$0xff]
      %v458 = vld [vmem:[%s315 + $0x18] sm:$0xff]
      %v459 = vld [vmem:[%s315 + $0x20] sm:$0xff]
      %v460 = vld [vmem:[%s315 + $0x28] sm:$0xff]
      %v461 = vld [vmem:[%s315 + $0x30] sm:$0xff]
      %v462 = vld [vmem:[%s315 + $0x38] sm:$0xff]
      %v463 = vld [vmem:[%s315 + $0x40] sm:$0xff]
      %v464 = vld [vmem:[%s315 + $0x48] sm:$0xff]
      %v465 = vld [vmem:[%s315 + $0x50] sm:$0xff]
      %v466 = vld [vmem:[%s315 + $0x58] sm:$0xff]
      %v467 = vld [vmem:[%s315 + $0x60] sm:$0xff]
      %v468 = vld [vmem:[%s315 + $0x68] sm:$0xff]
      %v469 = vld [vmem:[%s315 + $0x70] sm:$0xff]
      %v470 = vld [vmem:[%s315 + $0x78] sm:$0xff]
      %v471 = vld [vmem:[%s315 + $0x80] sm:$0xff]
      %v472 = vld [vmem:[%s315 + $0x88] sm:$0xff]
      %v473 = vld [vmem:[%s315 + $0x90] sm:$0xff]
      %v474 = vld [vmem:[%s315 + $0x98] sm:$0xff]
      %v475 = vld [vmem:[%s315 + $0xa0] sm:$0xff]
      %v476 = vld [vmem:[%s315 + $0xa8] sm:$0xff]
      %v477 = vld [vmem:[%s315 + $0xb0] sm:$0xff]
      %v478 = vld [vmem:[%s315 + $0xb8] sm:$0xff]
      %v479 = vld [vmem:[%s315 + $0xc0] sm:$0xff]
      %v480 = vld [vmem:[%s315 + $0xc8] sm:$0xff]
      %v481 = vld [vmem:[%s315 + $0xd0] sm:$0xff]
      %v482 = vld [vmem:[%s315 + $0xd8] sm:$0xff]
      %v483 = vld [vmem:[%s315 + $0xe0] sm:$0xff]
      %v484 = vld [vmem:[%s315 + $0xe8] sm:$0xff]
      %v485 = vld [vmem:[%s315 + $0xf0] sm:$0xff]
      %v486 = vld [vmem:[%s315 + $0xf8] sm:$0xff]
      %v487 = vld [vmem:[%s315 + $0x100] sm:$0xff]
      %v488 = vld [vmem:[%s315 + $0x108] sm:$0xff]
      %v489 = vld [vmem:[%s315 + $0x110] sm:$0xff]
      %v490 = vld [vmem:[%s315 + $0x118] sm:$0xff]
      %v491 = vld [vmem:[%s315 + $0x120] sm:$0xff]
      %v492 = vld [vmem:[%s315 + $0x128] sm:$0xff]
      %v493 = vld [vmem:[%s315 + $0x130] sm:$0xff]
      %v494 = vld [vmem:[%s315 + $0x138] sm:$0xff]
      %v495 = vld [vmem:[%s315 + $0x140] sm:$0xff]
      %v496 = vld [vmem:[%s315 + $0x148] sm:$0xff]
      %v497 = vld [vmem:[%s315 + $0x150] sm:$0xff]
      %v498 = vld [vmem:[%s315 + $0x158] sm:$0xff]
      %v499 = vld [vmem:[%s315 + $0x160] sm:$0xff]
      %v500 = vld [vmem:[%s315 + $0x168] sm:$0xff]
      %v501 = vld [vmem:[%s315 + $0x170] sm:$0xff]
      %v502 = vld [vmem:[%s315 + $0x178] sm:$0xff]
      %v503 = vld [vmem:[%s315 + $0x180] sm:$0xff]
      %v504 = vld [vmem:[%s315 + $0x188] sm:$0xff]
      %v505 = vld [vmem:[%s315 + $0x190] sm:$0xff]
      %v506 = vld [vmem:[%s315 + $0x198] sm:$0xff]
      %v507 = vld [vmem:[%s315 + $0x1a0] sm:$0xff]
      %v508 = vld [vmem:[%s315 + $0x1a8] sm:$0xff]
      %v509 = vld [vmem:[%s315 + $0x1b0] sm:$0xff]
      %v510 = vld [vmem:[%s315 + $0x1b8] sm:$0xff]
      %v511 = vld [vmem:[%s315 + $0x1c0] sm:$0xff]
      %v512 = vld [vmem:[%s315 + $0x1c8] sm:$0xff]
      %v513 = vld [vmem:[%s315 + $0x1d0] sm:$0xff]
      %v514 = vld [vmem:[%s315 + $0x1d8] sm:$0xff]
      %v515 = vld [vmem:[%s315 + $0x1e0] sm:$0xff]
      %v516 = vld [vmem:[%s315 + $0x1e8] sm:$0xff]
      %v517 = vld [vmem:[%s315 + $0x1f0] sm:$0xff]
      %v518 = vld [vmem:[%s315 + $0x1f8] sm:$0xff]
      %v519 = vld [vmem:[%s315 + $0x200] sm:$0xff]
      %v520 = vld [vmem:[%s315 + $0x208] sm:$0xff]
      %v521 = vld [vmem:[%s315 + $0x210] sm:$0xff]
      %v522 = vld [vmem:[%s315 + $0x218] sm:$0xff]
      %v523 = vld [vmem:[%s315 + $0x220] sm:$0xff]
      %v524 = vld [vmem:[%s315 + $0x228] sm:$0xff]
      %v525 = vld [vmem:[%s315 + $0x230] sm:$0xff]
      %v526 = vld [vmem:[%s315 + $0x238] sm:$0xff]
      %v527 = vld [vmem:[%s315 + $0x240] sm:$0xff]
      %v528 = vld [vmem:[%s315 + $0x248] sm:$0xff]
      %v529 = vld [vmem:[%s315 + $0x250] sm:$0xff]
      %v530 = vld [vmem:[%s315 + $0x258] sm:$0xff]
      %v531 = vld [vmem:[%s315 + $0x260] sm:$0xff]
      %v532 = vld [vmem:[%s315 + $0x268] sm:$0xff]
      %v533 = vld [vmem:[%s315 + $0x270] sm:$0xff]
      %v534 = vld [vmem:[%s315 + $0x278] sm:$0xff]
      %v535 = vld [vmem:[%s315 + $0x280] sm:$0xff]
      %v536 = vld [vmem:[%s315 + $0x288] sm:$0xff]
      %v537 = vld [vmem:[%s315 + $0x290] sm:$0xff]
      %v538 = vld [vmem:[%s315 + $0x298] sm:$0xff]
      %v539 = vld [vmem:[%s315 + $0x2a0] sm:$0xff]
      %v540 = vld [vmem:[%s315 + $0x2a8] sm:$0xff]
      %v541 = vld [vmem:[%s315 + $0x2b0] sm:$0xff]
      %v542 = vld [vmem:[%s315 + $0x2b8] sm:$0xff]
      %v543 = vld [vmem:[%s315 + $0x2c0] sm:$0xff]
      %v544 = vld [vmem:[%s315 + $0x2c8] sm:$0xff]
      %v545 = vld [vmem:[%s315 + $0x2d0] sm:$0xff]
      %v546 = vld [vmem:[%s315 + $0x2d8] sm:$0xff]
      %v547 = vld [vmem:[%s315 + $0x2e0] sm:$0xff]
      %v548 = vld [vmem:[%s315 + $0x2e8] sm:$0xff]
      %v549 = vld [vmem:[%s315 + $0x2f0] sm:$0xff]
      %v550 = vld [vmem:[%s315 + $0x2f8] sm:$0xff]
      %v551 = vld [vmem:[%s315 + $0x300] sm:$0xff]
      %v552 = vld [vmem:[%s315 + $0x308] sm:$0xff]
      %v553 = vld [vmem:[%s315 + $0x310] sm:$0xff]
      %v554 = vld [vmem:[%s315 + $0x318] sm:$0xff]
      %v555 = vld [vmem:[%s315 + $0x320] sm:$0xff]
      %v556 = vld [vmem:[%s315 + $0x328] sm:$0xff]
      %v557 = vld [vmem:[%s315 + $0x330] sm:$0xff]
      %v558 = vld [vmem:[%s315 + $0x338] sm:$0xff]
      %v559 = vld [vmem:[%s315 + $0x340] sm:$0xff]
      %v560 = vld [vmem:[%s315 + $0x348] sm:$0xff]
      %v561 = vld [vmem:[%s315 + $0x350] sm:$0xff]
      %v562 = vld [vmem:[%s315 + $0x358] sm:$0xff]
      %v563 = vld [vmem:[%s315 + $0x360] sm:$0xff]
      %v564 = vld [vmem:[%s315 + $0x368] sm:$0xff]
      %v565 = vld [vmem:[%s315 + $0x370] sm:$0xff]
      %v566 = vld [vmem:[%s315 + $0x378] sm:$0xff]
      %v567 = vld [vmem:[%s315 + $0x380] sm:$0xff]
      %v568 = vld [vmem:[%s315 + $0x388] sm:$0xff]
      %v569 = vld [vmem:[%s315 + $0x390] sm:$0xff]
      %v570 = vld [vmem:[%s315 + $0x398] sm:$0xff]
      %v571 = vld [vmem:[%s315 + $0x3a0] sm:$0xff]
      %v572 = vld [vmem:[%s315 + $0x3a8] sm:$0xff]
      %v573 = vld [vmem:[%s315 + $0x3b0] sm:$0xff]
      %v574 = vld [vmem:[%s315 + $0x3b8] sm:$0xff]
      %v575 = vld [vmem:[%s315 + $0x3c0] sm:$0xff]
      %v576 = vld [vmem:[%s315 + $0x3c8] sm:$0xff]
      %v577 = vld [vmem:[%s315 + $0x3d0] sm:$0xff]
      %v578 = vld [vmem:[%s315 + $0x3d8] sm:$0xff]
      %v579 = vld [vmem:[%s315 + $0x3e0] sm:$0xff]
      %v580 = vld [vmem:[%s315 + $0x3e8] sm:$0xff]
      %v581 = vld [vmem:[%s315 + $0x3f0] sm:$0xff]
      %v582 = vld [vmem:[%s315 + $0x3f8] sm:$0xff]
      %v583 = vpack.c.bf16 %v487, %v455
      %v584 = vpack.c.bf16 %v488, %v456
      %v585 = vpack.c.bf16 %v489, %v457
      %v586 = vpack.c.bf16 %v490, %v458
      %v587 = vpack.c.bf16 %v491, %v459
      %v588 = vpack.c.bf16 %v492, %v460
      %v589 = vpack.c.bf16 %v493, %v461
      %v590 = vpack.c.bf16 %v494, %v462
      %v591 = vpack.c.bf16 %v495, %v463
      %v592 = vpack.c.bf16 %v496, %v464
      %v593 = vpack.c.bf16 %v497, %v465
      %v594 = vpack.c.bf16 %v498, %v466
      %v595 = vpack.c.bf16 %v499, %v467
      %v596 = vpack.c.bf16 %v500, %v468
      %v597 = vpack.c.bf16 %v501, %v469
      %v598 = vpack.c.bf16 %v502, %v470
      %v599 = vpack.c.bf16 %v503, %v471
      %v600 = vpack.c.bf16 %v504, %v472
      %v601 = vpack.c.bf16 %v505, %v473
      %v602 = vpack.c.bf16 %v506, %v474
      %v603 = vpack.c.bf16 %v507, %v475
      %v604 = vpack.c.bf16 %v508, %v476
      %v605 = vpack.c.bf16 %v509, %v477
      %v606 = vpack.c.bf16 %v510, %v478
      %v607 = vpack.c.bf16 %v511, %v479
      %v608 = vpack.c.bf16 %v512, %v480
      %v609 = vpack.c.bf16 %v513, %v481
      %v610 = vpack.c.bf16 %v514, %v482
      %v611 = vpack.c.bf16 %v515, %v483
      %v612 = vpack.c.bf16 %v516, %v484
      %v613 = vpack.c.bf16 %v517, %v485
      %v614 = vpack.c.bf16 %v518, %v486
      %v615 = vpack.c.bf16 %v551, %v519
      %v616 = vpack.c.bf16 %v552, %v520
      %v617 = vpack.c.bf16 %v553, %v521
      %v618 = vpack.c.bf16 %v554, %v522
      %v619 = vpack.c.bf16 %v555, %v523
      %v620 = vpack.c.bf16 %v556, %v524
      %v621 = vpack.c.bf16 %v557, %v525
      %v622 = vpack.c.bf16 %v558, %v526
      %v623 = vpack.c.bf16 %v559, %v527
      %v624 = vpack.c.bf16 %v560, %v528
      %v625 = vpack.c.bf16 %v561, %v529
      %v626 = vpack.c.bf16 %v562, %v530
      %v627 = vpack.c.bf16 %v563, %v531
      %v628 = vpack.c.bf16 %v564, %v532
      %v629 = vpack.c.bf16 %v565, %v533
      %v630 = vpack.c.bf16 %v566, %v534
      %v631 = vpack.c.bf16 %v567, %v535
      %v632 = vpack.c.bf16 %v568, %v536
      %v633 = vpack.c.bf16 %v569, %v537
      %v634 = vpack.c.bf16 %v570, %v538
      %v635 = vpack.c.bf16 %v571, %v539
      %v636 = vpack.c.bf16 %v572, %v540
      %v637 = vpack.c.bf16 %v573, %v541
      %v638 = vpack.c.bf16 %v574, %v542
      %v639 = vpack.c.bf16 %v575, %v543
      %v640 = vpack.c.bf16 %v576, %v544
      %v641 = vpack.c.bf16 %v577, %v545
      %v642 = vpack.c.bf16 %v578, %v546
      %v643 = vpack.c.bf16 %v579, %v547
      %v644 = vpack.c.bf16 %v580, %v548
      %v645 = vpack.c.bf16 %v581, %v549
      %v646 = vpack.c.bf16 %v582, %v550
      %v647 = vpack.c.bf16 %v359, %v327
      %v648 = vpack.c.bf16 %v360, %v328
      %v649 = vpack.c.bf16 %v361, %v329
      %v650 = vpack.c.bf16 %v362, %v330
      %v651 = vpack.c.bf16 %v363, %v331
      %v652 = vpack.c.bf16 %v364, %v332
      %v653 = vpack.c.bf16 %v365, %v333
      %v654 = vpack.c.bf16 %v366, %v334
      %v655 = vpack.c.bf16 %v367, %v335
      %v656 = vpack.c.bf16 %v368, %v336
      %v657 = vpack.c.bf16 %v369, %v337
      %v658 = vpack.c.bf16 %v370, %v338
      %v659 = vpack.c.bf16 %v371, %v339
      %v660 = vpack.c.bf16 %v372, %v340
      %v661 = vpack.c.bf16 %v373, %v341
      %v662 = vpack.c.bf16 %v374, %v342
      %v663 = vpack.c.bf16 %v375, %v343
      %v664 = vpack.c.bf16 %v376, %v344
      %v665 = vpack.c.bf16 %v377, %v345
      %v666 = vpack.c.bf16 %v378, %v346
      %v667 = vpack.c.bf16 %v379, %v347
      %v668 = vpack.c.bf16 %v380, %v348
      %v669 = vpack.c.bf16 %v381, %v349
      %v670 = vpack.c.bf16 %v382, %v350
      %v671 = vpack.c.bf16 %v383, %v351
      %v672 = vpack.c.bf16 %v384, %v352
      %v673 = vpack.c.bf16 %v385, %v353
      %v674 = vpack.c.bf16 %v386, %v354
      %v675 = vpack.c.bf16 %v387, %v355
      %v676 = vpack.c.bf16 %v388, %v356
      %v677 = vpack.c.bf16 %v389, %v357
      %v678 = vpack.c.bf16 %v390, %v358
      %v679 = vpack.c.bf16 %v423, %v391
      %v680 = vpack.c.bf16 %v424, %v392
      %v681 = vpack.c.bf16 %v425, %v393
      %v682 = vpack.c.bf16 %v426, %v394
      %v683 = vpack.c.bf16 %v427, %v395
      %v684 = vpack.c.bf16 %v428, %v396
      %v685 = vpack.c.bf16 %v429, %v397
      %v686 = vpack.c.bf16 %v430, %v398
      %v687 = vpack.c.bf16 %v431, %v399
      %v688 = vpack.c.bf16 %v432, %v400
      %v689 = vpack.c.bf16 %v433, %v401
      %v690 = vpack.c.bf16 %v434, %v402
      %v691 = vpack.c.bf16 %v435, %v403
      %v692 = vpack.c.bf16 %v436, %v404
      %v693 = vpack.c.bf16 %v437, %v405
      %v694 = vpack.c.bf16 %v438, %v406
      %v695 = vpack.c.bf16 %v439, %v407
      %v696 = vpack.c.bf16 %v440, %v408
      %v697 = vpack.c.bf16 %v441, %v409
      %v698 = vpack.c.bf16 %v442, %v410
      %v699 = vpack.c.bf16 %v443, %v411
      %v700 = vpack.c.bf16 %v444, %v412
      %v701 = vpack.c.bf16 %v445, %v413
      %v702 = vpack.c.bf16 %v446, %v414
      %v703 = vpack.c.bf16 %v447, %v415
      %v704 = vpack.c.bf16 %v448, %v416
      %v705 = vpack.c.bf16 %v449, %v417
      %v706 = vpack.c.bf16 %v450, %v418
      %v707 = vpack.c.bf16 %v451, %v419
      %v708 = vpack.c.bf16 %v452, %v420
      %v709 = vpack.c.bf16 %v453, %v421
      %v710 = vpack.c.bf16 %v454, %v422
      %v711 = vld [vmem:[%s2] sm:$0xf]
      %v712 = vld [vmem:[%s2 + $0x4] sm:$0xf]
      %v713 = vld [vmem:[%s2 + $0x8] sm:$0xf]
      %v714 = vld [vmem:[%s2 + $0xc] sm:$0xf]
      %v715 = vld [vmem:[%s2 + $0x10] sm:$0xf]
      %v716 = vld [vmem:[%s2 + $0x14] sm:$0xf]
      %v717 = vld [vmem:[%s2 + $0x18] sm:$0xf]
      %v718 = vld [vmem:[%s2 + $0x1c] sm:$0xf]
      %v719 = vld [vmem:[%s2 + $0x20] sm:$0xf]
      %v720 = vld [vmem:[%s2 + $0x24] sm:$0xf]
      %v721 = vld [vmem:[%s2 + $0x28] sm:$0xf]
      %v722 = vld [vmem:[%s2 + $0x2c] sm:$0xf]
      %v723 = vld [vmem:[%s2 + $0x30] sm:$0xf]
      %v724 = vld [vmem:[%s2 + $0x34] sm:$0xf]
      %v725 = vld [vmem:[%s2 + $0x38] sm:$0xf]
      %v726 = vld [vmem:[%s2 + $0x3c] sm:$0xf]
      %v727 = vld [vmem:[%s2 + $0x40] sm:$0xf]
      %v728 = vld [vmem:[%s2 + $0x44] sm:$0xf]
      %v729 = vld [vmem:[%s2 + $0x48] sm:$0xf]
      %v730 = vld [vmem:[%s2 + $0x4c] sm:$0xf]
      %v731 = vld [vmem:[%s2 + $0x50] sm:$0xf]
      %v732 = vld [vmem:[%s2 + $0x54] sm:$0xf]
      %v733 = vld [vmem:[%s2 + $0x58] sm:$0xf]
      %v734 = vld [vmem:[%s2 + $0x5c] sm:$0xf]
      %v735 = vld [vmem:[%s2 + $0x60] sm:$0xf]
      %v736 = vld [vmem:[%s2 + $0x64] sm:$0xf]
      %v737 = vld [vmem:[%s2 + $0x68] sm:$0xf]
      %v738 = vld [vmem:[%s2 + $0x6c] sm:$0xf]
      %v739 = vld [vmem:[%s2 + $0x70] sm:$0xf]
      %v740 = vld [vmem:[%s2 + $0x74] sm:$0xf]
      %v741 = vld [vmem:[%s2 + $0x78] sm:$0xf]
      %v742 = vld [vmem:[%s2 + $0x7c] sm:$0xf]
      %v743 = vld [vmem:[%s2 + $0x80] sm:$0xf]
      %v744 = vld [vmem:[%s2 + $0x84] sm:$0xf]
      %v745 = vld [vmem:[%s2 + $0x88] sm:$0xf]
      %v746 = vld [vmem:[%s2 + $0x8c] sm:$0xf]
      %v747 = vld [vmem:[%s2 + $0x90] sm:$0xf]
      %v748 = vld [vmem:[%s2 + $0x94] sm:$0xf]
      %v749 = vld [vmem:[%s2 + $0x98] sm:$0xf]
      %v750 = vld [vmem:[%s2 + $0x9c] sm:$0xf]
      %v751 = vld [vmem:[%s2 + $0xa0] sm:$0xf]
      %v752 = vld [vmem:[%s2 + $0xa4] sm:$0xf]
      %v753 = vld [vmem:[%s2 + $0xa8] sm:$0xf]
      %v754 = vld [vmem:[%s2 + $0xac] sm:$0xf]
      %v755 = vld [vmem:[%s2 + $0xb0] sm:$0xf]
      %v756 = vld [vmem:[%s2 + $0xb4] sm:$0xf]
      %v757 = vld [vmem:[%s2 + $0xb8] sm:$0xf]
      %v758 = vld [vmem:[%s2 + $0xbc] sm:$0xf]
      %v759 = vld [vmem:[%s2 + $0xc0] sm:$0xf]
      %v760 = vld [vmem:[%s2 + $0xc4] sm:$0xf]
      %v761 = vld [vmem:[%s2 + $0xc8] sm:$0xf]
      %v762 = vld [vmem:[%s2 + $0xcc] sm:$0xf]
      %v763 = vld [vmem:[%s2 + $0xd0] sm:$0xf]
      %v764 = vld [vmem:[%s2 + $0xd4] sm:$0xf]
      %v765 = vld [vmem:[%s2 + $0xd8] sm:$0xf]
      %v766 = vld [vmem:[%s2 + $0xdc] sm:$0xf]
      %v767 = vld [vmem:[%s2 + $0xe0] sm:$0xf]
      %v768 = vld [vmem:[%s2 + $0xe4] sm:$0xf]
      %v769 = vld [vmem:[%s2 + $0xe8] sm:$0xf]
      %v770 = vld [vmem:[%s2 + $0xec] sm:$0xf]
      %v771 = vld [vmem:[%s2 + $0xf0] sm:$0xf]
      %v772 = vld [vmem:[%s2 + $0xf4] sm:$0xf]
      %v773 = vld [vmem:[%s2 + $0xf8] sm:$0xf]
      %v774 = vld [vmem:[%s2 + $0xfc] sm:$0xf]
      %v775 = vld [vmem:[%s2 + $0x100] sm:$0xf]
      %v776 = vld [vmem:[%s2 + $0x104] sm:$0xf]
      %v777 = vld [vmem:[%s2 + $0x108] sm:$0xf]
      %v778 = vld [vmem:[%s2 + $0x10c] sm:$0xf]
      %v779 = vld [vmem:[%s2 + $0x110] sm:$0xf]
      %v780 = vld [vmem:[%s2 + $0x114] sm:$0xf]
      %v781 = vld [vmem:[%s2 + $0x118] sm:$0xf]
      %v782 = vld [vmem:[%s2 + $0x11c] sm:$0xf]
      %v783 = vld [vmem:[%s2 + $0x120] sm:$0xf]
      %v784 = vld [vmem:[%s2 + $0x124] sm:$0xf]
      %v785 = vld [vmem:[%s2 + $0x128] sm:$0xf]
      %v786 = vld [vmem:[%s2 + $0x12c] sm:$0xf]
      %v787 = vld [vmem:[%s2 + $0x130] sm:$0xf]
      %v788 = vld [vmem:[%s2 + $0x134] sm:$0xf]
      %v789 = vld [vmem:[%s2 + $0x138] sm:$0xf]
      %v790 = vld [vmem:[%s2 + $0x13c] sm:$0xf]
      %v791 = vld [vmem:[%s2 + $0x140] sm:$0xf]
      %v792 = vld [vmem:[%s2 + $0x144] sm:$0xf]
      %v793 = vld [vmem:[%s2 + $0x148] sm:$0xf]
      %v794 = vld [vmem:[%s2 + $0x14c] sm:$0xf]
      %v795 = vld [vmem:[%s2 + $0x150] sm:$0xf]
      %v796 = vld [vmem:[%s2 + $0x154] sm:$0xf]
      %v797 = vld [vmem:[%s2 + $0x158] sm:$0xf]
      %v798 = vld [vmem:[%s2 + $0x15c] sm:$0xf]
      %v799 = vld [vmem:[%s2 + $0x160] sm:$0xf]
      %v800 = vld [vmem:[%s2 + $0x164] sm:$0xf]
      %v801 = vld [vmem:[%s2 + $0x168] sm:$0xf]
      %v802 = vld [vmem:[%s2 + $0x16c] sm:$0xf]
      %v803 = vld [vmem:[%s2 + $0x170] sm:$0xf]
      %v804 = vld [vmem:[%s2 + $0x174] sm:$0xf]
      %v805 = vld [vmem:[%s2 + $0x178] sm:$0xf]
      %v806 = vld [vmem:[%s2 + $0x17c] sm:$0xf]
      %v807 = vld [vmem:[%s2 + $0x180] sm:$0xf]
      %v808 = vld [vmem:[%s2 + $0x184] sm:$0xf]
      %v809 = vld [vmem:[%s2 + $0x188] sm:$0xf]
      %v810 = vld [vmem:[%s2 + $0x18c] sm:$0xf]
      %v811 = vld [vmem:[%s2 + $0x190] sm:$0xf]
      %v812 = vld [vmem:[%s2 + $0x194] sm:$0xf]
      %v813 = vld [vmem:[%s2 + $0x198] sm:$0xf]
      %v814 = vld [vmem:[%s2 + $0x19c] sm:$0xf]
      %v815 = vld [vmem:[%s2 + $0x1a0] sm:$0xf]
      %v816 = vld [vmem:[%s2 + $0x1a4] sm:$0xf]
      %v817 = vld [vmem:[%s2 + $0x1a8] sm:$0xf]
      %v818 = vld [vmem:[%s2 + $0x1ac] sm:$0xf]
      %v819 = vld [vmem:[%s2 + $0x1b0] sm:$0xf]
      %v820 = vld [vmem:[%s2 + $0x1b4] sm:$0xf]
      %v821 = vld [vmem:[%s2 + $0x1b8] sm:$0xf]
      %v822 = vld [vmem:[%s2 + $0x1bc] sm:$0xf]
      %v823 = vld [vmem:[%s2 + $0x1c0] sm:$0xf]
      %v824 = vld [vmem:[%s2 + $0x1c4] sm:$0xf]
      %v825 = vld [vmem:[%s2 + $0x1c8] sm:$0xf]
      %v826 = vld [vmem:[%s2 + $0x1cc] sm:$0xf]
      %v827 = vld [vmem:[%s2 + $0x1d0] sm:$0xf]
      %v828 = vld [vmem:[%s2 + $0x1d4] sm:$0xf]
      %v829 = vld [vmem:[%s2 + $0x1d8] sm:$0xf]
      %v830 = vld [vmem:[%s2 + $0x1dc] sm:$0xf]
      %v831 = vld [vmem:[%s2 + $0x1e0] sm:$0xf]
      %v832 = vld [vmem:[%s2 + $0x1e4] sm:$0xf]
      %v833 = vld [vmem:[%s2 + $0x1e8] sm:$0xf]
      %v834 = vld [vmem:[%s2 + $0x1ec] sm:$0xf]
      %v835 = vld [vmem:[%s2 + $0x1f0] sm:$0xf]
      %v836 = vld [vmem:[%s2 + $0x1f4] sm:$0xf]
      %v837 = vld [vmem:[%s2 + $0x1f8] sm:$0xf]
      %v838 = vld [vmem:[%s2 + $0x1fc] sm:$0xf]
      %v839 = vld [vmem:[%s2 + $0x200] sm:$0xf]
      %v840 = vld [vmem:[%s2 + $0x204] sm:$0xf]
      %v841 = vld [vmem:[%s2 + $0x208] sm:$0xf]
      %v842 = vld [vmem:[%s2 + $0x20c] sm:$0xf]
      %v843 = vld [vmem:[%s2 + $0x210] sm:$0xf]
      %v844 = vld [vmem:[%s2 + $0x214] sm:$0xf]
      %v845 = vld [vmem:[%s2 + $0x218] sm:$0xf]
      %v846 = vld [vmem:[%s2 + $0x21c] sm:$0xf]
      %v847 = vld [vmem:[%s2 + $0x220] sm:$0xf]
      %v848 = vld [vmem:[%s2 + $0x224] sm:$0xf]
      %v849 = vld [vmem:[%s2 + $0x228] sm:$0xf]
      %v850 = vld [vmem:[%s2 + $0x22c] sm:$0xf]
      %v851 = vld [vmem:[%s2 + $0x230] sm:$0xf]
      %v852 = vld [vmem:[%s2 + $0x234] sm:$0xf]
      %v853 = vld [vmem:[%s2 + $0x238] sm:$0xf]
      %v854 = vld [vmem:[%s2 + $0x23c] sm:$0xf]
      %v855 = vld [vmem:[%s2 + $0x240] sm:$0xf]
      %v856 = vld [vmem:[%s2 + $0x244] sm:$0xf]
      %v857 = vld [vmem:[%s2 + $0x248] sm:$0xf]
      %v858 = vld [vmem:[%s2 + $0x24c] sm:$0xf]
      %v859 = vld [vmem:[%s2 + $0x250] sm:$0xf]
      %v860 = vld [vmem:[%s2 + $0x254] sm:$0xf]
      %v861 = vld [vmem:[%s2 + $0x258] sm:$0xf]
      %v862 = vld [vmem:[%s2 + $0x25c] sm:$0xf]
      %v863 = vld [vmem:[%s2 + $0x260] sm:$0xf]
      %v864 = vld [vmem:[%s2 + $0x264] sm:$0xf]
      %v865 = vld [vmem:[%s2 + $0x268] sm:$0xf]
      %v866 = vld [vmem:[%s2 + $0x26c] sm:$0xf]
      %v867 = vld [vmem:[%s2 + $0x270] sm:$0xf]
      %v868 = vld [vmem:[%s2 + $0x274] sm:$0xf]
      %v869 = vld [vmem:[%s2 + $0x278] sm:$0xf]
      %v870 = vld [vmem:[%s2 + $0x27c] sm:$0xf]
      %v871 = vld [vmem:[%s2 + $0x280] sm:$0xf]
      %v872 = vld [vmem:[%s2 + $0x284] sm:$0xf]
      %v873 = vld [vmem:[%s2 + $0x288] sm:$0xf]
      %v874 = vld [vmem:[%s2 + $0x28c] sm:$0xf]
      %v875 = vld [vmem:[%s2 + $0x290] sm:$0xf]
      %v876 = vld [vmem:[%s2 + $0x294] sm:$0xf]
      %v877 = vld [vmem:[%s2 + $0x298] sm:$0xf]
      %v878 = vld [vmem:[%s2 + $0x29c] sm:$0xf]
      %v879 = vld [vmem:[%s2 + $0x2a0] sm:$0xf]
      %v880 = vld [vmem:[%s2 + $0x2a4] sm:$0xf]
      %v881 = vld [vmem:[%s2 + $0x2a8] sm:$0xf]
      %v882 = vld [vmem:[%s2 + $0x2ac] sm:$0xf]
      %v883 = vld [vmem:[%s2 + $0x2b0] sm:$0xf]
      %v884 = vld [vmem:[%s2 + $0x2b4] sm:$0xf]
      %v885 = vld [vmem:[%s2 + $0x2b8] sm:$0xf]
      %v886 = vld [vmem:[%s2 + $0x2bc] sm:$0xf]
      %v887 = vld [vmem:[%s2 + $0x2c0] sm:$0xf]
      %v888 = vld [vmem:[%s2 + $0x2c4] sm:$0xf]
      %v889 = vld [vmem:[%s2 + $0x2c8] sm:$0xf]
      %v890 = vld [vmem:[%s2 + $0x2cc] sm:$0xf]
      %v891 = vld [vmem:[%s2 + $0x2d0] sm:$0xf]
      %v892 = vld [vmem:[%s2 + $0x2d4] sm:$0xf]
      %v893 = vld [vmem:[%s2 + $0x2d8] sm:$0xf]
      %v894 = vld [vmem:[%s2 + $0x2dc] sm:$0xf]
      %v895 = vld [vmem:[%s2 + $0x2e0] sm:$0xf]
      %v896 = vld [vmem:[%s2 + $0x2e4] sm:$0xf]
      %v897 = vld [vmem:[%s2 + $0x2e8] sm:$0xf]
      %v898 = vld [vmem:[%s2 + $0x2ec] sm:$0xf]
      %v899 = vld [vmem:[%s2 + $0x2f0] sm:$0xf]
      %v900 = vld [vmem:[%s2 + $0x2f4] sm:$0xf]
      %v901 = vld [vmem:[%s2 + $0x2f8] sm:$0xf]
      %v902 = vld [vmem:[%s2 + $0x2fc] sm:$0xf]
      %v903 = vld [vmem:[%s2 + $0x300] sm:$0xf]
      %v904 = vld [vmem:[%s2 + $0x304] sm:$0xf]
      %v905 = vld [vmem:[%s2 + $0x308] sm:$0xf]
      %v906 = vld [vmem:[%s2 + $0x30c] sm:$0xf]
      %v907 = vld [vmem:[%s2 + $0x310] sm:$0xf]
      %v908 = vld [vmem:[%s2 + $0x314] sm:$0xf]
      %v909 = vld [vmem:[%s2 + $0x318] sm:$0xf]
      %v910 = vld [vmem:[%s2 + $0x31c] sm:$0xf]
      %v911 = vld [vmem:[%s2 + $0x320] sm:$0xf]
      %v912 = vld [vmem:[%s2 + $0x324] sm:$0xf]
      %v913 = vld [vmem:[%s2 + $0x328] sm:$0xf]
      %v914 = vld [vmem:[%s2 + $0x32c] sm:$0xf]
      %v915 = vld [vmem:[%s2 + $0x330] sm:$0xf]
      %v916 = vld [vmem:[%s2 + $0x334] sm:$0xf]
      %v917 = vld [vmem:[%s2 + $0x338] sm:$0xf]
      %v918 = vld [vmem:[%s2 + $0x33c] sm:$0xf]
      %v919 = vld [vmem:[%s2 + $0x340] sm:$0xf]
      %v920 = vld [vmem:[%s2 + $0x344] sm:$0xf]
      %v921 = vld [vmem:[%s2 + $0x348] sm:$0xf]
      %v922 = vld [vmem:[%s2 + $0x34c] sm:$0xf]
      %v923 = vld [vmem:[%s2 + $0x350] sm:$0xf]
      %v924 = vld [vmem:[%s2 + $0x354] sm:$0xf]
      %v925 = vld [vmem:[%s2 + $0x358] sm:$0xf]
      %v926 = vld [vmem:[%s2 + $0x35c] sm:$0xf]
      %v927 = vld [vmem:[%s2 + $0x360] sm:$0xf]
      %v928 = vld [vmem:[%s2 + $0x364] sm:$0xf]
      %v929 = vld [vmem:[%s2 + $0x368] sm:$0xf]
      %v930 = vld [vmem:[%s2 + $0x36c] sm:$0xf]
      %v931 = vld [vmem:[%s2 + $0x370] sm:$0xf]
      %v932 = vld [vmem:[%s2 + $0x374] sm:$0xf]
      %v933 = vld [vmem:[%s2 + $0x378] sm:$0xf]
      %v934 = vld [vmem:[%s2 + $0x37c] sm:$0xf]
      %v935 = vld [vmem:[%s2 + $0x380] sm:$0xf]
      %v936 = vld [vmem:[%s2 + $0x384] sm:$0xf]
      %v937 = vld [vmem:[%s2 + $0x388] sm:$0xf]
      %v938 = vld [vmem:[%s2 + $0x38c] sm:$0xf]
      %v939 = vld [vmem:[%s2 + $0x390] sm:$0xf]
      %v940 = vld [vmem:[%s2 + $0x394] sm:$0xf]
      %v941 = vld [vmem:[%s2 + $0x398] sm:$0xf]
      %v942 = vld [vmem:[%s2 + $0x39c] sm:$0xf]
      %v943 = vld [vmem:[%s2 + $0x3a0] sm:$0xf]
      %v944 = vld [vmem:[%s2 + $0x3a4] sm:$0xf]
      %v945 = vld [vmem:[%s2 + $0x3a8] sm:$0xf]
      %v946 = vld [vmem:[%s2 + $0x3ac] sm:$0xf]
      %v947 = vld [vmem:[%s2 + $0x3b0] sm:$0xf]
      %v948 = vld [vmem:[%s2 + $0x3b4] sm:$0xf]
      %v949 = vld [vmem:[%s2 + $0x3b8] sm:$0xf]
      %v950 = vld [vmem:[%s2 + $0x3bc] sm:$0xf]
      %v951 = vld [vmem:[%s2 + $0x3c0] sm:$0xf]
      %v952 = vld [vmem:[%s2 + $0x3c4] sm:$0xf]
      %v953 = vld [vmem:[%s2 + $0x3c8] sm:$0xf]
      %v954 = vld [vmem:[%s2 + $0x3cc] sm:$0xf]
      %v955 = vld [vmem:[%s2 + $0x3d0] sm:$0xf]
      %v956 = vld [vmem:[%s2 + $0x3d4] sm:$0xf]
      %v957 = vld [vmem:[%s2 + $0x3d8] sm:$0xf]
      %v958 = vld [vmem:[%s2 + $0x3dc] sm:$0xf]
      %v959 = vld [vmem:[%s2 + $0x3e0] sm:$0xf]
      %v960 = vld [vmem:[%s2 + $0x3e4] sm:$0xf]
      %v961 = vld [vmem:[%s2 + $0x3e8] sm:$0xf]
      %v962 = vld [vmem:[%s2 + $0x3ec] sm:$0xf]
      %v963 = vld [vmem:[%s2 + $0x3f0] sm:$0xf]
      %v964 = vld [vmem:[%s2 + $0x3f4] sm:$0xf]
      %v965 = vld [vmem:[%s2 + $0x3f8] sm:$0xf]
      %v966 = vld [vmem:[%s2 + $0x3fc] sm:$0xf]
      %v967 = vld [vmem:[%s2 + $0x400] sm:$0xf]
      %v968 = vld [vmem:[%s2 + $0x404] sm:$0xf]
      %v969 = vld [vmem:[%s2 + $0x408] sm:$0xf]
      %v970 = vld [vmem:[%s2 + $0x40c] sm:$0xf]
      %v971 = vld [vmem:[%s2 + $0x410] sm:$0xf]
      %v972 = vld [vmem:[%s2 + $0x414] sm:$0xf]
      %v973 = vld [vmem:[%s2 + $0x418] sm:$0xf]
      %v974 = vld [vmem:[%s2 + $0x41c] sm:$0xf]
      %v975 = vld [vmem:[%s2 + $0x420] sm:$0xf]
      %v976 = vld [vmem:[%s2 + $0x424] sm:$0xf]
      %v977 = vld [vmem:[%s2 + $0x428] sm:$0xf]
      %v978 = vld [vmem:[%s2 + $0x42c] sm:$0xf]
      %v979 = vld [vmem:[%s2 + $0x430] sm:$0xf]
      %v980 = vld [vmem:[%s2 + $0x434] sm:$0xf]
      %v981 = vld [vmem:[%s2 + $0x438] sm:$0xf]
      %v982 = vld [vmem:[%s2 + $0x43c] sm:$0xf]
      %v983 = vld [vmem:[%s2 + $0x440] sm:$0xf]
      %v984 = vld [vmem:[%s2 + $0x444] sm:$0xf]
      %v985 = vld [vmem:[%s2 + $0x448] sm:$0xf]
      %v986 = vld [vmem:[%s2 + $0x44c] sm:$0xf]
      %v987 = vld [vmem:[%s2 + $0x450] sm:$0xf]
      %v988 = vld [vmem:[%s2 + $0x454] sm:$0xf]
      %v989 = vld [vmem:[%s2 + $0x458] sm:$0xf]
      %v990 = vld [vmem:[%s2 + $0x45c] sm:$0xf]
      %v991 = vld [vmem:[%s2 + $0x460] sm:$0xf]
      %v992 = vld [vmem:[%s2 + $0x464] sm:$0xf]
      %v993 = vld [vmem:[%s2 + $0x468] sm:$0xf]
      %v994 = vld [vmem:[%s2 + $0x46c] sm:$0xf]
      %v995 = vld [vmem:[%s2 + $0x470] sm:$0xf]
      %v996 = vld [vmem:[%s2 + $0x474] sm:$0xf]
      %v997 = vld [vmem:[%s2 + $0x478] sm:$0xf]
      %v998 = vld [vmem:[%s2 + $0x47c] sm:$0xf]
      %v999 = vld [vmem:[%s2 + $0x480] sm:$0xf]
      %v1000 = vld [vmem:[%s2 + $0x484] sm:$0xf]
      %v1001 = vld [vmem:[%s2 + $0x488] sm:$0xf]
      %v1002 = vld [vmem:[%s2 + $0x48c] sm:$0xf]
      %v1003 = vld [vmem:[%s2 + $0x490] sm:$0xf]
      %v1004 = vld [vmem:[%s2 + $0x494] sm:$0xf]
      %v1005 = vld [vmem:[%s2 + $0x498] sm:$0xf]
      %v1006 = vld [vmem:[%s2 + $0x49c] sm:$0xf]
      %v1007 = vld [vmem:[%s2 + $0x4a0] sm:$0xf]
      %v1008 = vld [vmem:[%s2 + $0x4a4] sm:$0xf]
      %v1009 = vld [vmem:[%s2 + $0x4a8] sm:$0xf]
      %v1010 = vld [vmem:[%s2 + $0x4ac] sm:$0xf]
      %v1011 = vld [vmem:[%s2 + $0x4b0] sm:$0xf]
      %v1012 = vld [vmem:[%s2 + $0x4b4] sm:$0xf]
      %v1013 = vld [vmem:[%s2 + $0x4b8] sm:$0xf]
      %v1014 = vld [vmem:[%s2 + $0x4bc] sm:$0xf]
      %v1015 = vld [vmem:[%s2 + $0x4c0] sm:$0xf]
      %v1016 = vld [vmem:[%s2 + $0x4c4] sm:$0xf]
      %v1017 = vld [vmem:[%s2 + $0x4c8] sm:$0xf]
      %v1018 = vld [vmem:[%s2 + $0x4cc] sm:$0xf]
      %v1019 = vld [vmem:[%s2 + $0x4d0] sm:$0xf]
      %v1020 = vld [vmem:[%s2 + $0x4d4] sm:$0xf]
      %v1021 = vld [vmem:[%s2 + $0x4d8] sm:$0xf]
      %v1022 = vld [vmem:[%s2 + $0x4dc] sm:$0xf]
      %v1023 = vld [vmem:[%s2 + $0x4e0] sm:$0xf]
      %v1024 = vld [vmem:[%s2 + $0x4e4] sm:$0xf]
      %v1025 = vld [vmem:[%s2 + $0x4e8] sm:$0xf]
      %v1026 = vld [vmem:[%s2 + $0x4ec] sm:$0xf]
      %v1027 = vld [vmem:[%s2 + $0x4f0] sm:$0xf]
      %v1028 = vld [vmem:[%s2 + $0x4f4] sm:$0xf]
      %v1029 = vld [vmem:[%s2 + $0x4f8] sm:$0xf]
      %v1030 = vld [vmem:[%s2 + $0x4fc] sm:$0xf]
      %v1031 = vld [vmem:[%s2 + $0x500] sm:$0xf]
      %v1032 = vld [vmem:[%s2 + $0x504] sm:$0xf]
      %v1033 = vld [vmem:[%s2 + $0x508] sm:$0xf]
      %v1034 = vld [vmem:[%s2 + $0x50c] sm:$0xf]
      %v1035 = vld [vmem:[%s2 + $0x510] sm:$0xf]
      %v1036 = vld [vmem:[%s2 + $0x514] sm:$0xf]
      %v1037 = vld [vmem:[%s2 + $0x518] sm:$0xf]
      %v1038 = vld [vmem:[%s2 + $0x51c] sm:$0xf]
      %v1039 = vld [vmem:[%s2 + $0x520] sm:$0xf]
      %v1040 = vld [vmem:[%s2 + $0x524] sm:$0xf]
      %v1041 = vld [vmem:[%s2 + $0x528] sm:$0xf]
      %v1042 = vld [vmem:[%s2 + $0x52c] sm:$0xf]
      %v1043 = vld [vmem:[%s2 + $0x530] sm:$0xf]
      %v1044 = vld [vmem:[%s2 + $0x534] sm:$0xf]
      %v1045 = vld [vmem:[%s2 + $0x538] sm:$0xf]
      %v1046 = vld [vmem:[%s2 + $0x53c] sm:$0xf]
      %v1047 = vld [vmem:[%s2 + $0x540] sm:$0xf]
      %v1048 = vld [vmem:[%s2 + $0x544] sm:$0xf]
      %v1049 = vld [vmem:[%s2 + $0x548] sm:$0xf]
      %v1050 = vld [vmem:[%s2 + $0x54c] sm:$0xf]
      %v1051 = vld [vmem:[%s2 + $0x550] sm:$0xf]
      %v1052 = vld [vmem:[%s2 + $0x554] sm:$0xf]
      %v1053 = vld [vmem:[%s2 + $0x558] sm:$0xf]
      %v1054 = vld [vmem:[%s2 + $0x55c] sm:$0xf]
      %v1055 = vld [vmem:[%s2 + $0x560] sm:$0xf]
      %v1056 = vld [vmem:[%s2 + $0x564] sm:$0xf]
      %v1057 = vld [vmem:[%s2 + $0x568] sm:$0xf]
      %v1058 = vld [vmem:[%s2 + $0x56c] sm:$0xf]
      %v1059 = vld [vmem:[%s2 + $0x570] sm:$0xf]
      %v1060 = vld [vmem:[%s2 + $0x574] sm:$0xf]
      %v1061 = vld [vmem:[%s2 + $0x578] sm:$0xf]
      %v1062 = vld [vmem:[%s2 + $0x57c] sm:$0xf]
      %v1063 = vld [vmem:[%s2 + $0x580] sm:$0xf]
      %v1064 = vld [vmem:[%s2 + $0x584] sm:$0xf]
      %v1065 = vld [vmem:[%s2 + $0x588] sm:$0xf]
      %v1066 = vld [vmem:[%s2 + $0x58c] sm:$0xf]
      %v1067 = vld [vmem:[%s2 + $0x590] sm:$0xf]
      %v1068 = vld [vmem:[%s2 + $0x594] sm:$0xf]
      %v1069 = vld [vmem:[%s2 + $0x598] sm:$0xf]
      %v1070 = vld [vmem:[%s2 + $0x59c] sm:$0xf]
      %v1071 = vld [vmem:[%s2 + $0x5a0] sm:$0xf]
      %v1072 = vld [vmem:[%s2 + $0x5a4] sm:$0xf]
      %v1073 = vld [vmem:[%s2 + $0x5a8] sm:$0xf]
      %v1074 = vld [vmem:[%s2 + $0x5ac] sm:$0xf]
      %v1075 = vld [vmem:[%s2 + $0x5b0] sm:$0xf]
      %v1076 = vld [vmem:[%s2 + $0x5b4] sm:$0xf]
      %v1077 = vld [vmem:[%s2 + $0x5b8] sm:$0xf]
      %v1078 = vld [vmem:[%s2 + $0x5bc] sm:$0xf]
      %v1079 = vld [vmem:[%s2 + $0x5c0] sm:$0xf]
      %v1080 = vld [vmem:[%s2 + $0x5c4] sm:$0xf]
      %v1081 = vld [vmem:[%s2 + $0x5c8] sm:$0xf]
      %v1082 = vld [vmem:[%s2 + $0x5cc] sm:$0xf]
      %v1083 = vld [vmem:[%s2 + $0x5d0] sm:$0xf]
      %v1084 = vld [vmem:[%s2 + $0x5d4] sm:$0xf]
      %v1085 = vld [vmem:[%s2 + $0x5d8] sm:$0xf]
      %v1086 = vld [vmem:[%s2 + $0x5dc] sm:$0xf]
      %v1087 = vld [vmem:[%s2 + $0x5e0] sm:$0xf]
      %v1088 = vld [vmem:[%s2 + $0x5e4] sm:$0xf]
      %v1089 = vld [vmem:[%s2 + $0x5e8] sm:$0xf]
      %v1090 = vld [vmem:[%s2 + $0x5ec] sm:$0xf]
      %v1091 = vld [vmem:[%s2 + $0x5f0] sm:$0xf]
      %v1092 = vld [vmem:[%s2 + $0x5f4] sm:$0xf]
      %v1093 = vld [vmem:[%s2 + $0x5f8] sm:$0xf]
      %v1094 = vld [vmem:[%s2 + $0x5fc] sm:$0xf]
      %v1095 = vld [vmem:[%s2 + $0x600] sm:$0xf]
      %v1096 = vld [vmem:[%s2 + $0x604] sm:$0xf]
      %v1097 = vld [vmem:[%s2 + $0x608] sm:$0xf]
      %v1098 = vld [vmem:[%s2 + $0x60c] sm:$0xf]
      %v1099 = vld [vmem:[%s2 + $0x610] sm:$0xf]
      %v1100 = vld [vmem:[%s2 + $0x614] sm:$0xf]
      %v1101 = vld [vmem:[%s2 + $0x618] sm:$0xf]
      %v1102 = vld [vmem:[%s2 + $0x61c] sm:$0xf]
      %v1103 = vld [vmem:[%s2 + $0x620] sm:$0xf]
      %v1104 = vld [vmem:[%s2 + $0x624] sm:$0xf]
      %v1105 = vld [vmem:[%s2 + $0x628] sm:$0xf]
      %v1106 = vld [vmem:[%s2 + $0x62c] sm:$0xf]
      %v1107 = vld [vmem:[%s2 + $0x630] sm:$0xf]
      %v1108 = vld [vmem:[%s2 + $0x634] sm:$0xf]
      %v1109 = vld [vmem:[%s2 + $0x638] sm:$0xf]
      %v1110 = vld [vmem:[%s2 + $0x63c] sm:$0xf]
      %v1111 = vld [vmem:[%s2 + $0x640] sm:$0xf]
      %v1112 = vld [vmem:[%s2 + $0x644] sm:$0xf]
      %v1113 = vld [vmem:[%s2 + $0x648] sm:$0xf]
      %v1114 = vld [vmem:[%s2 + $0x64c] sm:$0xf]
      %v1115 = vld [vmem:[%s2 + $0x650] sm:$0xf]
      %v1116 = vld [vmem:[%s2 + $0x654] sm:$0xf]
      %v1117 = vld [vmem:[%s2 + $0x658] sm:$0xf]
      %v1118 = vld [vmem:[%s2 + $0x65c] sm:$0xf]
      %v1119 = vld [vmem:[%s2 + $0x660] sm:$0xf]
      %v1120 = vld [vmem:[%s2 + $0x664] sm:$0xf]
      %v1121 = vld [vmem:[%s2 + $0x668] sm:$0xf]
      %v1122 = vld [vmem:[%s2 + $0x66c] sm:$0xf]
      %v1123 = vld [vmem:[%s2 + $0x670] sm:$0xf]
      %v1124 = vld [vmem:[%s2 + $0x674] sm:$0xf]
      %v1125 = vld [vmem:[%s2 + $0x678] sm:$0xf]
      %v1126 = vld [vmem:[%s2 + $0x67c] sm:$0xf]
      %v1127 = vld [vmem:[%s2 + $0x680] sm:$0xf]
      %v1128 = vld [vmem:[%s2 + $0x684] sm:$0xf]
      %v1129 = vld [vmem:[%s2 + $0x688] sm:$0xf]
      %v1130 = vld [vmem:[%s2 + $0x68c] sm:$0xf]
      %v1131 = vld [vmem:[%s2 + $0x690] sm:$0xf]
      %v1132 = vld [vmem:[%s2 + $0x694] sm:$0xf]
      %v1133 = vld [vmem:[%s2 + $0x698] sm:$0xf]
      %v1134 = vld [vmem:[%s2 + $0x69c] sm:$0xf]
      %v1135 = vld [vmem:[%s2 + $0x6a0] sm:$0xf]
      %v1136 = vld [vmem:[%s2 + $0x6a4] sm:$0xf]
      %v1137 = vld [vmem:[%s2 + $0x6a8] sm:$0xf]
      %v1138 = vld [vmem:[%s2 + $0x6ac] sm:$0xf]
      %v1139 = vld [vmem:[%s2 + $0x6b0] sm:$0xf]
      %v1140 = vld [vmem:[%s2 + $0x6b4] sm:$0xf]
      %v1141 = vld [vmem:[%s2 + $0x6b8] sm:$0xf]
      %v1142 = vld [vmem:[%s2 + $0x6bc] sm:$0xf]
      %v1143 = vld [vmem:[%s2 + $0x6c0] sm:$0xf]
      %v1144 = vld [vmem:[%s2 + $0x6c4] sm:$0xf]
      %v1145 = vld [vmem:[%s2 + $0x6c8] sm:$0xf]
      %v1146 = vld [vmem:[%s2 + $0x6cc] sm:$0xf]
      %v1147 = vld [vmem:[%s2 + $0x6d0] sm:$0xf]
      %v1148 = vld [vmem:[%s2 + $0x6d4] sm:$0xf]
      %v1149 = vld [vmem:[%s2 + $0x6d8] sm:$0xf]
      %v1150 = vld [vmem:[%s2 + $0x6dc] sm:$0xf]
      %v1151 = vld [vmem:[%s2 + $0x6e0] sm:$0xf]
      %v1152 = vld [vmem:[%s2 + $0x6e4] sm:$0xf]
      %v1153 = vld [vmem:[%s2 + $0x6e8] sm:$0xf]
      %v1154 = vld [vmem:[%s2 + $0x6ec] sm:$0xf]
      %v1155 = vld [vmem:[%s2 + $0x6f0] sm:$0xf]
      %v1156 = vld [vmem:[%s2 + $0x6f4] sm:$0xf]
      %v1157 = vld [vmem:[%s2 + $0x6f8] sm:$0xf]
      %v1158 = vld [vmem:[%s2 + $0x6fc] sm:$0xf]
      %v1159 = vld [vmem:[%s2 + $0x700] sm:$0xf]
      %v1160 = vld [vmem:[%s2 + $0x704] sm:$0xf]
      %v1161 = vld [vmem:[%s2 + $0x708] sm:$0xf]
      %v1162 = vld [vmem:[%s2 + $0x70c] sm:$0xf]
      %v1163 = vld [vmem:[%s2 + $0x710] sm:$0xf]
      %v1164 = vld [vmem:[%s2 + $0x714] sm:$0xf]
      %v1165 = vld [vmem:[%s2 + $0x718] sm:$0xf]
      %v1166 = vld [vmem:[%s2 + $0x71c] sm:$0xf]
      %v1167 = vld [vmem:[%s2 + $0x720] sm:$0xf]
      %v1168 = vld [vmem:[%s2 + $0x724] sm:$0xf]
      %v1169 = vld [vmem:[%s2 + $0x728] sm:$0xf]
      %v1170 = vld [vmem:[%s2 + $0x72c] sm:$0xf]
      %v1171 = vld [vmem:[%s2 + $0x730] sm:$0xf]
      %v1172 = vld [vmem:[%s2 + $0x734] sm:$0xf]
      %v1173 = vld [vmem:[%s2 + $0x738] sm:$0xf]
      %v1174 = vld [vmem:[%s2 + $0x73c] sm:$0xf]
      %v1175 = vld [vmem:[%s2 + $0x740] sm:$0xf]
      %v1176 = vld [vmem:[%s2 + $0x744] sm:$0xf]
      %v1177 = vld [vmem:[%s2 + $0x748] sm:$0xf]
      %v1178 = vld [vmem:[%s2 + $0x74c] sm:$0xf]
      %v1179 = vld [vmem:[%s2 + $0x750] sm:$0xf]
      %v1180 = vld [vmem:[%s2 + $0x754] sm:$0xf]
      %v1181 = vld [vmem:[%s2 + $0x758] sm:$0xf]
      %v1182 = vld [vmem:[%s2 + $0x75c] sm:$0xf]
      %v1183 = vld [vmem:[%s2 + $0x760] sm:$0xf]
      %v1184 = vld [vmem:[%s2 + $0x764] sm:$0xf]
      %v1185 = vld [vmem:[%s2 + $0x768] sm:$0xf]
      %v1186 = vld [vmem:[%s2 + $0x76c] sm:$0xf]
      %v1187 = vld [vmem:[%s2 + $0x770] sm:$0xf]
      %v1188 = vld [vmem:[%s2 + $0x774] sm:$0xf]
      %v1189 = vld [vmem:[%s2 + $0x778] sm:$0xf]
      %v1190 = vld [vmem:[%s2 + $0x77c] sm:$0xf]
      %v1191 = vld [vmem:[%s2 + $0x780] sm:$0xf]
      %v1192 = vld [vmem:[%s2 + $0x784] sm:$0xf]
      %v1193 = vld [vmem:[%s2 + $0x788] sm:$0xf]
      %v1194 = vld [vmem:[%s2 + $0x78c] sm:$0xf]
      %v1195 = vld [vmem:[%s2 + $0x790] sm:$0xf]
      %v1196 = vld [vmem:[%s2 + $0x794] sm:$0xf]
      %v1197 = vld [vmem:[%s2 + $0x798] sm:$0xf]
      %v1198 = vld [vmem:[%s2 + $0x79c] sm:$0xf]
      %v1199 = vld [vmem:[%s2 + $0x7a0] sm:$0xf]
      %v1200 = vld [vmem:[%s2 + $0x7a4] sm:$0xf]
      %v1201 = vld [vmem:[%s2 + $0x7a8] sm:$0xf]
      %v1202 = vld [vmem:[%s2 + $0x7ac] sm:$0xf]
      %v1203 = vld [vmem:[%s2 + $0x7b0] sm:$0xf]
      %v1204 = vld [vmem:[%s2 + $0x7b4] sm:$0xf]
      %v1205 = vld [vmem:[%s2 + $0x7b8] sm:$0xf]
      %v1206 = vld [vmem:[%s2 + $0x7bc] sm:$0xf]
      %v1207 = vld [vmem:[%s2 + $0x7c0] sm:$0xf]
      %v1208 = vld [vmem:[%s2 + $0x7c4] sm:$0xf]
      %v1209 = vld [vmem:[%s2 + $0x7c8] sm:$0xf]
      %v1210 = vld [vmem:[%s2 + $0x7cc] sm:$0xf]
      %v1211 = vld [vmem:[%s2 + $0x7d0] sm:$0xf]
      %v1212 = vld [vmem:[%s2 + $0x7d4] sm:$0xf]
      %v1213 = vld [vmem:[%s2 + $0x7d8] sm:$0xf]
      %v1214 = vld [vmem:[%s2 + $0x7dc] sm:$0xf]
      %v1215 = vld [vmem:[%s2 + $0x7e0] sm:$0xf]
      %v1216 = vld [vmem:[%s2 + $0x7e4] sm:$0xf]
      %v1217 = vld [vmem:[%s2 + $0x7e8] sm:$0xf]
      %v1218 = vld [vmem:[%s2 + $0x7ec] sm:$0xf]
      %v1219 = vld [vmem:[%s2 + $0x7f0] sm:$0xf]
      %v1220 = vld [vmem:[%s2 + $0x7f4] sm:$0xf]
      %v1221 = vld [vmem:[%s2 + $0x7f8] sm:$0xf]
      %v1222 = vld [vmem:[%s2 + $0x7fc] sm:$0xf]
      %v1735 = vunpack.c.l.b16 %v711
      %v1736 = vunpack.c.l.b16 %v712
      %v1737 = vunpack.c.l.b16 %v713
      %v1738 = vunpack.c.l.b16 %v714
      %v1739 = vunpack.c.l.b16 %v715
      %v1740 = vunpack.c.l.b16 %v716
      %v1741 = vunpack.c.l.b16 %v717
      %v1742 = vunpack.c.l.b16 %v718
      %v1743 = vunpack.c.l.b16 %v719
      %v1744 = vunpack.c.l.b16 %v720
      %v1745 = vunpack.c.l.b16 %v721
      %v1746 = vunpack.c.l.b16 %v722
      %v1747 = vunpack.c.l.b16 %v723
      %v1748 = vunpack.c.l.b16 %v724
      %v1749 = vunpack.c.l.b16 %v725
      %v1750 = vunpack.c.l.b16 %v726
      %v1751 = vunpack.c.l.b16 %v727
      %v1752 = vunpack.c.l.b16 %v728
      %v1753 = vunpack.c.l.b16 %v729
      %v1754 = vunpack.c.l.b16 %v730
      %v1755 = vunpack.c.l.b16 %v731
      %v1756 = vunpack.c.l.b16 %v732
      %v1757 = vunpack.c.l.b16 %v733
      %v1758 = vunpack.c.l.b16 %v734
      %v1759 = vunpack.c.l.b16 %v735
      %v1760 = vunpack.c.l.b16 %v736
      %v1761 = vunpack.c.l.b16 %v737
      %v1762 = vunpack.c.l.b16 %v738
      %v1763 = vunpack.c.l.b16 %v739
      %v1764 = vunpack.c.l.b16 %v740
      %v1765 = vunpack.c.l.b16 %v741
      %v1766 = vunpack.c.l.b16 %v742
      %v1767 = vunpack.c.l.b16 %v743
      %v1768 = vunpack.c.l.b16 %v744
      %v1769 = vunpack.c.l.b16 %v745
      %v1770 = vunpack.c.l.b16 %v746
      %v1771 = vunpack.c.l.b16 %v747
      %v1772 = vunpack.c.l.b16 %v748
      %v1773 = vunpack.c.l.b16 %v749
      %v1774 = vunpack.c.l.b16 %v750
      %v1775 = vunpack.c.l.b16 %v751
      %v1776 = vunpack.c.l.b16 %v752
      %v1777 = vunpack.c.l.b16 %v753
      %v1778 = vunpack.c.l.b16 %v754
      %v1779 = vunpack.c.l.b16 %v755
      %v1780 = vunpack.c.l.b16 %v756
      %v1781 = vunpack.c.l.b16 %v757
      %v1782 = vunpack.c.l.b16 %v758
      %v1783 = vunpack.c.l.b16 %v759
      %v1784 = vunpack.c.l.b16 %v760
      %v1785 = vunpack.c.l.b16 %v761
      %v1786 = vunpack.c.l.b16 %v762
      %v1787 = vunpack.c.l.b16 %v763
      %v1788 = vunpack.c.l.b16 %v764
      %v1789 = vunpack.c.l.b16 %v765
      %v1790 = vunpack.c.l.b16 %v766
      %v1791 = vunpack.c.l.b16 %v767
      %v1792 = vunpack.c.l.b16 %v768
      %v1793 = vunpack.c.l.b16 %v769
      %v1794 = vunpack.c.l.b16 %v770
      %v1795 = vunpack.c.l.b16 %v771
      %v1796 = vunpack.c.l.b16 %v772
      %v1797 = vunpack.c.l.b16 %v773
      %v1798 = vunpack.c.l.b16 %v774
      %v1799 = vunpack.c.l.b16 %v775
      %v1800 = vunpack.c.l.b16 %v776
      %v1801 = vunpack.c.l.b16 %v777
      %v1802 = vunpack.c.l.b16 %v778
      %v1803 = vunpack.c.l.b16 %v779
      %v1804 = vunpack.c.l.b16 %v780
      %v1805 = vunpack.c.l.b16 %v781
      %v1806 = vunpack.c.l.b16 %v782
      %v1807 = vunpack.c.l.b16 %v783
      %v1808 = vunpack.c.l.b16 %v784
      %v1809 = vunpack.c.l.b16 %v785
      %v1810 = vunpack.c.l.b16 %v786
      %v1811 = vunpack.c.l.b16 %v787
      %v1812 = vunpack.c.l.b16 %v788
      %v1813 = vunpack.c.l.b16 %v789
      %v1814 = vunpack.c.l.b16 %v790
      %v1815 = vunpack.c.l.b16 %v791
      %v1816 = vunpack.c.l.b16 %v792
      %v1817 = vunpack.c.l.b16 %v793
      %v1818 = vunpack.c.l.b16 %v794
      %v1819 = vunpack.c.l.b16 %v795
      %v1820 = vunpack.c.l.b16 %v796
      %v1821 = vunpack.c.l.b16 %v797
      %v1822 = vunpack.c.l.b16 %v798
      %v1823 = vunpack.c.l.b16 %v799
      %v1824 = vunpack.c.l.b16 %v800
      %v1825 = vunpack.c.l.b16 %v801
      %v1826 = vunpack.c.l.b16 %v802
      %v1827 = vunpack.c.l.b16 %v803
      %v1828 = vunpack.c.l.b16 %v804
      %v1829 = vunpack.c.l.b16 %v805
      %v1830 = vunpack.c.l.b16 %v806
      %v1831 = vunpack.c.l.b16 %v807
      %v1832 = vunpack.c.l.b16 %v808
      %v1833 = vunpack.c.l.b16 %v809
      %v1834 = vunpack.c.l.b16 %v810
      %v1835 = vunpack.c.l.b16 %v811
      %v1836 = vunpack.c.l.b16 %v812
      %v1837 = vunpack.c.l.b16 %v813
      %v1838 = vunpack.c.l.b16 %v814
      %v1839 = vunpack.c.l.b16 %v815
      %v1840 = vunpack.c.l.b16 %v816
      %v1841 = vunpack.c.l.b16 %v817
      %v1842 = vunpack.c.l.b16 %v818
      %v1843 = vunpack.c.l.b16 %v819
      %v1844 = vunpack.c.l.b16 %v820
      %v1845 = vunpack.c.l.b16 %v821
      %v1846 = vunpack.c.l.b16 %v822
      %v1847 = vunpack.c.l.b16 %v823
      %v1848 = vunpack.c.l.b16 %v824
      %v1849 = vunpack.c.l.b16 %v825
      %v1850 = vunpack.c.l.b16 %v826
      %v1851 = vunpack.c.l.b16 %v827
      %v1852 = vunpack.c.l.b16 %v828
      %v1853 = vunpack.c.l.b16 %v829
      %v1854 = vunpack.c.l.b16 %v830
      %v1855 = vunpack.c.l.b16 %v831
      %v1856 = vunpack.c.l.b16 %v832
      %v1857 = vunpack.c.l.b16 %v833
      %v1858 = vunpack.c.l.b16 %v834
      %v1859 = vunpack.c.l.b16 %v835
      %v1860 = vunpack.c.l.b16 %v836
      %v1861 = vunpack.c.l.b16 %v837
      %v1862 = vunpack.c.l.b16 %v838
      %v1863 = vunpack.c.l.b16 %v839
      %v1864 = vunpack.c.l.b16 %v840
      %v1865 = vunpack.c.l.b16 %v841
      %v1866 = vunpack.c.l.b16 %v842
      %v1867 = vunpack.c.l.b16 %v843
      %v1868 = vunpack.c.l.b16 %v844
      %v1869 = vunpack.c.l.b16 %v845
      %v1870 = vunpack.c.l.b16 %v846
      %v1871 = vunpack.c.l.b16 %v847
      %v1872 = vunpack.c.l.b16 %v848
      %v1873 = vunpack.c.l.b16 %v849
      %v1874 = vunpack.c.l.b16 %v850
      %v1875 = vunpack.c.l.b16 %v851
      %v1876 = vunpack.c.l.b16 %v852
      %v1877 = vunpack.c.l.b16 %v853
      %v1878 = vunpack.c.l.b16 %v854
      %v1879 = vunpack.c.l.b16 %v855
      %v1880 = vunpack.c.l.b16 %v856
      %v1881 = vunpack.c.l.b16 %v857
      %v1882 = vunpack.c.l.b16 %v858
      %v1883 = vunpack.c.l.b16 %v859
      %v1884 = vunpack.c.l.b16 %v860
      %v1885 = vunpack.c.l.b16 %v861
      %v1886 = vunpack.c.l.b16 %v862
      %v1887 = vunpack.c.l.b16 %v863
      %v1888 = vunpack.c.l.b16 %v864
      %v1889 = vunpack.c.l.b16 %v865
      %v1890 = vunpack.c.l.b16 %v866
      %v1891 = vunpack.c.l.b16 %v867
      %v1892 = vunpack.c.l.b16 %v868
      %v1893 = vunpack.c.l.b16 %v869
      %v1894 = vunpack.c.l.b16 %v870
      %v1895 = vunpack.c.l.b16 %v871
      %v1896 = vunpack.c.l.b16 %v872
      %v1897 = vunpack.c.l.b16 %v873
      %v1898 = vunpack.c.l.b16 %v874
      %v1899 = vunpack.c.l.b16 %v875
      %v1900 = vunpack.c.l.b16 %v876
      %v1901 = vunpack.c.l.b16 %v877
      %v1902 = vunpack.c.l.b16 %v878
      %v1903 = vunpack.c.l.b16 %v879
      %v1904 = vunpack.c.l.b16 %v880
      %v1905 = vunpack.c.l.b16 %v881
      %v1906 = vunpack.c.l.b16 %v882
      %v1907 = vunpack.c.l.b16 %v883
      %v1908 = vunpack.c.l.b16 %v884
      %v1909 = vunpack.c.l.b16 %v885
      %v1910 = vunpack.c.l.b16 %v886
      %v1911 = vunpack.c.l.b16 %v887
      %v1912 = vunpack.c.l.b16 %v888
      %v1913 = vunpack.c.l.b16 %v889
      %v1914 = vunpack.c.l.b16 %v890
      %v1915 = vunpack.c.l.b16 %v891
      %v1916 = vunpack.c.l.b16 %v892
      %v1917 = vunpack.c.l.b16 %v893
      %v1918 = vunpack.c.l.b16 %v894
      %v1919 = vunpack.c.l.b16 %v895
      %v1920 = vunpack.c.l.b16 %v896
      %v1921 = vunpack.c.l.b16 %v897
      %v1922 = vunpack.c.l.b16 %v898
      %v1923 = vunpack.c.l.b16 %v899
      %v1924 = vunpack.c.l.b16 %v900
      %v1925 = vunpack.c.l.b16 %v901
      %v1926 = vunpack.c.l.b16 %v902
      %v1927 = vunpack.c.l.b16 %v903
      %v1928 = vunpack.c.l.b16 %v904
      %v1929 = vunpack.c.l.b16 %v905
      %v1930 = vunpack.c.l.b16 %v906
      %v1931 = vunpack.c.l.b16 %v907
      %v1932 = vunpack.c.l.b16 %v908
      %v1933 = vunpack.c.l.b16 %v909
      %v1934 = vunpack.c.l.b16 %v910
      %v1935 = vunpack.c.l.b16 %v911
      %v1936 = vunpack.c.l.b16 %v912
      %v1937 = vunpack.c.l.b16 %v913
      %v1938 = vunpack.c.l.b16 %v914
      %v1939 = vunpack.c.l.b16 %v915
      %v1940 = vunpack.c.l.b16 %v916
      %v1941 = vunpack.c.l.b16 %v917
      %v1942 = vunpack.c.l.b16 %v918
      %v1943 = vunpack.c.l.b16 %v919
      %v1944 = vunpack.c.l.b16 %v920
      %v1945 = vunpack.c.l.b16 %v921
      %v1946 = vunpack.c.l.b16 %v922
      %v1947 = vunpack.c.l.b16 %v923
      %v1948 = vunpack.c.l.b16 %v924
      %v1949 = vunpack.c.l.b16 %v925
      %v1950 = vunpack.c.l.b16 %v926
      %v1951 = vunpack.c.l.b16 %v927
      %v1952 = vunpack.c.l.b16 %v928
      %v1953 = vunpack.c.l.b16 %v929
      %v1954 = vunpack.c.l.b16 %v930
      %v1955 = vunpack.c.l.b16 %v931
      %v1956 = vunpack.c.l.b16 %v932
      %v1957 = vunpack.c.l.b16 %v933
      %v1958 = vunpack.c.l.b16 %v934
      %v1959 = vunpack.c.l.b16 %v935
      %v1960 = vunpack.c.l.b16 %v936
      %v1961 = vunpack.c.l.b16 %v937
      %v1962 = vunpack.c.l.b16 %v938
      %v1963 = vunpack.c.l.b16 %v939
      %v1964 = vunpack.c.l.b16 %v940
      %v1965 = vunpack.c.l.b16 %v941
      %v1966 = vunpack.c.l.b16 %v942
      %v1967 = vunpack.c.l.b16 %v943
      %v1968 = vunpack.c.l.b16 %v944
      %v1969 = vunpack.c.l.b16 %v945
      %v1970 = vunpack.c.l.b16 %v946
      %v1971 = vunpack.c.l.b16 %v947
      %v1972 = vunpack.c.l.b16 %v948
      %v1973 = vunpack.c.l.b16 %v949
      %v1974 = vunpack.c.l.b16 %v950
      %v1975 = vunpack.c.l.b16 %v951
      %v1976 = vunpack.c.l.b16 %v952
      %v1977 = vunpack.c.l.b16 %v953
      %v1978 = vunpack.c.l.b16 %v954
      %v1979 = vunpack.c.l.b16 %v955
      %v1980 = vunpack.c.l.b16 %v956
      %v1981 = vunpack.c.l.b16 %v957
      %v1982 = vunpack.c.l.b16 %v958
      %v1983 = vunpack.c.l.b16 %v959
      %v1984 = vunpack.c.l.b16 %v960
      %v1985 = vunpack.c.l.b16 %v961
      %v1986 = vunpack.c.l.b16 %v962
      %v1987 = vunpack.c.l.b16 %v963
      %v1988 = vunpack.c.l.b16 %v964
      %v1989 = vunpack.c.l.b16 %v965
      %v1990 = vunpack.c.l.b16 %v966
      %v1991 = vunpack.c.l.b16 %v967
      %v1992 = vunpack.c.l.b16 %v968
      %v1993 = vunpack.c.l.b16 %v969
      %v1994 = vunpack.c.l.b16 %v970
      %v1995 = vunpack.c.l.b16 %v971
      %v1996 = vunpack.c.l.b16 %v972
      %v1997 = vunpack.c.l.b16 %v973
      %v1998 = vunpack.c.l.b16 %v974
      %v1999 = vunpack.c.l.b16 %v975
      %v2000 = vunpack.c.l.b16 %v976
      %v2001 = vunpack.c.l.b16 %v977
      %v2002 = vunpack.c.l.b16 %v978
      %v2003 = vunpack.c.l.b16 %v979
      %v2004 = vunpack.c.l.b16 %v980
      %v2005 = vunpack.c.l.b16 %v981
      %v2006 = vunpack.c.l.b16 %v982
      %v2007 = vunpack.c.l.b16 %v983
      %v2008 = vunpack.c.l.b16 %v984
      %v2009 = vunpack.c.l.b16 %v985
      %v2010 = vunpack.c.l.b16 %v986
      %v2011 = vunpack.c.l.b16 %v987
      %v2012 = vunpack.c.l.b16 %v988
      %v2013 = vunpack.c.l.b16 %v989
      %v2014 = vunpack.c.l.b16 %v990
      %v2015 = vunpack.c.l.b16 %v991
      %v2016 = vunpack.c.l.b16 %v992
      %v2017 = vunpack.c.l.b16 %v993
      %v2018 = vunpack.c.l.b16 %v994
      %v2019 = vunpack.c.l.b16 %v995
      %v2020 = vunpack.c.l.b16 %v996
      %v2021 = vunpack.c.l.b16 %v997
      %v2022 = vunpack.c.l.b16 %v998
      %v2023 = vunpack.c.l.b16 %v999
      %v2024 = vunpack.c.l.b16 %v1000
      %v2025 = vunpack.c.l.b16 %v1001
      %v2026 = vunpack.c.l.b16 %v1002
      %v2027 = vunpack.c.l.b16 %v1003
      %v2028 = vunpack.c.l.b16 %v1004
      %v2029 = vunpack.c.l.b16 %v1005
      %v2030 = vunpack.c.l.b16 %v1006
      %v2031 = vunpack.c.l.b16 %v1007
      %v2032 = vunpack.c.l.b16 %v1008
      %v2033 = vunpack.c.l.b16 %v1009
      %v2034 = vunpack.c.l.b16 %v1010
      %v2035 = vunpack.c.l.b16 %v1011
      %v2036 = vunpack.c.l.b16 %v1012
      %v2037 = vunpack.c.l.b16 %v1013
      %v2038 = vunpack.c.l.b16 %v1014
      %v2039 = vunpack.c.l.b16 %v1015
      %v2040 = vunpack.c.l.b16 %v1016
      %v2041 = vunpack.c.l.b16 %v1017
      %v2042 = vunpack.c.l.b16 %v1018
      %v2043 = vunpack.c.l.b16 %v1019
      %v2044 = vunpack.c.l.b16 %v1020
      %v2045 = vunpack.c.l.b16 %v1021
      %v2046 = vunpack.c.l.b16 %v1022
      %v2047 = vunpack.c.l.b16 %v1023
      %v2048 = vunpack.c.l.b16 %v1024
      %v2049 = vunpack.c.l.b16 %v1025
      %v2050 = vunpack.c.l.b16 %v1026
      %v2051 = vunpack.c.l.b16 %v1027
      %v2052 = vunpack.c.l.b16 %v1028
      %v2053 = vunpack.c.l.b16 %v1029
      %v2054 = vunpack.c.l.b16 %v1030
      %v2055 = vunpack.c.l.b16 %v1031
      %v2056 = vunpack.c.l.b16 %v1032
      %v2057 = vunpack.c.l.b16 %v1033
      %v2058 = vunpack.c.l.b16 %v1034
      %v2059 = vunpack.c.l.b16 %v1035
      %v2060 = vunpack.c.l.b16 %v1036
      %v2061 = vunpack.c.l.b16 %v1037
      %v2062 = vunpack.c.l.b16 %v1038
      %v2063 = vunpack.c.l.b16 %v1039
      %v2064 = vunpack.c.l.b16 %v1040
      %v2065 = vunpack.c.l.b16 %v1041
      %v2066 = vunpack.c.l.b16 %v1042
      %v2067 = vunpack.c.l.b16 %v1043
      %v2068 = vunpack.c.l.b16 %v1044
      %v2069 = vunpack.c.l.b16 %v1045
      %v2070 = vunpack.c.l.b16 %v1046
      %v2071 = vunpack.c.l.b16 %v1047
      %v2072 = vunpack.c.l.b16 %v1048
      %v2073 = vunpack.c.l.b16 %v1049
      %v2074 = vunpack.c.l.b16 %v1050
      %v2075 = vunpack.c.l.b16 %v1051
      %v2076 = vunpack.c.l.b16 %v1052
      %v2077 = vunpack.c.l.b16 %v1053
      %v2078 = vunpack.c.l.b16 %v1054
      %v2079 = vunpack.c.l.b16 %v1055
      %v2080 = vunpack.c.l.b16 %v1056
      %v2081 = vunpack.c.l.b16 %v1057
      %v2082 = vunpack.c.l.b16 %v1058
      %v2083 = vunpack.c.l.b16 %v1059
      %v2084 = vunpack.c.l.b16 %v1060
      %v2085 = vunpack.c.l.b16 %v1061
      %v2086 = vunpack.c.l.b16 %v1062
      %v2087 = vunpack.c.l.b16 %v1063
      %v2088 = vunpack.c.l.b16 %v1064
      %v2089 = vunpack.c.l.b16 %v1065
      %v2090 = vunpack.c.l.b16 %v1066
      %v2091 = vunpack.c.l.b16 %v1067
      %v2092 = vunpack.c.l.b16 %v1068
      %v2093 = vunpack.c.l.b16 %v1069
      %v2094 = vunpack.c.l.b16 %v1070
      %v2095 = vunpack.c.l.b16 %v1071
      %v2096 = vunpack.c.l.b16 %v1072
      %v2097 = vunpack.c.l.b16 %v1073
      %v2098 = vunpack.c.l.b16 %v1074
      %v2099 = vunpack.c.l.b16 %v1075
      %v2100 = vunpack.c.l.b16 %v1076
      %v2101 = vunpack.c.l.b16 %v1077
      %v2102 = vunpack.c.l.b16 %v1078
      %v2103 = vunpack.c.l.b16 %v1079
      %v2104 = vunpack.c.l.b16 %v1080
      %v2105 = vunpack.c.l.b16 %v1081
      %v2106 = vunpack.c.l.b16 %v1082
      %v2107 = vunpack.c.l.b16 %v1083
      %v2108 = vunpack.c.l.b16 %v1084
      %v2109 = vunpack.c.l.b16 %v1085
      %v2110 = vunpack.c.l.b16 %v1086
      %v2111 = vunpack.c.l.b16 %v1087
      %v2112 = vunpack.c.l.b16 %v1088
      %v2113 = vunpack.c.l.b16 %v1089
      %v2114 = vunpack.c.l.b16 %v1090
      %v2115 = vunpack.c.l.b16 %v1091
      %v2116 = vunpack.c.l.b16 %v1092
      %v2117 = vunpack.c.l.b16 %v1093
      %v2118 = vunpack.c.l.b16 %v1094
      %v2119 = vunpack.c.l.b16 %v1095
      %v2120 = vunpack.c.l.b16 %v1096
      %v2121 = vunpack.c.l.b16 %v1097
      %v2122 = vunpack.c.l.b16 %v1098
      %v2123 = vunpack.c.l.b16 %v1099
      %v2124 = vunpack.c.l.b16 %v1100
      %v2125 = vunpack.c.l.b16 %v1101
      %v2126 = vunpack.c.l.b16 %v1102
      %v2127 = vunpack.c.l.b16 %v1103
      %v2128 = vunpack.c.l.b16 %v1104
      %v2129 = vunpack.c.l.b16 %v1105
      %v2130 = vunpack.c.l.b16 %v1106
      %v2131 = vunpack.c.l.b16 %v1107
      %v2132 = vunpack.c.l.b16 %v1108
      %v2133 = vunpack.c.l.b16 %v1109
      %v2134 = vunpack.c.l.b16 %v1110
      %v2135 = vunpack.c.l.b16 %v1111
      %v2136 = vunpack.c.l.b16 %v1112
      %v2137 = vunpack.c.l.b16 %v1113
      %v2138 = vunpack.c.l.b16 %v1114
      %v2139 = vunpack.c.l.b16 %v1115
      %v2140 = vunpack.c.l.b16 %v1116
      %v2141 = vunpack.c.l.b16 %v1117
      %v2142 = vunpack.c.l.b16 %v1118
      %v2143 = vunpack.c.l.b16 %v1119
      %v2144 = vunpack.c.l.b16 %v1120
      %v2145 = vunpack.c.l.b16 %v1121
      %v2146 = vunpack.c.l.b16 %v1122
      %v2147 = vunpack.c.l.b16 %v1123
      %v2148 = vunpack.c.l.b16 %v1124
      %v2149 = vunpack.c.l.b16 %v1125
      %v2150 = vunpack.c.l.b16 %v1126
      %v2151 = vunpack.c.l.b16 %v1127
      %v2152 = vunpack.c.l.b16 %v1128
      %v2153 = vunpack.c.l.b16 %v1129
      %v2154 = vunpack.c.l.b16 %v1130
      %v2155 = vunpack.c.l.b16 %v1131
      %v2156 = vunpack.c.l.b16 %v1132
      %v2157 = vunpack.c.l.b16 %v1133
      %v2158 = vunpack.c.l.b16 %v1134
      %v2159 = vunpack.c.l.b16 %v1135
      %v2160 = vunpack.c.l.b16 %v1136
      %v2161 = vunpack.c.l.b16 %v1137
      %v2162 = vunpack.c.l.b16 %v1138
      %v2163 = vunpack.c.l.b16 %v1139
      %v2164 = vunpack.c.l.b16 %v1140
      %v2165 = vunpack.c.l.b16 %v1141
      %v2166 = vunpack.c.l.b16 %v1142
      %v2167 = vunpack.c.l.b16 %v1143
      %v2168 = vunpack.c.l.b16 %v1144
      %v2169 = vunpack.c.l.b16 %v1145
      %v2170 = vunpack.c.l.b16 %v1146
      %v2171 = vunpack.c.l.b16 %v1147
      %v2172 = vunpack.c.l.b16 %v1148
      %v2173 = vunpack.c.l.b16 %v1149
      %v2174 = vunpack.c.l.b16 %v1150
      %v2175 = vunpack.c.l.b16 %v1151
      %v2176 = vunpack.c.l.b16 %v1152
      %v2177 = vunpack.c.l.b16 %v1153
      %v2178 = vunpack.c.l.b16 %v1154
      %v2179 = vunpack.c.l.b16 %v1155
      %v2180 = vunpack.c.l.b16 %v1156
      %v2181 = vunpack.c.l.b16 %v1157
      %v2182 = vunpack.c.l.b16 %v1158
      %v2183 = vunpack.c.l.b16 %v1159
      %v2184 = vunpack.c.l.b16 %v1160
      %v2185 = vunpack.c.l.b16 %v1161
      %v2186 = vunpack.c.l.b16 %v1162
      %v2187 = vunpack.c.l.b16 %v1163
      %v2188 = vunpack.c.l.b16 %v1164
      %v2189 = vunpack.c.l.b16 %v1165
      %v2190 = vunpack.c.l.b16 %v1166
      %v2191 = vunpack.c.l.b16 %v1167
      %v2192 = vunpack.c.l.b16 %v1168
      %v2193 = vunpack.c.l.b16 %v1169
      %v2194 = vunpack.c.l.b16 %v1170
      %v2195 = vunpack.c.l.b16 %v1171
      %v2196 = vunpack.c.l.b16 %v1172
      %v2197 = vunpack.c.l.b16 %v1173
      %v2198 = vunpack.c.l.b16 %v1174
      %v2199 = vunpack.c.l.b16 %v1175
      %v2200 = vunpack.c.l.b16 %v1176
      %v2201 = vunpack.c.l.b16 %v1177
      %v2202 = vunpack.c.l.b16 %v1178
      %v2203 = vunpack.c.l.b16 %v1179
      %v2204 = vunpack.c.l.b16 %v1180
      %v2205 = vunpack.c.l.b16 %v1181
      %v2206 = vunpack.c.l.b16 %v1182
      %v2207 = vunpack.c.l.b16 %v1183
      %v2208 = vunpack.c.l.b16 %v1184
      %v2209 = vunpack.c.l.b16 %v1185
      %v2210 = vunpack.c.l.b16 %v1186
      %v2211 = vunpack.c.l.b16 %v1187
      %v2212 = vunpack.c.l.b16 %v1188
      %v2213 = vunpack.c.l.b16 %v1189
      %v2214 = vunpack.c.l.b16 %v1190
      %v2215 = vunpack.c.l.b16 %v1191
      %v2216 = vunpack.c.l.b16 %v1192
      %v2217 = vunpack.c.l.b16 %v1193
      %v2218 = vunpack.c.l.b16 %v1194
      %v2219 = vunpack.c.l.b16 %v1195
      %v2220 = vunpack.c.l.b16 %v1196
      %v2221 = vunpack.c.l.b16 %v1197
      %v2222 = vunpack.c.l.b16 %v1198
      %v2223 = vunpack.c.l.b16 %v1199
      %v2224 = vunpack.c.l.b16 %v1200
      %v2225 = vunpack.c.l.b16 %v1201
      %v2226 = vunpack.c.l.b16 %v1202
      %v2227 = vunpack.c.l.b16 %v1203
      %v2228 = vunpack.c.l.b16 %v1204
      %v2229 = vunpack.c.l.b16 %v1205
      %v2230 = vunpack.c.l.b16 %v1206
      %v2231 = vunpack.c.l.b16 %v1207
      %v2232 = vunpack.c.l.b16 %v1208
      %v2233 = vunpack.c.l.b16 %v1209
      %v2234 = vunpack.c.l.b16 %v1210
      %v2235 = vunpack.c.l.b16 %v1211
      %v2236 = vunpack.c.l.b16 %v1212
      %v2237 = vunpack.c.l.b16 %v1213
      %v2238 = vunpack.c.l.b16 %v1214
      %v2239 = vunpack.c.l.b16 %v1215
      %v2240 = vunpack.c.l.b16 %v1216
      %v2241 = vunpack.c.l.b16 %v1217
      %v2242 = vunpack.c.l.b16 %v1218
      %v2243 = vunpack.c.l.b16 %v1219
      %v2244 = vunpack.c.l.b16 %v1220
      %v2245 = vunpack.c.l.b16 %v1221
      %v2246 = vunpack.c.l.b16 %v1222
      %v2247 = vpack.c.b16 %v1736, %v1735
      %v2248 = vpack.c.b16 %v1738, %v1737
      %v2249 = vpack.c.b16 %v1740, %v1739
      %v2250 = vpack.c.b16 %v1742, %v1741
      %v2251 = vpack.c.b16 %v1744, %v1743
      %v2252 = vpack.c.b16 %v1746, %v1745
      %v2253 = vpack.c.b16 %v1748, %v1747
      %v2254 = vpack.c.b16 %v1750, %v1749
      %v2255 = vpack.c.b16 %v1752, %v1751
      %v2256 = vpack.c.b16 %v1754, %v1753
      %v2257 = vpack.c.b16 %v1756, %v1755
      %v2258 = vpack.c.b16 %v1758, %v1757
      %v2259 = vpack.c.b16 %v1760, %v1759
      %v2260 = vpack.c.b16 %v1762, %v1761
      %v2261 = vpack.c.b16 %v1764, %v1763
      %v2262 = vpack.c.b16 %v1766, %v1765
      %v2263 = vpack.c.b16 %v1768, %v1767
      %v2264 = vpack.c.b16 %v1770, %v1769
      %v2265 = vpack.c.b16 %v1772, %v1771
      %v2266 = vpack.c.b16 %v1774, %v1773
      %v2267 = vpack.c.b16 %v1776, %v1775
      %v2268 = vpack.c.b16 %v1778, %v1777
      %v2269 = vpack.c.b16 %v1780, %v1779
      %v2270 = vpack.c.b16 %v1782, %v1781
      %v2271 = vpack.c.b16 %v1784, %v1783
      %v2272 = vpack.c.b16 %v1786, %v1785
      %v2273 = vpack.c.b16 %v1788, %v1787
      %v2274 = vpack.c.b16 %v1790, %v1789
      %v2275 = vpack.c.b16 %v1792, %v1791
      %v2276 = vpack.c.b16 %v1794, %v1793
      %v2277 = vpack.c.b16 %v1796, %v1795
      %v2278 = vpack.c.b16 %v1798, %v1797
      %v2279 = vpack.c.b16 %v1800, %v1799
      %v2280 = vpack.c.b16 %v1802, %v1801
      %v2281 = vpack.c.b16 %v1804, %v1803
      %v2282 = vpack.c.b16 %v1806, %v1805
      %v2283 = vpack.c.b16 %v1808, %v1807
      %v2284 = vpack.c.b16 %v1810, %v1809
      %v2285 = vpack.c.b16 %v1812, %v1811
      %v2286 = vpack.c.b16 %v1814, %v1813
      %v2287 = vpack.c.b16 %v1816, %v1815
      %v2288 = vpack.c.b16 %v1818, %v1817
      %v2289 = vpack.c.b16 %v1820, %v1819
      %v2290 = vpack.c.b16 %v1822, %v1821
      %v2291 = vpack.c.b16 %v1824, %v1823
      %v2292 = vpack.c.b16 %v1826, %v1825
      %v2293 = vpack.c.b16 %v1828, %v1827
      %v2294 = vpack.c.b16 %v1830, %v1829
      %v2295 = vpack.c.b16 %v1832, %v1831
      %v2296 = vpack.c.b16 %v1834, %v1833
      %v2297 = vpack.c.b16 %v1836, %v1835
      %v2298 = vpack.c.b16 %v1838, %v1837
      %v2299 = vpack.c.b16 %v1840, %v1839
      %v2300 = vpack.c.b16 %v1842, %v1841
      %v2301 = vpack.c.b16 %v1844, %v1843
      %v2302 = vpack.c.b16 %v1846, %v1845
      %v2303 = vpack.c.b16 %v1848, %v1847
      %v2304 = vpack.c.b16 %v1850, %v1849
      %v2305 = vpack.c.b16 %v1852, %v1851
      %v2306 = vpack.c.b16 %v1854, %v1853
      %v2307 = vpack.c.b16 %v1856, %v1855
      %v2308 = vpack.c.b16 %v1858, %v1857
      %v2309 = vpack.c.b16 %v1860, %v1859
      %v2310 = vpack.c.b16 %v1862, %v1861
      %v2311 = vpack.c.b16 %v1864, %v1863
      %v2312 = vpack.c.b16 %v1866, %v1865
      %v2313 = vpack.c.b16 %v1868, %v1867
      %v2314 = vpack.c.b16 %v1870, %v1869
      %v2315 = vpack.c.b16 %v1872, %v1871
      %v2316 = vpack.c.b16 %v1874, %v1873
      %v2317 = vpack.c.b16 %v1876, %v1875
      %v2318 = vpack.c.b16 %v1878, %v1877
      %v2319 = vpack.c.b16 %v1880, %v1879
      %v2320 = vpack.c.b16 %v1882, %v1881
      %v2321 = vpack.c.b16 %v1884, %v1883
      %v2322 = vpack.c.b16 %v1886, %v1885
      %v2323 = vpack.c.b16 %v1888, %v1887
      %v2324 = vpack.c.b16 %v1890, %v1889
      %v2325 = vpack.c.b16 %v1892, %v1891
      %v2326 = vpack.c.b16 %v1894, %v1893
      %v2327 = vpack.c.b16 %v1896, %v1895
      %v2328 = vpack.c.b16 %v1898, %v1897
      %v2329 = vpack.c.b16 %v1900, %v1899
      %v2330 = vpack.c.b16 %v1902, %v1901
      %v2331 = vpack.c.b16 %v1904, %v1903
      %v2332 = vpack.c.b16 %v1906, %v1905
      %v2333 = vpack.c.b16 %v1908, %v1907
      %v2334 = vpack.c.b16 %v1910, %v1909
      %v2335 = vpack.c.b16 %v1912, %v1911
      %v2336 = vpack.c.b16 %v1914, %v1913
      %v2337 = vpack.c.b16 %v1916, %v1915
      %v2338 = vpack.c.b16 %v1918, %v1917
      %v2339 = vpack.c.b16 %v1920, %v1919
      %v2340 = vpack.c.b16 %v1922, %v1921
      %v2341 = vpack.c.b16 %v1924, %v1923
      %v2342 = vpack.c.b16 %v1926, %v1925
      %v2343 = vpack.c.b16 %v1928, %v1927
      %v2344 = vpack.c.b16 %v1930, %v1929
      %v2345 = vpack.c.b16 %v1932, %v1931
      %v2346 = vpack.c.b16 %v1934, %v1933
      %v2347 = vpack.c.b16 %v1936, %v1935
      %v2348 = vpack.c.b16 %v1938, %v1937
      %v2349 = vpack.c.b16 %v1940, %v1939
      %v2350 = vpack.c.b16 %v1942, %v1941
      %v2351 = vpack.c.b16 %v1944, %v1943
      %v2352 = vpack.c.b16 %v1946, %v1945
      %v2353 = vpack.c.b16 %v1948, %v1947
      %v2354 = vpack.c.b16 %v1950, %v1949
      %v2355 = vpack.c.b16 %v1952, %v1951
      %v2356 = vpack.c.b16 %v1954, %v1953
      %v2357 = vpack.c.b16 %v1956, %v1955
      %v2358 = vpack.c.b16 %v1958, %v1957
      %v2359 = vpack.c.b16 %v1960, %v1959
      %v2360 = vpack.c.b16 %v1962, %v1961
      %v2361 = vpack.c.b16 %v1964, %v1963
      %v2362 = vpack.c.b16 %v1966, %v1965
      %v2363 = vpack.c.b16 %v1968, %v1967
      %v2364 = vpack.c.b16 %v1970, %v1969
      %v2365 = vpack.c.b16 %v1972, %v1971
      %v2366 = vpack.c.b16 %v1974, %v1973
      %v2367 = vpack.c.b16 %v1976, %v1975
      %v2368 = vpack.c.b16 %v1978, %v1977
      %v2369 = vpack.c.b16 %v1980, %v1979
      %v2370 = vpack.c.b16 %v1982, %v1981
      %v2371 = vpack.c.b16 %v1984, %v1983
      %v2372 = vpack.c.b16 %v1986, %v1985
      %v2373 = vpack.c.b16 %v1988, %v1987
      %v2374 = vpack.c.b16 %v1990, %v1989
      %v2375 = vpack.c.b16 %v1992, %v1991
      %v2376 = vpack.c.b16 %v1994, %v1993
      %v2377 = vpack.c.b16 %v1996, %v1995
      %v2378 = vpack.c.b16 %v1998, %v1997
      %v2379 = vpack.c.b16 %v2000, %v1999
      %v2380 = vpack.c.b16 %v2002, %v2001
      %v2381 = vpack.c.b16 %v2004, %v2003
      %v2382 = vpack.c.b16 %v2006, %v2005
      %v2383 = vpack.c.b16 %v2008, %v2007
      %v2384 = vpack.c.b16 %v2010, %v2009
      %v2385 = vpack.c.b16 %v2012, %v2011
      %v2386 = vpack.c.b16 %v2014, %v2013
      %v2387 = vpack.c.b16 %v2016, %v2015
      %v2388 = vpack.c.b16 %v2018, %v2017
      %v2389 = vpack.c.b16 %v2020, %v2019
      %v2390 = vpack.c.b16 %v2022, %v2021
      %v2391 = vpack.c.b16 %v2024, %v2023
      %v2392 = vpack.c.b16 %v2026, %v2025
      %v2393 = vpack.c.b16 %v2028, %v2027
      %v2394 = vpack.c.b16 %v2030, %v2029
      %v2395 = vpack.c.b16 %v2032, %v2031
      %v2396 = vpack.c.b16 %v2034, %v2033
      %v2397 = vpack.c.b16 %v2036, %v2035
      %v2398 = vpack.c.b16 %v2038, %v2037
      %v2399 = vpack.c.b16 %v2040, %v2039
      %v2400 = vpack.c.b16 %v2042, %v2041
      %v2401 = vpack.c.b16 %v2044, %v2043
      %v2402 = vpack.c.b16 %v2046, %v2045
      %v2403 = vpack.c.b16 %v2048, %v2047
      %v2404 = vpack.c.b16 %v2050, %v2049
      %v2405 = vpack.c.b16 %v2052, %v2051
      %v2406 = vpack.c.b16 %v2054, %v2053
      %v2407 = vpack.c.b16 %v2056, %v2055
      %v2408 = vpack.c.b16 %v2058, %v2057
      %v2409 = vpack.c.b16 %v2060, %v2059
      %v2410 = vpack.c.b16 %v2062, %v2061
      %v2411 = vpack.c.b16 %v2064, %v2063
      %v2412 = vpack.c.b16 %v2066, %v2065
      %v2413 = vpack.c.b16 %v2068, %v2067
      %v2414 = vpack.c.b16 %v2070, %v2069
      %v2415 = vpack.c.b16 %v2072, %v2071
      %v2416 = vpack.c.b16 %v2074, %v2073
      %v2417 = vpack.c.b16 %v2076, %v2075
      %v2418 = vpack.c.b16 %v2078, %v2077
      %v2419 = vpack.c.b16 %v2080, %v2079
      %v2420 = vpack.c.b16 %v2082, %v2081
      %v2421 = vpack.c.b16 %v2084, %v2083
      %v2422 = vpack.c.b16 %v2086, %v2085
      %v2423 = vpack.c.b16 %v2088, %v2087
      %v2424 = vpack.c.b16 %v2090, %v2089
      %v2425 = vpack.c.b16 %v2092, %v2091
      %v2426 = vpack.c.b16 %v2094, %v2093
      %v2427 = vpack.c.b16 %v2096, %v2095
      %v2428 = vpack.c.b16 %v2098, %v2097
      %v2429 = vpack.c.b16 %v2100, %v2099
      %v2430 = vpack.c.b16 %v2102, %v2101
      %v2431 = vpack.c.b16 %v2104, %v2103
      %v2432 = vpack.c.b16 %v2106, %v2105
      %v2433 = vpack.c.b16 %v2108, %v2107
      %v2434 = vpack.c.b16 %v2110, %v2109
      %v2435 = vpack.c.b16 %v2112, %v2111
      %v2436 = vpack.c.b16 %v2114, %v2113
      %v2437 = vpack.c.b16 %v2116, %v2115
      %v2438 = vpack.c.b16 %v2118, %v2117
      %v2439 = vpack.c.b16 %v2120, %v2119
      %v2440 = vpack.c.b16 %v2122, %v2121
      %v2441 = vpack.c.b16 %v2124, %v2123
      %v2442 = vpack.c.b16 %v2126, %v2125
      %v2443 = vpack.c.b16 %v2128, %v2127
      %v2444 = vpack.c.b16 %v2130, %v2129
      %v2445 = vpack.c.b16 %v2132, %v2131
      %v2446 = vpack.c.b16 %v2134, %v2133
      %v2447 = vpack.c.b16 %v2136, %v2135
      %v2448 = vpack.c.b16 %v2138, %v2137
      %v2449 = vpack.c.b16 %v2140, %v2139
      %v2450 = vpack.c.b16 %v2142, %v2141
      %v2451 = vpack.c.b16 %v2144, %v2143
      %v2452 = vpack.c.b16 %v2146, %v2145
      %v2453 = vpack.c.b16 %v2148, %v2147
      %v2454 = vpack.c.b16 %v2150, %v2149
      %v2455 = vpack.c.b16 %v2152, %v2151
      %v2456 = vpack.c.b16 %v2154, %v2153
      %v2457 = vpack.c.b16 %v2156, %v2155
      %v2458 = vpack.c.b16 %v2158, %v2157
      %v2459 = vpack.c.b16 %v2160, %v2159
      %v2460 = vpack.c.b16 %v2162, %v2161
      %v2461 = vpack.c.b16 %v2164, %v2163
      %v2462 = vpack.c.b16 %v2166, %v2165
      %v2463 = vpack.c.b16 %v2168, %v2167
      %v2464 = vpack.c.b16 %v2170, %v2169
      %v2465 = vpack.c.b16 %v2172, %v2171
      %v2466 = vpack.c.b16 %v2174, %v2173
      %v2467 = vpack.c.b16 %v2176, %v2175
      %v2468 = vpack.c.b16 %v2178, %v2177
      %v2469 = vpack.c.b16 %v2180, %v2179
      %v2470 = vpack.c.b16 %v2182, %v2181
      %v2471 = vpack.c.b16 %v2184, %v2183
      %v2472 = vpack.c.b16 %v2186, %v2185
      %v2473 = vpack.c.b16 %v2188, %v2187
      %v2474 = vpack.c.b16 %v2190, %v2189
      %v2475 = vpack.c.b16 %v2192, %v2191
      %v2476 = vpack.c.b16 %v2194, %v2193
      %v2477 = vpack.c.b16 %v2196, %v2195
      %v2478 = vpack.c.b16 %v2198, %v2197
      %v2479 = vpack.c.b16 %v2200, %v2199
      %v2480 = vpack.c.b16 %v2202, %v2201
      %v2481 = vpack.c.b16 %v2204, %v2203
      %v2482 = vpack.c.b16 %v2206, %v2205
      %v2483 = vpack.c.b16 %v2208, %v2207
      %v2484 = vpack.c.b16 %v2210, %v2209
      %v2485 = vpack.c.b16 %v2212, %v2211
      %v2486 = vpack.c.b16 %v2214, %v2213
      %v2487 = vpack.c.b16 %v2216, %v2215
      %v2488 = vpack.c.b16 %v2218, %v2217
      %v2489 = vpack.c.b16 %v2220, %v2219
      %v2490 = vpack.c.b16 %v2222, %v2221
      %v2491 = vpack.c.b16 %v2224, %v2223
      %v2492 = vpack.c.b16 %v2226, %v2225
      %v2493 = vpack.c.b16 %v2228, %v2227
      %v2494 = vpack.c.b16 %v2230, %v2229
      %v2495 = vpack.c.b16 %v2232, %v2231
      %v2496 = vpack.c.b16 %v2234, %v2233
      %v2497 = vpack.c.b16 %v2236, %v2235
      %v2498 = vpack.c.b16 %v2238, %v2237
      %v2499 = vpack.c.b16 %v2240, %v2239
      %v2500 = vpack.c.b16 %v2242, %v2241
      %v2501 = vpack.c.b16 %v2244, %v2243
      %v2502 = vpack.c.b16 %v2246, %v2245
      %2759 = vmatprep.subr.bf16.mxu0 0
      %2760 = vmatpush1.bf16.msra.mxu0 %v2247
      %2761 = vmatprep.subr.bf16.mxu0 0
      %2762 = vmatpush1.bf16.msra.mxu0 %v2248
      %2763 = vmatprep.subr.bf16.mxu0 0
      %2764 = vmatpush1.bf16.msra.mxu0 %v2249
      %2765 = vmatprep.subr.bf16.mxu0 0
      %2766 = vmatpush1.bf16.msra.mxu0 %v2250
      %2767 = vmatprep.subr.bf16.mxu0 0
      %2768 = vmatpush1.bf16.msra.mxu0 %v2251
      %2769 = vmatprep.subr.bf16.mxu0 0
      %2770 = vmatpush1.bf16.msra.mxu0 %v2252
      %2771 = vmatprep.subr.bf16.mxu0 0
      %2772 = vmatpush1.bf16.msra.mxu0 %v2253
      %2773 = vmatprep.subr.bf16.mxu0 0
      %2774 = vmatpush1.bf16.msra.mxu0 %v2254
      %2775 = vmatprep.subr.bf16.mxu0 0
      %2776 = vmatpush1.bf16.msra.mxu0 %v2255
      %2777 = vmatprep.subr.bf16.mxu0 0
      %2778 = vmatpush1.bf16.msra.mxu0 %v2256
      %2779 = vmatprep.subr.bf16.mxu0 0
      %2780 = vmatpush1.bf16.msra.mxu0 %v2257
      %2781 = vmatprep.subr.bf16.mxu0 0
      %2782 = vmatpush1.bf16.msra.mxu0 %v2258
      %2783 = vmatprep.subr.bf16.mxu0 0
      %2784 = vmatpush1.bf16.msra.mxu0 %v2259
      %2785 = vmatprep.subr.bf16.mxu0 0
      %2786 = vmatpush1.bf16.msra.mxu0 %v2260
      %2787 = vmatprep.subr.bf16.mxu0 0
      %2788 = vmatpush1.bf16.msra.mxu0 %v2261
      %2789 = vmatprep.subr.bf16.mxu0 0
      %2790 = vmatpush1.bf16.msra.mxu0 %v2262
      %2791 = vmatprep.mubr.bf16.mxu0 %v584
      %2792 = vmatmul.mubr.bf16.gmra.mrb[0].mxu0 %v583
      %v2793 = vpop.f32.mrb[0].mxu0
      %v2794 = vadd.f32 0.0, %v2793
      %v2795 = vpop.f32.mrb[0].mxu0
      %v2796 = vpop.f32.mrb[0].mxu0
      %v2797 = vadd.f32 0.0, %v2796
      %v2798 = vpop.f32.mrb[0].mxu0
      %2799 = vmatprep.mubr.bf16.mxu0 %v616
      %2800 = vmatmul.mubr.bf16.gmra.mrb[0].mxu0 %v615
      %v2801 = vpop.f32.mrb[0].mxu0
      %v2802 = vadd.f32 0.0, %v2801
      %v2803 = vpop.f32.mrb[0].mxu0
      %v2804 = vpop.f32.mrb[0].mxu0
      %v2805 = vadd.f32 0.0, %v2804
      %v2806 = vpop.f32.mrb[0].mxu0
      %2807 = vmatprep.mubr.bf16.mxu0 %v648
      %2808 = vmatmul.mubr.bf16.gmra.mrb[0].mxu0 %v647
      %v2809 = vpop.f32.mrb[0].mxu0
      %v2810 = vadd.f32 0.0, %v2809
      %v2811 = vpop.f32.mrb[0].mxu0
      %v2812 = vpop.f32.mrb[0].mxu0
      %v2813 = vadd.f32 0.0, %v2812
      %v2814 = vpop.f32.mrb[0].mxu0
      %2815 = vmatprep.mubr.bf16.mxu0 %v680
      %2816 = vmatmul.mubr.bf16.gmra.mrb[0].mxu0 %v679
      %v2817 = vpop.f32.mrb[0].mxu0
      %v2818 = vadd.f32 0.0, %v2817
      %v2819 = vpop.f32.mrb[0].mxu0
      %v2820 = vpop.f32.mrb[0].mxu0
      %v2821 = vadd.f32 0.0, %v2820
      %v2822 = vpop.f32.mrb[0].mxu0
      %2823 = vdwg.mxu0
      %2824 = vmatprep.subr.bf16.mxu0 0
      %2825 = vmatpush1.bf16.msra.mxu0 %v2263
      %2826 = vmatprep.subr.bf16.mxu0 0
      %2827 = vmatpush1.bf16.msra.mxu0 %v2264
      %2828 = vmatprep.subr.bf16.mxu0 0
      %2829 = vmatpush1.bf16.msra.mxu0 %v2265
      %2830 = vmatprep.subr.bf16.mxu0 0
      %2831 = vmatpush1.bf16.msra.mxu0 %v2266
      %2832 = vmatprep.subr.bf16.mxu0 0
      %2833 = vmatpush1.bf16.msra.mxu0 %v2267
      %2834 = vmatprep.subr.bf16.mxu0 0
      %2835 = vmatpush1.bf16.msra.mxu0 %v2268
      %2836 = vmatprep.subr.bf16.mxu0 0
      %2837 = vmatpush1.bf16.msra.mxu0 %v2269
      %2838 = vmatprep.subr.bf16.mxu0 0
      %2839 = vmatpush1.bf16.msra.mxu0 %v2270
      %2840 = vmatprep.subr.bf16.mxu0 0
      %2841 = vmatpush1.bf16.msra.mxu0 %v2271
      %2842 = vmatprep.subr.bf16.mxu0 0
      %2843 = vmatpush1.bf16.msra.mxu0 %v2272
      %2844 = vmatprep.subr.bf16.mxu0 0
      %2845 = vmatpush1.bf16.msra.mxu0 %v2273
      %2846 = vmatprep.subr.bf16.mxu0 0
      %2847 = vmatpush1.bf16.msra.mxu0 %v2274
      %2848 = vmatprep.subr.bf16.mxu0 0
      %2849 = vmatpush1.bf16.msra.mxu0 %v2275
      %2850 = vmatprep.subr.bf16.mxu0 0
      %2851 = vmatpush1.bf16.msra.mxu0 %v2276
      %2852 = vmatprep.subr.bf16.mxu0 0
      %2853 = vmatpush1.bf16.msra.mxu0 %v2277
      %2854 = vmatprep.subr.bf16.mxu0 0
      %2855 = vmatpush1.bf16.msra.mxu0 %v2278
      %2856 = vmatprep.mubr.bf16.mxu0 %v586
      %2857 = vmatmul.mubr.bf16.gmra.mrb[0].mxu0 %v585
      %v2858 = vpop.f32.mrb[0].mxu0
      %v2859 = vadd.f32 %v2794, %v2858
      %v2860 = vpop.f32.mrb[0].mxu0
      %v2861 = vpop.f32.mrb[0].mxu0
      %v2862 = vadd.f32 %v2797, %v2861
      %v2863 = vpop.f32.mrb[0].mxu0
      %2864 = vmatprep.mubr.bf16.mxu0 %v618
      %2865 = vmatmul.mubr.bf16.gmra.mrb[0].mxu0 %v617
      %v2866 = vpop.f32.mrb[0].mxu0
      %v2867 = vadd.f32 %v2802, %v2866
      %v2868 = vpop.f32.mrb[0].mxu0
      %v2869 = vpop.f32.mrb[0].mxu0
      %v2870 = vadd.f32 %v2805, %v2869
      %v2871 = vpop.f32.mrb[0].mxu0
      %2872 = vmatprep.mubr.bf16.mxu0 %v650
      %2873 = vmatmul.mubr.bf16.gmra.mrb[0].mxu0 %v649
      %v2874 = vpop.f32.mrb[0].mxu0
      %v2875 = vadd.f32 %v2810, %v2874
      %v2876 = vpop.f32.mrb[0].mxu0
      %v2877 = vpop.f32.mrb[0].mxu0
      %v2878 = vadd.f32 %v2813, %v2877
      %v2879 = vpop.f32.mrb[0].mxu0
      %2880 = vmatprep.mubr.bf16.mxu0 %v682
      %2881 = vmatmul.mubr.bf16.gmra.mrb[0].mxu0 %v681
      %v2882 = vpop.f32.mrb[0].mxu0
      %v2883 = vadd.f32 %v2818, %v2882
      %v2884 = vpop.f32.mrb[0].mxu0
      %v2885 = vpop.f32.mrb[0].mxu0
      %v2886 = vadd.f32 %v2821, %v2885
      %v2887 = vpop.f32.mrb[0].mxu0
      %2888 = vdwg.mxu0
      %2889 = vmatprep.subr.bf16.mxu0 0
      %2890 = vmatpush1.bf16.msra.mxu0 %v2279
      %2891 = vmatprep.subr.bf16.mxu0 0
      %2892 = vmatpush1.bf16.msra.mxu0 %v2280
      %2893 = vmatprep.subr.bf16.mxu0 0
      %2894 = vmatpush1.bf16.msra.mxu0 %v2281
      %2895 = vmatprep.subr.bf16.mxu0 0
      %2896 = vmatpush1.bf16.msra.mxu0 %v2282
      %2897 = vmatprep.subr.bf16.mxu0 0
      %2898 = vmatpush1.bf16.msra.mxu0 %v2283
      %2899 = vmatprep.subr.bf16.mxu0 0
      %2900 = vmatpush1.bf16.msra.mxu0 %v2284
      %2901 = vmatprep.subr.bf16.mxu0 0
      %2902 = vmatpush1.bf16.msra.mxu0 %v2285
      %2903 = vmatprep.subr.bf16.mxu0 0
      %2904 = vmatpush1.bf16.msra.mxu0 %v2286
      %2905 = vmatprep.subr.bf16.mxu0 0
      %2906 = vmatpush1.bf16.msra.mxu0 %v2287
      %2907 = vmatprep.subr.bf16.mxu0 0
      %2908 = vmatpush1.bf16.msra.mxu0 %v2288
      %2909 = vmatprep.subr.bf16.mxu0 0
      %2910 = vmatpush1.bf16.msra.mxu0 %v2289
      %2911 = vmatprep.subr.bf16.mxu0 0
      %2912 = vmatpush1.bf16.msra.mxu0 %v2290
      %2913 = vmatprep.subr.bf16.mxu0 0
      %2914 = vmatpush1.bf16.msra.mxu0 %v2291
      %2915 = vmatprep.subr.bf16.mxu0 0
      %2916 = vmatpush1.bf16.msra.mxu0 %v2292
      %2917 = vmatprep.subr.bf16.mxu0 0
      %2918 = vmatpush1.bf16.msra.mxu0 %v2293
      %2919 = vmatprep.subr.bf16.mxu0 0
      %2920 = vmatpush1.bf16.msra.mxu0 %v2294
      %2921 = vmatprep.mubr.bf16.mxu0 %v588
      %2922 = vmatmul.mubr.bf16.gmra.mrb[0].mxu0 %v587
      %v2923 = vpop.f32.mrb[0].mxu0
      %v2924 = vadd.f32 %v2859, %v2923
      %v2925 = vpop.f32.mrb[0].mxu0
      %v2926 = vpop.f32.mrb[0].mxu0
      %v2927 = vadd.f32 %v2862, %v2926
      %v2928 = vpop.f32.mrb[0].mxu0
      %2929 = vmatprep.mubr.bf16.mxu0 %v620
      %2930 = vmatmul.mubr.bf16.gmra.mrb[0].mxu0 %v619
      %v2931 = vpop.f32.mrb[0].mxu0
      %v2932 = vadd.f32 %v2867, %v2931
      %v2933 = vpop.f32.mrb[0].mxu0
      %v2934 = vpop.f32.mrb[0].mxu0
      %v2935 = vadd.f32 %v2870, %v2934
      %v2936 = vpop.f32.mrb[0].mxu0
      %2937 = vmatprep.mubr.bf16.mxu0 %v652
      %2938 = vmatmul.mubr.bf16.gmra.mrb[0].mxu0 %v651
      %v2939 = vpop.f32.mrb[0].mxu0
      %v2940 = vadd.f32 %v2875, %v2939
      %v2941 = vpop.f32.mrb[0].mxu0
      %v2942 = vpop.f32.mrb[0].mxu0
      %v2943 = vadd.f32 %v2878, %v2942
      %v2944 = vpop.f32.mrb[0].mxu0
      %2945 = vmatprep.mubr.bf16.mxu0 %v684
      %2946 = vmatmul.mubr.bf16.gmra.mrb[0].mxu0 %v683
      %v2947 = vpop.f32.mrb[0].mxu0
      %v2948 = vadd.f32 %v2883, %v2947
      %v2949 = vpop.f32.mrb[0].mxu0
      %v2950 = vpop.f32.mrb[0].mxu0
      %v2951 = vadd.f32 %v2886, %v2950
      %v2952 = vpop.f32.mrb[0].mxu0
      %2953 = vdwg.mxu0
      %2954 = vmatprep.subr.bf16.mxu0 0
      %2955 = vmatpush1.bf16.msra.mxu0 %v2295
      %2956 = vmatprep.subr.bf16.mxu0 0
      %2957 = vmatpush1.bf16.msra.mxu0 %v2296
      %2958 = vmatprep.subr.bf16.mxu0 0
      %2959 = vmatpush1.bf16.msra.mxu0 %v2297
      %2960 = vmatprep.subr.bf16.mxu0 0
      %2961 = vmatpush1.bf16.msra.mxu0 %v2298
      %2962 = vmatprep.subr.bf16.mxu0 0
      %2963 = vmatpush1.bf16.msra.mxu0 %v2299
      %2964 = vmatprep.subr.bf16.mxu0 0
      %2965 = vmatpush1.bf16.msra.mxu0 %v2300
      %2966 = vmatprep.subr.bf16.mxu0 0
      %2967 = vmatpush1.bf16.msra.mxu0 %v2301
      %2968 = vmatprep.subr.bf16.mxu0 0
      %2969 = vmatpush1.bf16.msra.mxu0 %v2302
      %2970 = vmatprep.subr.bf16.mxu0 0
      %2971 = vmatpush1.bf16.msra.mxu0 %v2303
      %2972 = vmatprep.subr.bf16.mxu0 0
      %2973 = vmatpush1.bf16.msra.mxu0 %v2304
      %2974 = vmatprep.subr.bf16.mxu0 0
      %2975 = vmatpush1.bf16.msra.mxu0 %v2305
      %2976 = vmatprep.subr.bf16.mxu0 0
      %2977 = vmatpush1.bf16.msra.mxu0 %v2306
      %2978 = vmatprep.subr.bf16.mxu0 0
      %2979 = vmatpush1.bf16.msra.mxu0 %v2307
      %2980 = vmatprep.subr.bf16.mxu0 0
      %2981 = vmatpush1.bf16.msra.mxu0 %v2308
      %2982 = vmatprep.subr.bf16.mxu0 0
      %2983 = vmatpush1.bf16.msra.mxu0 %v2309
      %2984 = vmatprep.subr.bf16.mxu0 0
      %2985 = vmatpush1.bf16.msra.mxu0 %v2310
      %2986 = vmatprep.mubr.bf16.mxu0 %v590
      %2987 = vmatmul.mubr.bf16.gmra.mrb[0].mxu0 %v589
      %v2988 = vpop.f32.mrb[0].mxu0
      %v2989 = vadd.f32 %v2924, %v2988
      %v2990 = vpop.f32.mrb[0].mxu0
      %v2991 = vpop.f32.mrb[0].mxu0
      %v2992 = vadd.f32 %v2927, %v2991
      %v2993 = vpop.f32.mrb[0].mxu0
      %2994 = vmatprep.mubr.bf16.mxu0 %v622
      %2995 = vmatmul.mubr.bf16.gmra.mrb[0].mxu0 %v621
      %v2996 = vpop.f32.mrb[0].mxu0
      %v2997 = vadd.f32 %v2932, %v2996
      %v2998 = vpop.f32.mrb[0].mxu0
      %v2999 = vpop.f32.mrb[0].mxu0
      %v3000 = vadd.f32 %v2935, %v2999
      %v3001 = vpop.f32.mrb[0].mxu0
      %3002 = vmatprep.mubr.bf16.mxu0 %v654
      %3003 = vmatmul.mubr.bf16.gmra.mrb[0].mxu0 %v653
      %v3004 = vpop.f32.mrb[0].mxu0
      %v3005 = vadd.f32 %v2940, %v3004
      %v3006 = vpop.f32.mrb[0].mxu0
      %v3007 = vpop.f32.mrb[0].mxu0
      %v3008 = vadd.f32 %v2943, %v3007
      %v3009 = vpop.f32.mrb[0].mxu0
      %3010 = vmatprep.mubr.bf16.mxu0 %v686
      %3011 = vmatmul.mubr.bf16.gmra.mrb[0].mxu0 %v685
      %v3012 = vpop.f32.mrb[0].mxu0
      %v3013 = vadd.f32 %v2948, %v3012
      %v3014 = vpop.f32.mrb[0].mxu0
      %v3015 = vpop.f32.mrb[0].mxu0
      %v3016 = vadd.f32 %v2951, %v3015
      %v3017 = vpop.f32.mrb[0].mxu0
      %3018 = vdwg.mxu0
      %3019 = vmatprep.subr.bf16.mxu0 0
      %3020 = vmatpush1.bf16.msra.mxu0 %v2311
      %3021 = vmatprep.subr.bf16.mxu0 0
      %3022 = vmatpush1.bf16.msra.mxu0 %v2312
      %3023 = vmatprep.subr.bf16.mxu0 0
      %3024 = vmatpush1.bf16.msra.mxu0 %v2313
      %3025 = vmatprep.subr.bf16.mxu0 0
      %3026 = vmatpush1.bf16.msra.mxu0 %v2314
      %3027 = vmatprep.subr.bf16.mxu0 0
      %3028 = vmatpush1.bf16.msra.mxu0 %v2315
      %3029 = vmatprep.subr.bf16.mxu0 0
      %3030 = vmatpush1.bf16.msra.mxu0 %v2316
      %3031 = vmatprep.subr.bf16.mxu0 0
      %3032 = vmatpush1.bf16.msra.mxu0 %v2317
      %3033 = vmatprep.subr.bf16.mxu0 0
      %3034 = vmatpush1.bf16.msra.mxu0 %v2318
      %3035 = vmatprep.subr.bf16.mxu0 0
      %3036 = vmatpush1.bf16.msra.mxu0 %v2319
      %3037 = vmatprep.subr.bf16.mxu0 0
      %3038 = vmatpush1.bf16.msra.mxu0 %v2320
      %3039 = vmatprep.subr.bf16.mxu0 0
      %3040 = vmatpush1.bf16.msra.mxu0 %v2321
      %3041 = vmatprep.subr.bf16.mxu0 0
      %3042 = vmatpush1.bf16.msra.mxu0 %v2322
      %3043 = vmatprep.subr.bf16.mxu0 0
      %3044 = vmatpush1.bf16.msra.mxu0 %v2323
      %3045 = vmatprep.subr.bf16.mxu0 0
      %3046 = vmatpush1.bf16.msra.mxu0 %v2324
      %3047 = vmatprep.subr.bf16.mxu0 0
      %3048 = vmatpush1.bf16.msra.mxu0 %v2325
      %3049 = vmatprep.subr.bf16.mxu0 0
      %3050 = vmatpush1.bf16.msra.mxu0 %v2326
      %3051 = vmatprep.mubr.bf16.mxu0 %v592
      %3052 = vmatmul.mubr.bf16.gmra.mrb[0].mxu0 %v591
      %v3053 = vpop.f32.mrb[0].mxu0
      %v3054 = vadd.f32 %v2989, %v3053
      %v3055 = vpop.f32.mrb[0].mxu0
      %v3056 = vpop.f32.mrb[0].mxu0
      %v3057 = vadd.f32 %v2992, %v3056
      %v3058 = vpop.f32.mrb[0].mxu0
      %3059 = vmatprep.mubr.bf16.mxu0 %v624
      %3060 = vmatmul.mubr.bf16.gmra.mrb[0].mxu0 %v623
      %v3061 = vpop.f32.mrb[0].mxu0
      %v3062 = vadd.f32 %v2997, %v3061
      %v3063 = vpop.f32.mrb[0].mxu0
      %v3064 = vpop.f32.mrb[0].mxu0
      %v3065 = vadd.f32 %v3000, %v3064
      %v3066 = vpop.f32.mrb[0].mxu0
      %3067 = vmatprep.mubr.bf16.mxu0 %v656
      %3068 = vmatmul.mubr.bf16.gmra.mrb[0].mxu0 %v655
      %v3069 = vpop.f32.mrb[0].mxu0
      %v3070 = vadd.f32 %v3005, %v3069
      %v3071 = vpop.f32.mrb[0].mxu0
      %v3072 = vpop.f32.mrb[0].mxu0
      %v3073 = vadd.f32 %v3008, %v3072
      %v3074 = vpop.f32.mrb[0].mxu0
      %3075 = vmatprep.mubr.bf16.mxu0 %v688
      %3076 = vmatmul.mubr.bf16.gmra.mrb[0].mxu0 %v687
      %v3077 = vpop.f32.mrb[0].mxu0
      %v3078 = vadd.f32 %v3013, %v3077
      %v3079 = vpop.f32.mrb[0].mxu0
      %v3080 = vpop.f32.mrb[0].mxu0
      %v3081 = vadd.f32 %v3016, %v3080
      %v3082 = vpop.f32.mrb[0].mxu0
      %3083 = vdwg.mxu0
      %3084 = vmatprep.subr.bf16.mxu0 0
      %3085 = vmatpush1.bf16.msra.mxu0 %v2327
      %3086 = vmatprep.subr.bf16.mxu0 0
      %3087 = vmatpush1.bf16.msra.mxu0 %v2328
      %3088 = vmatprep.subr.bf16.mxu0 0
      %3089 = vmatpush1.bf16.msra.mxu0 %v2329
      %3090 = vmatprep.subr.bf16.mxu0 0
      %3091 = vmatpush1.bf16.msra.mxu0 %v2330
      %3092 = vmatprep.subr.bf16.mxu0 0
      %3093 = vmatpush1.bf16.msra.mxu0 %v2331
      %3094 = vmatprep.subr.bf16.mxu0 0
      %3095 = vmatpush1.bf16.msra.mxu0 %v2332
      %3096 = vmatprep.subr.bf16.mxu0 0
      %3097 = vmatpush1.bf16.msra.mxu0 %v2333
      %3098 = vmatprep.subr.bf16.mxu0 0
      %3099 = vmatpush1.bf16.msra.mxu0 %v2334
      %3100 = vmatprep.subr.bf16.mxu0 0
      %3101 = vmatpush1.bf16.msra.mxu0 %v2335
      %3102 = vmatprep.subr.bf16.mxu0 0
      %3103 = vmatpush1.bf16.msra.mxu0 %v2336
      %3104 = vmatprep.subr.bf16.mxu0 0
      %3105 = vmatpush1.bf16.msra.mxu0 %v2337
      %3106 = vmatprep.subr.bf16.mxu0 0
      %3107 = vmatpush1.bf16.msra.mxu0 %v2338
      %3108 = vmatprep.subr.bf16.mxu0 0
      %3109 = vmatpush1.bf16.msra.mxu0 %v2339
      %3110 = vmatprep.subr.bf16.mxu0 0
      %3111 = vmatpush1.bf16.msra.mxu0 %v2340
      %3112 = vmatprep.subr.bf16.mxu0 0
      %3113 = vmatpush1.bf16.msra.mxu0 %v2341
      %3114 = vmatprep.subr.bf16.mxu0 0
      %3115 = vmatpush1.bf16.msra.mxu0 %v2342
      %3116 = vmatprep.mubr.bf16.mxu0 %v594
      %3117 = vmatmul.mubr.bf16.gmra.mrb[0].mxu0 %v593
      %v3118 = vpop.f32.mrb[0].mxu0
      %v3119 = vadd.f32 %v3054, %v3118
      %v3120 = vpop.f32.mrb[0].mxu0
      %v3121 = vpop.f32.mrb[0].mxu0
      %v3122 = vadd.f32 %v3057, %v3121
      %v3123 = vpop.f32.mrb[0].mxu0
      %3124 = vmatprep.mubr.bf16.mxu0 %v626
      %3125 = vmatmul.mubr.bf16.gmra.mrb[0].mxu0 %v625
      %v3126 = vpop.f32.mrb[0].mxu0
      %v3127 = vadd.f32 %v3062, %v3126
      %v3128 = vpop.f32.mrb[0].mxu0
      %v3129 = vpop.f32.mrb[0].mxu0
      %v3130 = vadd.f32 %v3065, %v3129
      %v3131 = vpop.f32.mrb[0].mxu0
      %3132 = vmatprep.mubr.bf16.mxu0 %v658
      %3133 = vmatmul.mubr.bf16.gmra.mrb[0].mxu0 %v657
      %v3134 = vpop.f32.mrb[0].mxu0
      %v3135 = vadd.f32 %v3070, %v3134
      %v3136 = vpop.f32.mrb[0].mxu0
      %v3137 = vpop.f32.mrb[0].mxu0
      %v3138 = vadd.f32 %v3073, %v3137
      %v3139 = vpop.f32.mrb[0].mxu0
      %3140 = vmatprep.mubr.bf16.mxu0 %v690
      %3141 = vmatmul.mubr.bf16.gmra.mrb[0].mxu0 %v689
      %v3142 = vpop.f32.mrb[0].mxu0
      %v3143 = vadd.f32 %v3078, %v3142
      %v3144 = vpop.f32.mrb[0].mxu0
      %v3145 = vpop.f32.mrb[0].mxu0
      %v3146 = vadd.f32 %v3081, %v3145
      %v3147 = vpop.f32.mrb[0].mxu0
      %3148 = vdwg.mxu0
      %3149 = vmatprep.subr.bf16.mxu0 0
      %3150 = vmatpush1.bf16.msra.mxu0 %v2343
      %3151 = vmatprep.subr.bf16.mxu0 0
      %3152 = vmatpush1.bf16.msra.mxu0 %v2344
      %3153 = vmatprep.subr.bf16.mxu0 0
      %3154 = vmatpush1.bf16.msra.mxu0 %v2345
      %3155 = vmatprep.subr.bf16.mxu0 0
      %3156 = vmatpush1.bf16.msra.mxu0 %v2346
      %3157 = vmatprep.subr.bf16.mxu0 0
      %3158 = vmatpush1.bf16.msra.mxu0 %v2347
      %3159 = vmatprep.subr.bf16.mxu0 0
      %3160 = vmatpush1.bf16.msra.mxu0 %v2348
      %3161 = vmatprep.subr.bf16.mxu0 0
      %3162 = vmatpush1.bf16.msra.mxu0 %v2349
      %3163 = vmatprep.subr.bf16.mxu0 0
      %3164 = vmatpush1.bf16.msra.mxu0 %v2350
      %3165 = vmatprep.subr.bf16.mxu0 0
      %3166 = vmatpush1.bf16.msra.mxu0 %v2351
      %3167 = vmatprep.subr.bf16.mxu0 0
      %3168 = vmatpush1.bf16.msra.mxu0 %v2352
      %3169 = vmatprep.subr.bf16.mxu0 0
      %3170 = vmatpush1.bf16.msra.mxu0 %v2353
      %3171 = vmatprep.subr.bf16.mxu0 0
      %3172 = vmatpush1.bf16.msra.mxu0 %v2354
      %3173 = vmatprep.subr.bf16.mxu0 0
      %3174 = vmatpush1.bf16.msra.mxu0 %v2355
      %3175 = vmatprep.subr.bf16.mxu0 0
      %3176 = vmatpush1.bf16.msra.mxu0 %v2356
      %3177 = vmatprep.subr.bf16.mxu0 0
      %3178 = vmatpush1.bf16.msra.mxu0 %v2357
      %3179 = vmatprep.subr.bf16.mxu0 0
      %3180 = vmatpush1.bf16.msra.mxu0 %v2358
      %3181 = vmatprep.mubr.bf16.mxu0 %v596
      %3182 = vmatmul.mubr.bf16.gmra.mrb[0].mxu0 %v595
      %v3183 = vpop.f32.mrb[0].mxu0
      %v3184 = vadd.f32 %v3119, %v3183
      %v3185 = vpop.f32.mrb[0].mxu0
      %v3186 = vpop.f32.mrb[0].mxu0
      %v3187 = vadd.f32 %v3122, %v3186
      %v3188 = vpop.f32.mrb[0].mxu0
      %3189 = vmatprep.mubr.bf16.mxu0 %v628
      %3190 = vmatmul.mubr.bf16.gmra.mrb[0].mxu0 %v627
      %v3191 = vpop.f32.mrb[0].mxu0
      %v3192 = vadd.f32 %v3127, %v3191
      %v3193 = vpop.f32.mrb[0].mxu0
      %v3194 = vpop.f32.mrb[0].mxu0
      %v3195 = vadd.f32 %v3130, %v3194
      %v3196 = vpop.f32.mrb[0].mxu0
      %3197 = vmatprep.mubr.bf16.mxu0 %v660
      %3198 = vmatmul.mubr.bf16.gmra.mrb[0].mxu0 %v659
      %v3199 = vpop.f32.mrb[0].mxu0
      %v3200 = vadd.f32 %v3135, %v3199
      %v3201 = vpop.f32.mrb[0].mxu0
      %v3202 = vpop.f32.mrb[0].mxu0
      %v3203 = vadd.f32 %v3138, %v3202
      %v3204 = vpop.f32.mrb[0].mxu0
      %3205 = vmatprep.mubr.bf16.mxu0 %v692
      %3206 = vmatmul.mubr.bf16.gmra.mrb[0].mxu0 %v691
      %v3207 = vpop.f32.mrb[0].mxu0
      %v3208 = vadd.f32 %v3143, %v3207
      %v3209 = vpop.f32.mrb[0].mxu0
      %v3210 = vpop.f32.mrb[0].mxu0
      %v3211 = vadd.f32 %v3146, %v3210
      %v3212 = vpop.f32.mrb[0].mxu0
      %3213 = vdwg.mxu0
      %3214 = vmatprep.subr.bf16.mxu0 0
      %3215 = vmatpush1.bf16.msra.mxu0 %v2359
      %3216 = vmatprep.subr.bf16.mxu0 0
      %3217 = vmatpush1.bf16.msra.mxu0 %v2360
      %3218 = vmatprep.subr.bf16.mxu0 0
      %3219 = vmatpush1.bf16.msra.mxu0 %v2361
      %3220 = vmatprep.subr.bf16.mxu0 0
      %3221 = vmatpush1.bf16.msra.mxu0 %v2362
      %3222 = vmatprep.subr.bf16.mxu0 0
      %3223 = vmatpush1.bf16.msra.mxu0 %v2363
      %3224 = vmatprep.subr.bf16.mxu0 0
      %3225 = vmatpush1.bf16.msra.mxu0 %v2364
      %3226 = vmatprep.subr.bf16.mxu0 0
      %3227 = vmatpush1.bf16.msra.mxu0 %v2365
      %3228 = vmatprep.subr.bf16.mxu0 0
      %3229 = vmatpush1.bf16.msra.mxu0 %v2366
      %3230 = vmatprep.subr.bf16.mxu0 0
      %3231 = vmatpush1.bf16.msra.mxu0 %v2367
      %3232 = vmatprep.subr.bf16.mxu0 0
      %3233 = vmatpush1.bf16.msra.mxu0 %v2368
      %3234 = vmatprep.subr.bf16.mxu0 0
      %3235 = vmatpush1.bf16.msra.mxu0 %v2369
      %3236 = vmatprep.subr.bf16.mxu0 0
      %3237 = vmatpush1.bf16.msra.mxu0 %v2370
      %3238 = vmatprep.subr.bf16.mxu0 0
      %3239 = vmatpush1.bf16.msra.mxu0 %v2371
      %3240 = vmatprep.subr.bf16.mxu0 0
      %3241 = vmatpush1.bf16.msra.mxu0 %v2372
      %3242 = vmatprep.subr.bf16.mxu0 0
      %3243 = vmatpush1.bf16.msra.mxu0 %v2373
      %3244 = vmatprep.subr.bf16.mxu0 0
      %3245 = vmatpush1.bf16.msra.mxu0 %v2374
      %3246 = vmatprep.mubr.bf16.mxu0 %v598
      %3247 = vmatmul.mubr.bf16.gmra.mrb[0].mxu0 %v597
      %v3248 = vpop.f32.mrb[0].mxu0
      %v3249 = vadd.f32 %v3184, %v3248
      %v3250 = vpop.f32.mrb[0].mxu0
      %v3251 = vpop.f32.mrb[0].mxu0
      %v3252 = vadd.f32 %v3187, %v3251
      %v3253 = vpop.f32.mrb[0].mxu0
      %3254 = vmatprep.mubr.bf16.mxu0 %v630
      %3255 = vmatmul.mubr.bf16.gmra.mrb[0].mxu0 %v629
      %v3256 = vpop.f32.mrb[0].mxu0
      %v3257 = vadd.f32 %v3192, %v3256
      %v3258 = vpop.f32.mrb[0].mxu0
      %v3259 = vpop.f32.mrb[0].mxu0
      %v3260 = vadd.f32 %v3195, %v3259
      %v3261 = vpop.f32.mrb[0].mxu0
      %3262 = vmatprep.mubr.bf16.mxu0 %v662
      %3263 = vmatmul.mubr.bf16.gmra.mrb[0].mxu0 %v661
      %v3264 = vpop.f32.mrb[0].mxu0
      %v3265 = vadd.f32 %v3200, %v3264
      %v3266 = vpop.f32.mrb[0].mxu0
      %v3267 = vpop.f32.mrb[0].mxu0
      %v3268 = vadd.f32 %v3203, %v3267
      %v3269 = vpop.f32.mrb[0].mxu0
      %3270 = vmatprep.mubr.bf16.mxu0 %v694
      %3271 = vmatmul.mubr.bf16.gmra.mrb[0].mxu0 %v693
      %v3272 = vpop.f32.mrb[0].mxu0
      %v3273 = vadd.f32 %v3208, %v3272
      %v3274 = vpop.f32.mrb[0].mxu0
      %v3275 = vpop.f32.mrb[0].mxu0
      %v3276 = vadd.f32 %v3211, %v3275
      %v3277 = vpop.f32.mrb[0].mxu0
      %3278 = vdwg.mxu0
      %3279 = vmatprep.subr.bf16.mxu0 0
      %3280 = vmatpush1.bf16.msra.mxu0 %v2375
      %3281 = vmatprep.subr.bf16.mxu0 0
      %3282 = vmatpush1.bf16.msra.mxu0 %v2376
      %3283 = vmatprep.subr.bf16.mxu0 0
      %3284 = vmatpush1.bf16.msra.mxu0 %v2377
      %3285 = vmatprep.subr.bf16.mxu0 0
      %3286 = vmatpush1.bf16.msra.mxu0 %v2378
      %3287 = vmatprep.subr.bf16.mxu0 0
      %3288 = vmatpush1.bf16.msra.mxu0 %v2379
      %3289 = vmatprep.subr.bf16.mxu0 0
      %3290 = vmatpush1.bf16.msra.mxu0 %v2380
      %3291 = vmatprep.subr.bf16.mxu0 0
      %3292 = vmatpush1.bf16.msra.mxu0 %v2381
      %3293 = vmatprep.subr.bf16.mxu0 0
      %3294 = vmatpush1.bf16.msra.mxu0 %v2382
      %3295 = vmatprep.subr.bf16.mxu0 0
      %3296 = vmatpush1.bf16.msra.mxu0 %v2383
      %3297 = vmatprep.subr.bf16.mxu0 0
      %3298 = vmatpush1.bf16.msra.mxu0 %v2384
      %3299 = vmatprep.subr.bf16.mxu0 0
      %3300 = vmatpush1.bf16.msra.mxu0 %v2385
      %3301 = vmatprep.subr.bf16.mxu0 0
      %3302 = vmatpush1.bf16.msra.mxu0 %v2386
      %3303 = vmatprep.subr.bf16.mxu0 0
      %3304 = vmatpush1.bf16.msra.mxu0 %v2387
      %3305 = vmatprep.subr.bf16.mxu0 0
      %3306 = vmatpush1.bf16.msra.mxu0 %v2388
      %3307 = vmatprep.subr.bf16.mxu0 0
      %3308 = vmatpush1.bf16.msra.mxu0 %v2389
      %3309 = vmatprep.subr.bf16.mxu0 0
      %3310 = vmatpush1.bf16.msra.mxu0 %v2390
      %3311 = vmatprep.mubr.bf16.mxu0 %v600
      %3312 = vmatmul.mubr.bf16.gmra.mrb[0].mxu0 %v599
      %v3313 = vpop.f32.mrb[0].mxu0
      %v3314 = vadd.f32 %v3249, %v3313
      %v3315 = vpop.f32.mrb[0].mxu0
      %v3316 = vpop.f32.mrb[0].mxu0
      %v3317 = vadd.f32 %v3252, %v3316
      %v3318 = vpop.f32.mrb[0].mxu0
      %3319 = vmatprep.mubr.bf16.mxu0 %v632
      %3320 = vmatmul.mubr.bf16.gmra.mrb[0].mxu0 %v631
      %v3321 = vpop.f32.mrb[0].mxu0
      %v3322 = vadd.f32 %v3257, %v3321
      %v3323 = vpop.f32.mrb[0].mxu0
      %v3324 = vpop.f32.mrb[0].mxu0
      %v3325 = vadd.f32 %v3260, %v3324
      %v3326 = vpop.f32.mrb[0].mxu0
      %3327 = vmatprep.mubr.bf16.mxu0 %v664
      %3328 = vmatmul.mubr.bf16.gmra.mrb[0].mxu0 %v663
      %v3329 = vpop.f32.mrb[0].mxu0
      %v3330 = vadd.f32 %v3265, %v3329
      %v3331 = vpop.f32.mrb[0].mxu0
      %v3332 = vpop.f32.mrb[0].mxu0
      %v3333 = vadd.f32 %v3268, %v3332
      %v3334 = vpop.f32.mrb[0].mxu0
      %3335 = vmatprep.mubr.bf16.mxu0 %v696
      %3336 = vmatmul.mubr.bf16.gmra.mrb[0].mxu0 %v695
      %v3337 = vpop.f32.mrb[0].mxu0
      %v3338 = vadd.f32 %v3273, %v3337
      %v3339 = vpop.f32.mrb[0].mxu0
      %v3340 = vpop.f32.mrb[0].mxu0
      %v3341 = vadd.f32 %v3276, %v3340
      %v3342 = vpop.f32.mrb[0].mxu0
      %3343 = vdwg.mxu0
      %3344 = vmatprep.subr.bf16.mxu0 0
      %3345 = vmatpush1.bf16.msra.mxu0 %v2391
      %3346 = vmatprep.subr.bf16.mxu0 0
      %3347 = vmatpush1.bf16.msra.mxu0 %v2392
      %3348 = vmatprep.subr.bf16.mxu0 0
      %3349 = vmatpush1.bf16.msra.mxu0 %v2393
      %3350 = vmatprep.subr.bf16.mxu0 0
      %3351 = vmatpush1.bf16.msra.mxu0 %v2394
      %3352 = vmatprep.subr.bf16.mxu0 0
      %3353 = vmatpush1.bf16.msra.mxu0 %v2395
      %3354 = vmatprep.subr.bf16.mxu0 0
      %3355 = vmatpush1.bf16.msra.mxu0 %v2396
      %3356 = vmatprep.subr.bf16.mxu0 0
      %3357 = vmatpush1.bf16.msra.mxu0 %v2397
      %3358 = vmatprep.subr.bf16.mxu0 0
      %3359 = vmatpush1.bf16.msra.mxu0 %v2398
      %3360 = vmatprep.subr.bf16.mxu0 0
      %3361 = vmatpush1.bf16.msra.mxu0 %v2399
      %3362 = vmatprep.subr.bf16.mxu0 0
      %3363 = vmatpush1.bf16.msra.mxu0 %v2400
      %3364 = vmatprep.subr.bf16.mxu0 0
      %3365 = vmatpush1.bf16.msra.mxu0 %v2401
      %3366 = vmatprep.subr.bf16.mxu0 0
      %3367 = vmatpush1.bf16.msra.mxu0 %v2402
      %3368 = vmatprep.subr.bf16.mxu0 0
      %3369 = vmatpush1.bf16.msra.mxu0 %v2403
      %3370 = vmatprep.subr.bf16.mxu0 0
      %3371 = vmatpush1.bf16.msra.mxu0 %v2404
      %3372 = vmatprep.subr.bf16.mxu0 0
      %3373 = vmatpush1.bf16.msra.mxu0 %v2405
      %3374 = vmatprep.subr.bf16.mxu0 0
      %3375 = vmatpush1.bf16.msra.mxu0 %v2406
      %3376 = vmatprep.mubr.bf16.mxu0 %v602
      %3377 = vmatmul.mubr.bf16.gmra.mrb[0].mxu0 %v601
      %v3378 = vpop.f32.mrb[0].mxu0
      %v3379 = vadd.f32 %v3314, %v3378
      %v3380 = vpop.f32.mrb[0].mxu0
      %v3381 = vpop.f32.mrb[0].mxu0
      %v3382 = vadd.f32 %v3317, %v3381
      %v3383 = vpop.f32.mrb[0].mxu0
      %3384 = vmatprep.mubr.bf16.mxu0 %v634
      %3385 = vmatmul.mubr.bf16.gmra.mrb[0].mxu0 %v633
      %v3386 = vpop.f32.mrb[0].mxu0
      %v3387 = vadd.f32 %v3322, %v3386
      %v3388 = vpop.f32.mrb[0].mxu0
      %v3389 = vpop.f32.mrb[0].mxu0
      %v3390 = vadd.f32 %v3325, %v3389
      %v3391 = vpop.f32.mrb[0].mxu0
      %3392 = vmatprep.mubr.bf16.mxu0 %v666
      %3393 = vmatmul.mubr.bf16.gmra.mrb[0].mxu0 %v665
      %v3394 = vpop.f32.mrb[0].mxu0
      %v3395 = vadd.f32 %v3330, %v3394
      %v3396 = vpop.f32.mrb[0].mxu0
      %v3397 = vpop.f32.mrb[0].mxu0
      %v3398 = vadd.f32 %v3333, %v3397
      %v3399 = vpop.f32.mrb[0].mxu0
      %3400 = vmatprep.mubr.bf16.mxu0 %v698
      %3401 = vmatmul.mubr.bf16.gmra.mrb[0].mxu0 %v697
      %v3402 = vpop.f32.mrb[0].mxu0
      %v3403 = vadd.f32 %v3338, %v3402
      %v3404 = vpop.f32.mrb[0].mxu0
      %v3405 = vpop.f32.mrb[0].mxu0
      %v3406 = vadd.f32 %v3341, %v3405
      %v3407 = vpop.f32.mrb[0].mxu0
      %3408 = vdwg.mxu0
      %3409 = vmatprep.subr.bf16.mxu0 0
      %3410 = vmatpush1.bf16.msra.mxu0 %v2407
      %3411 = vmatprep.subr.bf16.mxu0 0
      %3412 = vmatpush1.bf16.msra.mxu0 %v2408
      %3413 = vmatprep.subr.bf16.mxu0 0
      %3414 = vmatpush1.bf16.msra.mxu0 %v2409
      %3415 = vmatprep.subr.bf16.mxu0 0
      %3416 = vmatpush1.bf16.msra.mxu0 %v2410
      %3417 = vmatprep.subr.bf16.mxu0 0
      %3418 = vmatpush1.bf16.msra.mxu0 %v2411
      %3419 = vmatprep.subr.bf16.mxu0 0
      %3420 = vmatpush1.bf16.msra.mxu0 %v2412
      %3421 = vmatprep.subr.bf16.mxu0 0
      %3422 = vmatpush1.bf16.msra.mxu0 %v2413
      %3423 = vmatprep.subr.bf16.mxu0 0
      %3424 = vmatpush1.bf16.msra.mxu0 %v2414
      %3425 = vmatprep.subr.bf16.mxu0 0
      %3426 = vmatpush1.bf16.msra.mxu0 %v2415
      %3427 = vmatprep.subr.bf16.mxu0 0
      %3428 = vmatpush1.bf16.msra.mxu0 %v2416
      %3429 = vmatprep.subr.bf16.mxu0 0
      %3430 = vmatpush1.bf16.msra.mxu0 %v2417
      %3431 = vmatprep.subr.bf16.mxu0 0
      %3432 = vmatpush1.bf16.msra.mxu0 %v2418
      %3433 = vmatprep.subr.bf16.mxu0 0
      %3434 = vmatpush1.bf16.msra.mxu0 %v2419
      %3435 = vmatprep.subr.bf16.mxu0 0
      %3436 = vmatpush1.bf16.msra.mxu0 %v2420
      %3437 = vmatprep.subr.bf16.mxu0 0
      %3438 = vmatpush1.bf16.msra.mxu0 %v2421
      %3439 = vmatprep.subr.bf16.mxu0 0
      %3440 = vmatpush1.bf16.msra.mxu0 %v2422
      %3441 = vmatprep.mubr.bf16.mxu0 %v604
      %3442 = vmatmul.mubr.bf16.gmra.mrb[0].mxu0 %v603
      %v3443 = vpop.f32.mrb[0].mxu0
      %v3444 = vadd.f32 %v3379, %v3443
      %v3445 = vpop.f32.mrb[0].mxu0
      %v3446 = vpop.f32.mrb[0].mxu0
      %v3447 = vadd.f32 %v3382, %v3446
      %v3448 = vpop.f32.mrb[0].mxu0
      %3449 = vmatprep.mubr.bf16.mxu0 %v636
      %3450 = vmatmul.mubr.bf16.gmra.mrb[0].mxu0 %v635
      %v3451 = vpop.f32.mrb[0].mxu0
      %v3452 = vadd.f32 %v3387, %v3451
      %v3453 = vpop.f32.mrb[0].mxu0
      %v3454 = vpop.f32.mrb[0].mxu0
      %v3455 = vadd.f32 %v3390, %v3454
      %v3456 = vpop.f32.mrb[0].mxu0
      %3457 = vmatprep.mubr.bf16.mxu0 %v668
      %3458 = vmatmul.mubr.bf16.gmra.mrb[0].mxu0 %v667
      %v3459 = vpop.f32.mrb[0].mxu0
      %v3460 = vadd.f32 %v3395, %v3459
      %v3461 = vpop.f32.mrb[0].mxu0
      %v3462 = vpop.f32.mrb[0].mxu0
      %v3463 = vadd.f32 %v3398, %v3462
      %v3464 = vpop.f32.mrb[0].mxu0
      %3465 = vmatprep.mubr.bf16.mxu0 %v700
      %3466 = vmatmul.mubr.bf16.gmra.mrb[0].mxu0 %v699
      %v3467 = vpop.f32.mrb[0].mxu0
      %v3468 = vadd.f32 %v3403, %v3467
      %v3469 = vpop.f32.mrb[0].mxu0
      %v3470 = vpop.f32.mrb[0].mxu0
      %v3471 = vadd.f32 %v3406, %v3470
      %v3472 = vpop.f32.mrb[0].mxu0
      %3473 = vdwg.mxu0
      %3474 = vmatprep.subr.bf16.mxu0 0
      %3475 = vmatpush1.bf16.msra.mxu0 %v2423
      %3476 = vmatprep.subr.bf16.mxu0 0
      %3477 = vmatpush1.bf16.msra.mxu0 %v2424
      %3478 = vmatprep.subr.bf16.mxu0 0
      %3479 = vmatpush1.bf16.msra.mxu0 %v2425
      %3480 = vmatprep.subr.bf16.mxu0 0
      %3481 = vmatpush1.bf16.msra.mxu0 %v2426
      %3482 = vmatprep.subr.bf16.mxu0 0
      %3483 = vmatpush1.bf16.msra.mxu0 %v2427
      %3484 = vmatprep.subr.bf16.mxu0 0
      %3485 = vmatpush1.bf16.msra.mxu0 %v2428
      %3486 = vmatprep.subr.bf16.mxu0 0
      %3487 = vmatpush1.bf16.msra.mxu0 %v2429
      %3488 = vmatprep.subr.bf16.mxu0 0
      %3489 = vmatpush1.bf16.msra.mxu0 %v2430
      %3490 = vmatprep.subr.bf16.mxu0 0
      %3491 = vmatpush1.bf16.msra.mxu0 %v2431
      %3492 = vmatprep.subr.bf16.mxu0 0
      %3493 = vmatpush1.bf16.msra.mxu0 %v2432
      %3494 = vmatprep.subr.bf16.mxu0 0
      %3495 = vmatpush1.bf16.msra.mxu0 %v2433
      %3496 = vmatprep.subr.bf16.mxu0 0
      %3497 = vmatpush1.bf16.msra.mxu0 %v2434
      %3498 = vmatprep.subr.bf16.mxu0 0
      %3499 = vmatpush1.bf16.msra.mxu0 %v2435
      %3500 = vmatprep.subr.bf16.mxu0 0
      %3501 = vmatpush1.bf16.msra.mxu0 %v2436
      %3502 = vmatprep.subr.bf16.mxu0 0
      %3503 = vmatpush1.bf16.msra.mxu0 %v2437
      %3504 = vmatprep.subr.bf16.mxu0 0
      %3505 = vmatpush1.bf16.msra.mxu0 %v2438
      %3506 = vmatprep.mubr.bf16.mxu0 %v606
      %3507 = vmatmul.mubr.bf16.gmra.mrb[0].mxu0 %v605
      %v3508 = vpop.f32.mrb[0].mxu0
      %v3509 = vadd.f32 %v3444, %v3508
      %v3510 = vpop.f32.mrb[0].mxu0
      %v3511 = vpop.f32.mrb[0].mxu0
      %v3512 = vadd.f32 %v3447, %v3511
      %v3513 = vpop.f32.mrb[0].mxu0
      %3514 = vmatprep.mubr.bf16.mxu0 %v638
      %3515 = vmatmul.mubr.bf16.gmra.mrb[0].mxu0 %v637
      %v3516 = vpop.f32.mrb[0].mxu0
      %v3517 = vadd.f32 %v3452, %v3516
      %v3518 = vpop.f32.mrb[0].mxu0
      %v3519 = vpop.f32.mrb[0].mxu0
      %v3520 = vadd.f32 %v3455, %v3519
      %v3521 = vpop.f32.mrb[0].mxu0
      %3522 = vmatprep.mubr.bf16.mxu0 %v670
      %3523 = vmatmul.mubr.bf16.gmra.mrb[0].mxu0 %v669
      %v3524 = vpop.f32.mrb[0].mxu0
      %v3525 = vadd.f32 %v3460, %v3524
      %v3526 = vpop.f32.mrb[0].mxu0
      %v3527 = vpop.f32.mrb[0].mxu0
      %v3528 = vadd.f32 %v3463, %v3527
      %v3529 = vpop.f32.mrb[0].mxu0
      %3530 = vmatprep.mubr.bf16.mxu0 %v702
      %3531 = vmatmul.mubr.bf16.gmra.mrb[0].mxu0 %v701
      %v3532 = vpop.f32.mrb[0].mxu0
      %v3533 = vadd.f32 %v3468, %v3532
      %v3534 = vpop.f32.mrb[0].mxu0
      %v3535 = vpop.f32.mrb[0].mxu0
      %v3536 = vadd.f32 %v3471, %v3535
      %v3537 = vpop.f32.mrb[0].mxu0
      %3538 = vdwg.mxu0
      %3539 = vmatprep.subr.bf16.mxu0 0
      %3540 = vmatpush1.bf16.msra.mxu0 %v2439
      %3541 = vmatprep.subr.bf16.mxu0 0
      %3542 = vmatpush1.bf16.msra.mxu0 %v2440
      %3543 = vmatprep.subr.bf16.mxu0 0
      %3544 = vmatpush1.bf16.msra.mxu0 %v2441
      %3545 = vmatprep.subr.bf16.mxu0 0
      %3546 = vmatpush1.bf16.msra.mxu0 %v2442
      %3547 = vmatprep.subr.bf16.mxu0 0
      %3548 = vmatpush1.bf16.msra.mxu0 %v2443
      %3549 = vmatprep.subr.bf16.mxu0 0
      %3550 = vmatpush1.bf16.msra.mxu0 %v2444
      %3551 = vmatprep.subr.bf16.mxu0 0
      %3552 = vmatpush1.bf16.msra.mxu0 %v2445
      %3553 = vmatprep.subr.bf16.mxu0 0
      %3554 = vmatpush1.bf16.msra.mxu0 %v2446
      %3555 = vmatprep.subr.bf16.mxu0 0
      %3556 = vmatpush1.bf16.msra.mxu0 %v2447
      %3557 = vmatprep.subr.bf16.mxu0 0
      %3558 = vmatpush1.bf16.msra.mxu0 %v2448
      %3559 = vmatprep.subr.bf16.mxu0 0
      %3560 = vmatpush1.bf16.msra.mxu0 %v2449
      %3561 = vmatprep.subr.bf16.mxu0 0
      %3562 = vmatpush1.bf16.msra.mxu0 %v2450
      %3563 = vmatprep.subr.bf16.mxu0 0
      %3564 = vmatpush1.bf16.msra.mxu0 %v2451
      %3565 = vmatprep.subr.bf16.mxu0 0
      %3566 = vmatpush1.bf16.msra.mxu0 %v2452
      %3567 = vmatprep.subr.bf16.mxu0 0
      %3568 = vmatpush1.bf16.msra.mxu0 %v2453
      %3569 = vmatprep.subr.bf16.mxu0 0
      %3570 = vmatpush1.bf16.msra.mxu0 %v2454
      %3571 = vmatprep.mubr.bf16.mxu0 %v608
      %3572 = vmatmul.mubr.bf16.gmra.mrb[0].mxu0 %v607
      %v3573 = vpop.f32.mrb[0].mxu0
      %v3574 = vadd.f32 %v3509, %v3573
      %v3575 = vpop.f32.mrb[0].mxu0
      %v3576 = vpop.f32.mrb[0].mxu0
      %v3577 = vadd.f32 %v3512, %v3576
      %v3578 = vpop.f32.mrb[0].mxu0
      %3579 = vmatprep.mubr.bf16.mxu0 %v640
      %3580 = vmatmul.mubr.bf16.gmra.mrb[0].mxu0 %v639
      %v3581 = vpop.f32.mrb[0].mxu0
      %v3582 = vadd.f32 %v3517, %v3581
      %v3583 = vpop.f32.mrb[0].mxu0
      %v3584 = vpop.f32.mrb[0].mxu0
      %v3585 = vadd.f32 %v3520, %v3584
      %v3586 = vpop.f32.mrb[0].mxu0
      %3587 = vmatprep.mubr.bf16.mxu0 %v672
      %3588 = vmatmul.mubr.bf16.gmra.mrb[0].mxu0 %v671
      %v3589 = vpop.f32.mrb[0].mxu0
      %v3590 = vadd.f32 %v3525, %v3589
      %v3591 = vpop.f32.mrb[0].mxu0
      %v3592 = vpop.f32.mrb[0].mxu0
      %v3593 = vadd.f32 %v3528, %v3592
      %v3594 = vpop.f32.mrb[0].mxu0
      %3595 = vmatprep.mubr.bf16.mxu0 %v704
      %3596 = vmatmul.mubr.bf16.gmra.mrb[0].mxu0 %v703
      %v3597 = vpop.f32.mrb[0].mxu0
      %v3598 = vadd.f32 %v3533, %v3597
      %v3599 = vpop.f32.mrb[0].mxu0
      %v3600 = vpop.f32.mrb[0].mxu0
      %v3601 = vadd.f32 %v3536, %v3600
      %v3602 = vpop.f32.mrb[0].mxu0
      %3603 = vdwg.mxu0
      %3604 = vmatprep.subr.bf16.mxu0 0
      %3605 = vmatpush1.bf16.msra.mxu0 %v2455
      %3606 = vmatprep.subr.bf16.mxu0 0
      %3607 = vmatpush1.bf16.msra.mxu0 %v2456
      %3608 = vmatprep.subr.bf16.mxu0 0
      %3609 = vmatpush1.bf16.msra.mxu0 %v2457
      %3610 = vmatprep.subr.bf16.mxu0 0
      %3611 = vmatpush1.bf16.msra.mxu0 %v2458
      %3612 = vmatprep.subr.bf16.mxu0 0
      %3613 = vmatpush1.bf16.msra.mxu0 %v2459
      %3614 = vmatprep.subr.bf16.mxu0 0
      %3615 = vmatpush1.bf16.msra.mxu0 %v2460
      %3616 = vmatprep.subr.bf16.mxu0 0
      %3617 = vmatpush1.bf16.msra.mxu0 %v2461
      %3618 = vmatprep.subr.bf16.mxu0 0
      %3619 = vmatpush1.bf16.msra.mxu0 %v2462
      %3620 = vmatprep.subr.bf16.mxu0 0
      %3621 = vmatpush1.bf16.msra.mxu0 %v2463
      %3622 = vmatprep.subr.bf16.mxu0 0
      %3623 = vmatpush1.bf16.msra.mxu0 %v2464
      %3624 = vmatprep.subr.bf16.mxu0 0
      %3625 = vmatpush1.bf16.msra.mxu0 %v2465
      %3626 = vmatprep.subr.bf16.mxu0 0
      %3627 = vmatpush1.bf16.msra.mxu0 %v2466
      %3628 = vmatprep.subr.bf16.mxu0 0
      %3629 = vmatpush1.bf16.msra.mxu0 %v2467
      %3630 = vmatprep.subr.bf16.mxu0 0
      %3631 = vmatpush1.bf16.msra.mxu0 %v2468
      %3632 = vmatprep.subr.bf16.mxu0 0
      %3633 = vmatpush1.bf16.msra.mxu0 %v2469
      %3634 = vmatprep.subr.bf16.mxu0 0
      %3635 = vmatpush1.bf16.msra.mxu0 %v2470
      %3636 = vmatprep.mubr.bf16.mxu0 %v610
      %3637 = vmatmul.mubr.bf16.gmra.mrb[0].mxu0 %v609
      %v3638 = vpop.f32.mrb[0].mxu0
      %v3639 = vadd.f32 %v3574, %v3638
      %v3640 = vpop.f32.mrb[0].mxu0
      %v3641 = vpop.f32.mrb[0].mxu0
      %v3642 = vadd.f32 %v3577, %v3641
      %v3643 = vpop.f32.mrb[0].mxu0
      %3644 = vmatprep.mubr.bf16.mxu0 %v642
      %3645 = vmatmul.mubr.bf16.gmra.mrb[0].mxu0 %v641
      %v3646 = vpop.f32.mrb[0].mxu0
      %v3647 = vadd.f32 %v3582, %v3646
      %v3648 = vpop.f32.mrb[0].mxu0
      %v3649 = vpop.f32.mrb[0].mxu0
      %v3650 = vadd.f32 %v3585, %v3649
      %v3651 = vpop.f32.mrb[0].mxu0
      %3652 = vmatprep.mubr.bf16.mxu0 %v674
      %3653 = vmatmul.mubr.bf16.gmra.mrb[0].mxu0 %v673
      %v3654 = vpop.f32.mrb[0].mxu0
      %v3655 = vadd.f32 %v3590, %v3654
      %v3656 = vpop.f32.mrb[0].mxu0
      %v3657 = vpop.f32.mrb[0].mxu0
      %v3658 = vadd.f32 %v3593, %v3657
      %v3659 = vpop.f32.mrb[0].mxu0
      %3660 = vmatprep.mubr.bf16.mxu0 %v706
      %3661 = vmatmul.mubr.bf16.gmra.mrb[0].mxu0 %v705
      %v3662 = vpop.f32.mrb[0].mxu0
      %v3663 = vadd.f32 %v3598, %v3662
      %v3664 = vpop.f32.mrb[0].mxu0
      %v3665 = vpop.f32.mrb[0].mxu0
      %v3666 = vadd.f32 %v3601, %v3665
      %v3667 = vpop.f32.mrb[0].mxu0
      %3668 = vdwg.mxu0
      %3669 = vmatprep.subr.bf16.mxu0 0
      %3670 = vmatpush1.bf16.msra.mxu0 %v2471
      %3671 = vmatprep.subr.bf16.mxu0 0
      %3672 = vmatpush1.bf16.msra.mxu0 %v2472
      %3673 = vmatprep.subr.bf16.mxu0 0
      %3674 = vmatpush1.bf16.msra.mxu0 %v2473
      %3675 = vmatprep.subr.bf16.mxu0 0
      %3676 = vmatpush1.bf16.msra.mxu0 %v2474
      %3677 = vmatprep.subr.bf16.mxu0 0
      %3678 = vmatpush1.bf16.msra.mxu0 %v2475
      %3679 = vmatprep.subr.bf16.mxu0 0
      %3680 = vmatpush1.bf16.msra.mxu0 %v2476
      %3681 = vmatprep.subr.bf16.mxu0 0
      %3682 = vmatpush1.bf16.msra.mxu0 %v2477
      %3683 = vmatprep.subr.bf16.mxu0 0
      %3684 = vmatpush1.bf16.msra.mxu0 %v2478
      %3685 = vmatprep.subr.bf16.mxu0 0
      %3686 = vmatpush1.bf16.msra.mxu0 %v2479
      %3687 = vmatprep.subr.bf16.mxu0 0
      %3688 = vmatpush1.bf16.msra.mxu0 %v2480
      %3689 = vmatprep.subr.bf16.mxu0 0
      %3690 = vmatpush1.bf16.msra.mxu0 %v2481
      %3691 = vmatprep.subr.bf16.mxu0 0
      %3692 = vmatpush1.bf16.msra.mxu0 %v2482
      %3693 = vmatprep.subr.bf16.mxu0 0
      %3694 = vmatpush1.bf16.msra.mxu0 %v2483
      %3695 = vmatprep.subr.bf16.mxu0 0
      %3696 = vmatpush1.bf16.msra.mxu0 %v2484
      %3697 = vmatprep.subr.bf16.mxu0 0
      %3698 = vmatpush1.bf16.msra.mxu0 %v2485
      %3699 = vmatprep.subr.bf16.mxu0 0
      %3700 = vmatpush1.bf16.msra.mxu0 %v2486
      %3701 = vmatprep.mubr.bf16.mxu0 %v612
      %3702 = vmatmul.mubr.bf16.gmra.mrb[0].mxu0 %v611
      %v3703 = vpop.f32.mrb[0].mxu0
      %v3704 = vadd.f32 %v3639, %v3703
      %v3705 = vpop.f32.mrb[0].mxu0
      %v3706 = vpop.f32.mrb[0].mxu0
      %v3707 = vadd.f32 %v3642, %v3706
      %v3708 = vpop.f32.mrb[0].mxu0
      %3709 = vmatprep.mubr.bf16.mxu0 %v644
      %3710 = vmatmul.mubr.bf16.gmra.mrb[0].mxu0 %v643
      %v3711 = vpop.f32.mrb[0].mxu0
      %v3712 = vadd.f32 %v3647, %v3711
      %v3713 = vpop.f32.mrb[0].mxu0
      %v3714 = vpop.f32.mrb[0].mxu0
      %v3715 = vadd.f32 %v3650, %v3714
      %v3716 = vpop.f32.mrb[0].mxu0
      %3717 = vmatprep.mubr.bf16.mxu0 %v676
      %3718 = vmatmul.mubr.bf16.gmra.mrb[0].mxu0 %v675
      %v3719 = vpop.f32.mrb[0].mxu0
      %v3720 = vadd.f32 %v3655, %v3719
      %v3721 = vpop.f32.mrb[0].mxu0
      %v3722 = vpop.f32.mrb[0].mxu0
      %v3723 = vadd.f32 %v3658, %v3722
      %v3724 = vpop.f32.mrb[0].mxu0
      %3725 = vmatprep.mubr.bf16.mxu0 %v708
      %3726 = vmatmul.mubr.bf16.gmra.mrb[0].mxu0 %v707
      %v3727 = vpop.f32.mrb[0].mxu0
      %v3728 = vadd.f32 %v3663, %v3727
      %v3729 = vpop.f32.mrb[0].mxu0
      %v3730 = vpop.f32.mrb[0].mxu0
      %v3731 = vadd.f32 %v3666, %v3730
      %v3732 = vpop.f32.mrb[0].mxu0
      %3733 = vdwg.mxu0
      %3734 = vmatprep.subr.bf16.mxu0 0
      %3735 = vmatpush1.bf16.msra.mxu0 %v2487
      %3736 = vmatprep.subr.bf16.mxu0 0
      %3737 = vmatpush1.bf16.msra.mxu0 %v2488
      %3738 = vmatprep.subr.bf16.mxu0 0
      %3739 = vmatpush1.bf16.msra.mxu0 %v2489
      %3740 = vmatprep.subr.bf16.mxu0 0
      %3741 = vmatpush1.bf16.msra.mxu0 %v2490
      %3742 = vmatprep.subr.bf16.mxu0 0
      %3743 = vmatpush1.bf16.msra.mxu0 %v2491
      %3744 = vmatprep.subr.bf16.mxu0 0
      %3745 = vmatpush1.bf16.msra.mxu0 %v2492
      %3746 = vmatprep.subr.bf16.mxu0 0
      %3747 = vmatpush1.bf16.msra.mxu0 %v2493
      %3748 = vmatprep.subr.bf16.mxu0 0
      %3749 = vmatpush1.bf16.msra.mxu0 %v2494
      %3750 = vmatprep.subr.bf16.mxu0 0
      %3751 = vmatpush1.bf16.msra.mxu0 %v2495
      %3752 = vmatprep.subr.bf16.mxu0 0
      %3753 = vmatpush1.bf16.msra.mxu0 %v2496
      %3754 = vmatprep.subr.bf16.mxu0 0
      %3755 = vmatpush1.bf16.msra.mxu0 %v2497
      %3756 = vmatprep.subr.bf16.mxu0 0
      %3757 = vmatpush1.bf16.msra.mxu0 %v2498
      %3758 = vmatprep.subr.bf16.mxu0 0
      %3759 = vmatpush1.bf16.msra.mxu0 %v2499
      %3760 = vmatprep.subr.bf16.mxu0 0
      %3761 = vmatpush1.bf16.msra.mxu0 %v2500
      %3762 = vmatprep.subr.bf16.mxu0 0
      %3763 = vmatpush1.bf16.msra.mxu0 %v2501
      %3764 = vmatprep.subr.bf16.mxu0 0
      %3765 = vmatpush1.bf16.msra.mxu0 %v2502
      %3766 = vmatprep.mubr.bf16.mxu0 %v614
      %3767 = vmatmul.mubr.bf16.gmra.mrb[0].mxu0 %v613
      %v3768 = vpop.f32.mrb[0].mxu0
      %v3769 = vadd.f32 %v3704, %v3768
      %v3770 = vpop.f32.mrb[0].mxu0
      %v3771 = vpop.f32.mrb[0].mxu0
      %v3772 = vadd.f32 %v3707, %v3771
      %v3773 = vpop.f32.mrb[0].mxu0
      %3774 = vmatprep.mubr.bf16.mxu0 %v646
      %3775 = vmatmul.mubr.bf16.gmra.mrb[0].mxu0 %v645
      %v3776 = vpop.f32.mrb[0].mxu0
      %v3777 = vadd.f32 %v3712, %v3776
      %v3778 = vpop.f32.mrb[0].mxu0
      %v3779 = vpop.f32.mrb[0].mxu0
      %v3780 = vadd.f32 %v3715, %v3779
      %v3781 = vpop.f32.mrb[0].mxu0
      %3782 = vmatprep.mubr.bf16.mxu0 %v678
      %3783 = vmatmul.mubr.bf16.gmra.mrb[0].mxu0 %v677
      %v3784 = vpop.f32.mrb[0].mxu0
      %v3785 = vadd.f32 %v3720, %v3784
      %v3786 = vpop.f32.mrb[0].mxu0
      %v3787 = vpop.f32.mrb[0].mxu0
      %v3788 = vadd.f32 %v3723, %v3787
      %v3789 = vpop.f32.mrb[0].mxu0
      %3790 = vmatprep.mubr.bf16.mxu0 %v710
      %3791 = vmatmul.mubr.bf16.gmra.mrb[0].mxu0 %v709
      %v3792 = vpop.f32.mrb[0].mxu0
      %v3793 = vadd.f32 %v3728, %v3792
      %v3794 = vpop.f32.mrb[0].mxu0
      %v3795 = vpop.f32.mrb[0].mxu0
      %v3796 = vadd.f32 %v3731, %v3795
      %v3797 = vpop.f32.mrb[0].mxu0
      %3798 = vdwg.mxu0
      %v3799 = vpack.c.bf16 %v3772, %v3769
      %v3800 = vpack.c.bf16 %v3780, %v3777
      %v3801 = vpack.c.bf16 %v3788, %v3785
      %v3802 = vpack.c.bf16 %v3796, %v3793
      %v3803 = vld [vmem:[%s4] sm:$0xf]
      %v3804 = vld [vmem:[%s4 + $0x4] sm:$0xf]
      %v3805 = vld [vmem:[%s4 + $0x8] sm:$0xf]
      %v3806 = vld [vmem:[%s4 + $0xc] sm:$0xf]
      %v3807 = vld [vmem:[%s4 + $0x10] sm:$0xf]
      %v3808 = vld [vmem:[%s4 + $0x14] sm:$0xf]
      %v3809 = vld [vmem:[%s4 + $0x18] sm:$0xf]
      %v3810 = vld [vmem:[%s4 + $0x1c] sm:$0xf]
      %v3811 = vld [vmem:[%s5] sm:$0xff]
      %v3812 = vld [vmem:[%s5 + $0x8] sm:$0xff]
      %v3813 = vld [vmem:[%s5 + $0x10] sm:$0xff]
      %v3814 = vld [vmem:[%s5 + $0x18] sm:$0xff]
      %v3815 = vld [vmem:[%s5 + $0x20] sm:$0xff]
      %v3816 = vld [vmem:[%s5 + $0x28] sm:$0xff]
      %v3817 = vld [vmem:[%s5 + $0x30] sm:$0xff]
      %v3818 = vld [vmem:[%s5 + $0x38] sm:$0xff]
      %3820 = vset.pattern.permute.xlu0 0
      %3821 = vperm.xlu0 %3820, %v3811
      %v3822 = vpop.permute.xlu0 %3821
      %3825 = vset.pattern.permute.xlu0 0
      %3826 = vperm.xlu0 %3825, %v3812
      %v3827 = vpop.permute.xlu0 %3826
      %3830 = vset.pattern.permute.xlu0 0
      %3831 = vperm.xlu0 %3830, %v3813
      %v3832 = vpop.permute.xlu0 %3831
      %3835 = vset.pattern.permute.xlu0 0
      %3836 = vperm.xlu0 %3835, %v3814
      %v3837 = vpop.permute.xlu0 %3836
      %3840 = vset.pattern.permute.xlu0 0
      %3841 = vperm.xlu0 %3840, %v3815
      %v3842 = vpop.permute.xlu0 %3841
      %3845 = vset.pattern.permute.xlu0 0
      %3846 = vperm.xlu0 %3845, %v3816
      %v3847 = vpop.permute.xlu0 %3846
      %3850 = vset.pattern.permute.xlu0 0
      %3851 = vperm.xlu0 %3850, %v3817
      %v3852 = vpop.permute.xlu0 %3851
      %3855 = vset.pattern.permute.xlu0 0
      %3856 = vperm.xlu0 %3855, %v3818
      %v3857 = vpop.permute.xlu0 %3856
      %v3867 = vunpack.c.l.b16 %v3803
      %v3868 = vunpack.c.l.b16 %v3804
      %v3869 = vunpack.c.l.b16 %v3805
      %v3870 = vunpack.c.l.b16 %v3806
      %v3871 = vunpack.c.l.b16 %v3807
      %v3872 = vunpack.c.l.b16 %v3808
      %v3873 = vunpack.c.l.b16 %v3809
      %v3874 = vunpack.c.l.b16 %v3810
      %v3875 = vpack.c.b16 %v3868, %v3867
      %v3876 = vpack.c.b16 %v3870, %v3869
      %v3877 = vpack.c.b16 %v3872, %v3871
      %v3878 = vpack.c.b16 %v3874, %v3873
      %vm3879 = vcmask 261120
      %v3881 = vsel %vm3879, %v3875, 0
      %v3884 = vsel %vm3879, %v3876, 0
      %v3887 = vsel %vm3879, %v3877, 0
      %v3890 = vsel %vm3879, %v3878, 0
      %3892 = vmatprep.subr.bf16.mxu0 0
      %3893 = vmatpush1.bf16.msra.mxu0 %v3799
      %3894 = vmatprep.subr.bf16.mxu0 0
      %3895 = vmatpush1.bf16.msra.mxu0 %v3800
      %3896 = vmatprep.subr.bf16.mxu0 0
      %3897 = vmatpush1.bf16.msra.mxu0 0
      %3898 = vmatprep.subr.bf16.mxu0 0
      %3899 = vmatpush1.bf16.msra.mxu0 0
      %3900 = vmatprep.subr.bf16.mxu0 0
      %3901 = vmatpush1.bf16.msra.mxu0 0
      %3902 = vmatprep.subr.bf16.mxu0 0
      %3903 = vmatpush1.bf16.msra.mxu0 0
      %3904 = vmatprep.subr.bf16.mxu0 0
      %3905 = vmatpush1.bf16.msra.mxu0 0
      %3906 = vmatprep.subr.bf16.mxu0 0
      %3907 = vmatpush1.bf16.msra.mxu0 0
      %3908 = vmatprep.subr.bf16.mxu0 0
      %3909 = vmatpush1.bf16.msra.mxu0 0
      %3910 = vmatprep.subr.bf16.mxu0 0
      %3911 = vmatpush1.bf16.msra.mxu0 0
      %3912 = vmatprep.subr.bf16.mxu0 0
      %3913 = vmatpush1.bf16.msra.mxu0 0
      %3914 = vmatprep.subr.bf16.mxu0 0
      %3915 = vmatpush1.bf16.msra.mxu0 0
      %3916 = vmatprep.subr.bf16.mxu0 0
      %3917 = vmatpush1.bf16.msra.mxu0 0
      %3918 = vmatprep.subr.bf16.mxu0 0
      %3919 = vmatpush1.bf16.msra.mxu0 0
      %3920 = vmatprep.subr.bf16.mxu0 0
      %3921 = vmatpush1.bf16.msra.mxu0 0
      %3922 = vmatprep.subr.bf16.mxu0 0
      %3923 = vmatpush1.bf16.msra.mxu0 0
      %3924 = vmatprep.mubr.bf16.mxu0 0
      %3925 = vmatmul.mubr.bf16.gmra.mrb[0].mxu0 %v3881
      %v3926 = vpop.f32.mrb[0].mxu0
      %v3927 = vadd.f32 %v3822, %v3926
      %v3928 = vpop.f32.mrb[0].mxu0
      %v3929 = vpop.f32.mrb[0].mxu0
      %v3930 = vadd.f32 %v3827, %v3929
      %v3931 = vpop.f32.mrb[0].mxu0
      %3932 = vmatprep.mubr.bf16.mxu0 0
      %3933 = vmatmul.mubr.bf16.gmra.mrb[0].mxu0 %v3884
      %v3934 = vpop.f32.mrb[0].mxu0
      %v3935 = vadd.f32 %v3832, %v3934
      %v3936 = vpop.f32.mrb[0].mxu0
      %v3937 = vpop.f32.mrb[0].mxu0
      %v3938 = vadd.f32 %v3837, %v3937
      %v3939 = vpop.f32.mrb[0].mxu0
      %3940 = vmatprep.mubr.bf16.mxu0 0
      %3941 = vmatmul.mubr.bf16.gmra.mrb[0].mxu0 %v3887
      %v3942 = vpop.f32.mrb[0].mxu0
      %v3943 = vadd.f32 %v3842, %v3942
      %v3944 = vpop.f32.mrb[0].mxu0
      %v3945 = vpop.f32.mrb[0].mxu0
      %v3946 = vadd.f32 %v3847, %v3945
      %v3947 = vpop.f32.mrb[0].mxu0
      %3948 = vmatprep.mubr.bf16.mxu0 0
      %3949 = vmatmul.mubr.bf16.gmra.mrb[0].mxu0 %v3890
      %v3950 = vpop.f32.mrb[0].mxu0
      %v3951 = vadd.f32 %v3852, %v3950
      %v3952 = vpop.f32.mrb[0].mxu0
      %v3953 = vpop.f32.mrb[0].mxu0
      %v3954 = vadd.f32 %v3857, %v3953
      %v3955 = vpop.f32.mrb[0].mxu0
      %3956 = vdwg.mxu0
      %v3957 = vpack.c.bf16 %v3930, %v3927
      %v3958 = vpack.c.bf16 %v3938, %v3935
      %v3959 = vpack.c.bf16 %v3946, %v3943
      %v3960 = vpack.c.bf16 %v3954, %v3951
      %v3961 = vld [vmem:[%s6] sm:$0xf]
      %v3962 = vld [vmem:[%s6 + $0x4] sm:$0xf]
      %v3963 = vld [vmem:[%s6 + $0x8] sm:$0xf]
      %v3964 = vld [vmem:[%s6 + $0xc] sm:$0xf]
      %v3965 = vld [vmem:[%s7] sm:$0xff]
      %v3966 = vld [vmem:[%s7 + $0x8] sm:$0xff]
      %v3967 = vld [vmem:[%s7 + $0x10] sm:$0xff]
      %v3968 = vld [vmem:[%s7 + $0x18] sm:$0xff]
      %3970 = vset.pattern.permute.xlu0 0
      %3971 = vperm.xlu0 %3970, %v3965
      %v3972 = vpop.permute.xlu0 %3971
      %3975 = vset.pattern.permute.xlu0 0
      %3976 = vperm.xlu0 %3975, %v3966
      %v3977 = vpop.permute.xlu0 %3976
      %3980 = vset.pattern.permute.xlu0 0
      %3981 = vperm.xlu0 %3980, %v3967
      %v3982 = vpop.permute.xlu0 %3981
      %3985 = vset.pattern.permute.xlu0 0
      %3986 = vperm.xlu0 %3985, %v3968
      %v3987 = vpop.permute.xlu0 %3986
      %v3993 = vunpack.c.l.b16 %v3961
      %v3994 = vunpack.c.l.b16 %v3962
      %v3995 = vunpack.c.l.b16 %v3963
      %v3996 = vunpack.c.l.b16 %v3964
      %v3997 = vpack.c.b16 %v3994, %v3993
      %v3998 = vpack.c.b16 %v3996, %v3995
      %v4000 = vsel %vm3879, %v3997, 0
      %v4003 = vsel %vm3879, %v3998, 0
      %4005 = vmatprep.subr.bf16.mxu0 0
      %4006 = vmatpush1.bf16.msra.mxu0 %v3801
      %4007 = vmatprep.subr.bf16.mxu0 0
      %4008 = vmatpush1.bf16.msra.mxu0 %v3802
      %4009 = vmatprep.subr.bf16.mxu0 0
      %4010 = vmatpush1.bf16.msra.mxu0 0
      %4011 = vmatprep.subr.bf16.mxu0 0
      %4012 = vmatpush1.bf16.msra.mxu0 0
      %4013 = vmatprep.subr.bf16.mxu0 0
      %4014 = vmatpush1.bf16.msra.mxu0 0
      %4015 = vmatprep.subr.bf16.mxu0 0
      %4016 = vmatpush1.bf16.msra.mxu0 0
      %4017 = vmatprep.subr.bf16.mxu0 0
      %4018 = vmatpush1.bf16.msra.mxu0 0
      %4019 = vmatprep.subr.bf16.mxu0 0
      %4020 = vmatpush1.bf16.msra.mxu0 0
      %4021 = vmatprep.subr.bf16.mxu0 0
      %4022 = vmatpush1.bf16.msra.mxu0 0
      %4023 = vmatprep.subr.bf16.mxu0 0
      %4024 = vmatpush1.bf16.msra.mxu0 0
      %4025 = vmatprep.subr.bf16.mxu0 0
      %4026 = vmatpush1.bf16.msra.mxu0 0
      %4027 = vmatprep.subr.bf16.mxu0 0
      %4028 = vmatpush1.bf16.msra.mxu0 0
      %4029 = vmatprep.subr.bf16.mxu0 0
      %4030 = vmatpush1.bf16.msra.mxu0 0
      %4031 = vmatprep.subr.bf16.mxu0 0
      %4032 = vmatpush1.bf16.msra.mxu0 0
      %4033 = vmatprep.subr.bf16.mxu0 0
      %4034 = vmatpush1.bf16.msra.mxu0 0
      %4035 = vmatprep.subr.bf16.mxu0 0
      %4036 = vmatpush1.bf16.msra.mxu0 0
      %4037 = vmatprep.mubr.bf16.mxu0 0
      %4038 = vmatmul.mubr.bf16.gmra.mrb[0].mxu0 %v4000
      %v4039 = vpop.f32.mrb[0].mxu0
      %v4040 = vadd.f32 %v3972, %v4039
      %v4041 = vpop.f32.mrb[0].mxu0
      %v4042 = vpop.f32.mrb[0].mxu0
      %v4043 = vadd.f32 %v3977, %v4042
      %v4044 = vpop.f32.mrb[0].mxu0
      %4045 = vmatprep.mubr.bf16.mxu0 0
      %4046 = vmatmul.mubr.bf16.gmra.mrb[0].mxu0 %v4003
      %v4047 = vpop.f32.mrb[0].mxu0
      %v4048 = vadd.f32 %v3982, %v4047
      %v4049 = vpop.f32.mrb[0].mxu0
      %v4050 = vpop.f32.mrb[0].mxu0
      %v4051 = vadd.f32 %v3987, %v4050
      %v4052 = vpop.f32.mrb[0].mxu0
      %4053 = vdwg.mxu0
      %4054 = vxpose.xlu0.c.b16.start [1/8] %v3957, 128
      %4055 = vxpose.xlu0.c.b16.cont [2/8] %v3958, 128
      %4056 = vxpose.xlu0.c.b16.cont [3/8] 0, 128
      %4057 = vxpose.xlu0.c.b16.cont [4/8] 0, 128
      %4058 = vxpose.xlu0.c.b16.cont [5/8] 0, 128
      %4059 = vxpose.xlu0.c.b16.cont [6/8] 0, 128
      %4060 = vxpose.xlu0.c.b16.cont [7/8] 0, 128
      %4061 = vxpose.xlu0.c.b16.end [8/8] 0, 128
      %v4062 = vpop.trf.xlu0
      %v4063 = vpop.trf.xlu0
      %v4064 = vpop.trf.xlu0
      %v4065 = vpop.trf.xlu0
      %v4066 = vpop.trf.xlu0
      %v4067 = vpop.trf.xlu0
      %v4068 = vpop.trf.xlu0
      %v4069 = vpop.trf.xlu0
      %v4071 = vsel %vm3879, %v4062, 0
      %v4074 = vsel %vm3879, %v4063, 0
      %v4077 = vsel %vm3879, %v4064, 0
      %v4080 = vsel %vm3879, %v4065, 0
      %4082 = vmatprep.subr.bf16.mxu0 0
      %4083 = vmatpush1.bf16.msra.mxu0 %v3959
      %4084 = vmatprep.subr.bf16.mxu0 0
      %4085 = vmatpush1.bf16.msra.mxu0 %v3960
      %4086 = vmatprep.subr.bf16.mxu0 0
      %4087 = vmatpush1.bf16.msra.mxu0 0
      %4088 = vmatprep.subr.bf16.mxu0 0
      %4089 = vmatpush1.bf16.msra.mxu0 0
      %4090 = vmatprep.subr.bf16.mxu0 0
      %4091 = vmatpush1.bf16.msra.mxu0 0
      %4092 = vmatprep.subr.bf16.mxu0 0
      %4093 = vmatpush1.bf16.msra.mxu0 0
      %4094 = vmatprep.subr.bf16.mxu0 0
      %4095 = vmatpush1.bf16.msra.mxu0 0
      %4096 = vmatprep.subr.bf16.mxu0 0
      %4097 = vmatpush1.bf16.msra.mxu0 0
      %4098 = vmatprep.subr.bf16.mxu0 0
      %4099 = vmatpush1.bf16.msra.mxu0 0
      %4100 = vmatprep.subr.bf16.mxu0 0
      %4101 = vmatpush1.bf16.msra.mxu0 0
      %4102 = vmatprep.subr.bf16.mxu0 0
      %4103 = vmatpush1.bf16.msra.mxu0 0
      %4104 = vmatprep.subr.bf16.mxu0 0
      %4105 = vmatpush1.bf16.msra.mxu0 0
      %4106 = vmatprep.subr.bf16.mxu0 0
      %4107 = vmatpush1.bf16.msra.mxu0 0
      %4108 = vmatprep.subr.bf16.mxu0 0
      %4109 = vmatpush1.bf16.msra.mxu0 0
      %4110 = vmatprep.subr.bf16.mxu0 0
      %4111 = vmatpush1.bf16.msra.mxu0 0
      %4112 = vmatprep.subr.bf16.mxu0 0
      %4113 = vmatpush1.bf16.msra.mxu0 0
      %4114 = vmatprep.mubr.bf16.mxu0 0
      %4115 = vmatmul.mubr.bf16.gmra.mrb[0].mxu0 %v4071
      %v4116 = vpop.f32.mrb[0].mxu0
      %v4117 = vadd.f32 0.0, %v4116
      %v4118 = vpop.f32.mrb[0].mxu0
      %v4119 = vpop.f32.mrb[0].mxu0
      %v4120 = vadd.f32 0.0, %v4119
      %v4121 = vpop.f32.mrb[0].mxu0
      %4122 = vmatprep.mubr.bf16.mxu0 0
      %4123 = vmatmul.mubr.bf16.gmra.mrb[0].mxu0 %v4074
      %v4124 = vpop.f32.mrb[0].mxu0
      %v4125 = vadd.f32 0.0, %v4124
      %v4126 = vpop.f32.mrb[0].mxu0
      %v4127 = vpop.f32.mrb[0].mxu0
      %v4128 = vadd.f32 0.0, %v4127
      %v4129 = vpop.f32.mrb[0].mxu0
      %4130 = vmatprep.mubr.bf16.mxu0 0
      %4131 = vmatmul.mubr.bf16.gmra.mrb[0].mxu0 %v4077
      %v4132 = vpop.f32.mrb[0].mxu0
      %v4133 = vadd.f32 0.0, %v4132
      %v4134 = vpop.f32.mrb[0].mxu0
      %v4135 = vpop.f32.mrb[0].mxu0
      %v4136 = vadd.f32 0.0, %v4135
      %v4137 = vpop.f32.mrb[0].mxu0
      %4138 = vmatprep.mubr.bf16.mxu0 0
      %4139 = vmatmul.mubr.bf16.gmra.mrb[0].mxu0 %v4080
      %v4140 = vpop.f32.mrb[0].mxu0
      %v4141 = vadd.f32 0.0, %v4140
      %v4142 = vpop.f32.mrb[0].mxu0
      %v4143 = vpop.f32.mrb[0].mxu0
      %v4144 = vadd.f32 0.0, %v4143
      %v4145 = vpop.f32.mrb[0].mxu0
      %4146 = vdwg.mxu0
      %vm4147 = vcmask 523264
      %v4148 = vsel %vm4147, %v4117, -inf
      %4149 = vmax.xlane.f32.xlu0 %v4148
      %v4150 = vpop.xlane.xlu0 %4149
      %v4151 = vsel %vm4147, %v4120, -inf
      %4152 = vmax.xlane.f32.xlu0 %v4151
      %v4153 = vpop.xlane.xlu0 %4152
      %v4154 = vsel %vm4147, %v4125, -inf
      %4155 = vmax.xlane.f32.xlu0 %v4154
      %v4156 = vpop.xlane.xlu0 %4155
      %v4157 = vsel %vm4147, %v4128, -inf
      %4158 = vmax.xlane.f32.xlu0 %v4157
      %v4159 = vpop.xlane.xlu0 %4158
      %v4160 = vsel %vm4147, %v4133, -inf
      %4161 = vmax.xlane.f32.xlu0 %v4160
      %v4162 = vpop.xlane.xlu0 %4161
      %v4163 = vsel %vm4147, %v4136, -inf
      %4164 = vmax.xlane.f32.xlu0 %v4163
      %v4165 = vpop.xlane.xlu0 %4164
      %v4166 = vsel %vm4147, %v4141, -inf
      %4167 = vmax.xlane.f32.xlu0 %v4166
      %v4168 = vpop.xlane.xlu0 %4167
      %v4169 = vsel %vm4147, %v4144, -inf
      %4170 = vmax.xlane.f32.xlu0 %v4169
      %v4171 = vpop.xlane.xlu0 %4170
      %v4172 = vsub.f32 %v4117, %v4150
      %v4173 = vsub.f32 %v4120, %v4153
      %v4174 = vsub.f32 %v4125, %v4156
      %v4175 = vsub.f32 %v4128, %v4159
      %v4176 = vsub.f32 %v4133, %v4162
      %v4177 = vsub.f32 %v4136, %v4165
      %v4178 = vsub.f32 %v4141, %v4168
      %v4179 = vsub.f32 %v4144, %v4171
      %v4180 = vmul.f32 %v4172, 1.442695
      %v4181 = vpow.pop %v4180
      %v4182 = vmul.f32 %v4173, 1.442695
      %v4183 = vpow.pop %v4182
      %v4184 = vmul.f32 %v4174, 1.442695
      %v4185 = vpow.pop %v4184
      %v4186 = vmul.f32 %v4175, 1.442695
      %v4187 = vpow.pop %v4186
      %v4188 = vmul.f32 %v4176, 1.442695
      %v4189 = vpow.pop %v4188
      %v4190 = vmul.f32 %v4177, 1.442695
      %v4191 = vpow.pop %v4190
      %v4192 = vmul.f32 %v4178, 1.442695
      %v4193 = vpow.pop %v4192
      %v4194 = vmul.f32 %v4179, 1.442695
      %v4195 = vpow.pop %v4194
      %v4196 = vsel %vm4147, %v4181, 0.0
      %4197 = vadd.xlane.f32.xlu0 %v4196
      %v4198 = vpop.xlane.xlu0 %4197
      %v4199 = vsel %vm4147, %v4183, 0.0
      %4200 = vadd.xlane.f32.xlu0 %v4199
      %v4201 = vpop.xlane.xlu0 %4200
      %v4202 = vsel %vm4147, %v4185, 0.0
      %4203 = vadd.xlane.f32.xlu0 %v4202
      %v4204 = vpop.xlane.xlu0 %4203
      %v4205 = vsel %vm4147, %v4187, 0.0
      %4206 = vadd.xlane.f32.xlu0 %v4205
      %v4207 = vpop.xlane.xlu0 %4206
      %v4208 = vsel %vm4147, %v4189, 0.0
      %4209 = vadd.xlane.f32.xlu0 %v4208
      %v4210 = vpop.xlane.xlu0 %4209
      %v4211 = vsel %vm4147, %v4191, 0.0
      %4212 = vadd.xlane.f32.xlu0 %v4211
      %v4213 = vpop.xlane.xlu0 %4212
      %v4214 = vsel %vm4147, %v4193, 0.0
      %4215 = vadd.xlane.f32.xlu0 %v4214
      %v4216 = vpop.xlane.xlu0 %4215
      %v4217 = vsel %vm4147, %v4195, 0.0
      %4218 = vadd.xlane.f32.xlu0 %v4217
      %v4219 = vpop.xlane.xlu0 %4218
      %v4220 = vrcp.pop %v4198
      %v4221 = vrcp.pop %v4201
      %v4222 = vrcp.pop %v4204
      %v4223 = vrcp.pop %v4207
      %v4224 = vrcp.pop %v4210
      %v4225 = vrcp.pop %v4213
      %v4226 = vrcp.pop %v4216
      %v4227 = vrcp.pop %v4219
      %v4228 = vmul.f32 %v4181, %v4220
      %v4229 = vmul.f32 %v4183, %v4221
      %v4230 = vmul.f32 %v4185, %v4222
      %v4231 = vmul.f32 %v4187, %v4223
      %v4232 = vmul.f32 %v4189, %v4224
      %v4233 = vmul.f32 %v4191, %v4225
      %v4234 = vmul.f32 %v4193, %v4226
      %v4235 = vmul.f32 %v4195, %v4227
      %v4236 = vpack.c.bf16 %v4043, %v4040
      %v4237 = vpack.c.bf16 %v4051, %v4048
      %v4238 = vpack.c.bf16 %v4229, %v4228
      %v4239 = vpack.c.bf16 %v4231, %v4230
      %v4240 = vpack.c.bf16 %v4233, %v4232
      %v4241 = vpack.c.bf16 %v4235, %v4234
      %v4243 = vsel %vm4147, %v4236, 0
      %v4246 = vsel %vm4147, %v4237, 0
      %v4249 = vsel %vm4147, %v4238, 0
      %v4252 = vsel %vm4147, %v4239, 0
      %v4255 = vsel %vm4147, %v4240, 0
      %v4258 = vsel %vm4147, %v4241, 0
      %4260 = vmatprep.subr.bf16.mxu0 0
      %4261 = vmatpush1.bf16.xpose.msra.mxu0 %v4249
      %4262 = vmatprep.subr.bf16.mxu0 0
      %4263 = vmatpush1.bf16.xpose.msra.mxu0 %v4252
      %4264 = vmatprep.subr.bf16.mxu0 0
      %4265 = vmatpush1.bf16.xpose.msra.mxu0 %v4255
      %4266 = vmatprep.subr.bf16.mxu0 0
      %4267 = vmatpush1.bf16.xpose.msra.mxu0 %v4258
      %4268 = vmatprep.subr.bf16.mxu0 0
      %4269 = vmatpush1.bf16.xpose.msra.mxu0 0
      %4270 = vmatprep.subr.bf16.mxu0 0
      %4271 = vmatpush1.bf16.xpose.msra.mxu0 0
      %4272 = vmatprep.subr.bf16.mxu0 0
      %4273 = vmatpush1.bf16.xpose.msra.mxu0 0
      %4274 = vmatprep.subr.bf16.mxu0 0
      %4275 = vmatpush1.bf16.xpose.msra.mxu0 0
      %4276 = vmatprep.subr.bf16.mxu0 0
      %4277 = vmatpush1.bf16.xpose.msra.mxu0 0
      %4278 = vmatprep.subr.bf16.mxu0 0
      %4279 = vmatpush1.bf16.xpose.msra.mxu0 0
      %4280 = vmatprep.subr.bf16.mxu0 0
      %4281 = vmatpush1.bf16.xpose.msra.mxu0 0
      %4282 = vmatprep.subr.bf16.mxu0 0
      %4283 = vmatpush1.bf16.xpose.msra.mxu0 0
      %4284 = vmatprep.subr.bf16.mxu0 0
      %4285 = vmatpush1.bf16.xpose.msra.mxu0 0
      %4286 = vmatprep.subr.bf16.mxu0 0
      %4287 = vmatpush1.bf16.xpose.msra.mxu0 0
      %4288 = vmatprep.subr.bf16.mxu0 0
      %4289 = vmatpush1.bf16.xpose.msra.mxu0 0
      %4290 = vmatprep.subr.bf16.mxu0 0
      %4291 = vmatpush1.bf16.xpose.msra.mxu0 0
      %4292 = vmatprep.mubr.bf16.mxu0 0
      %4293 = vmatmul.mubr.bf16.gmra.mrb[0].mxu0 %v4243
      %v4294 = vpop.f32.mrb[0].mxu0
      %v4295 = vadd.f32 0.0, %v4294
      %v4296 = vpop.f32.mrb[0].mxu0
      %v4297 = vpop.f32.mrb[0].mxu0
      %v4298 = vadd.f32 0.0, %v4297
      %v4299 = vpop.f32.mrb[0].mxu0
      %4300 = vmatprep.mubr.bf16.mxu0 0
      %4301 = vmatmul.mubr.bf16.gmra.mrb[0].mxu0 %v4246
      %v4302 = vpop.f32.mrb[0].mxu0
      %v4303 = vadd.f32 0.0, %v4302
      %v4304 = vpop.f32.mrb[0].mxu0
      %v4305 = vpop.f32.mrb[0].mxu0
      %v4306 = vadd.f32 0.0, %v4305
      %v4307 = vpop.f32.mrb[0].mxu0
      %4308 = vdwg.mxu0
      %v4309 = vpack.c.bf16 %v4298, %v4295
      %v4310 = vpack.c.bf16 %v4306, %v4303
      %v4311 = vld [vmem:[%s3] sm:$0xff]
      %v4312 = vld [vmem:[%s3 + $0x8] sm:$0xff]
      %v4313 = vld [vmem:[%s3 + $0x10] sm:$0xff]
      %v4314 = vld [vmem:[%s3 + $0x18] sm:$0xff]
      %v4315 = vld [vmem:[%s3 + $0x20] sm:$0xff]
      %v4316 = vld [vmem:[%s3 + $0x28] sm:$0xff]
      %v4317 = vld [vmem:[%s3 + $0x30] sm:$0xff]
      %v4318 = vld [vmem:[%s3 + $0x38] sm:$0xff]
      %v4319 = vld [vmem:[%s3 + $0x40] sm:$0xff]
      %v4320 = vld [vmem:[%s3 + $0x48] sm:$0xff]
      %v4321 = vld [vmem:[%s3 + $0x50] sm:$0xff]
      %v4322 = vld [vmem:[%s3 + $0x58] sm:$0xff]
      %v4323 = vld [vmem:[%s3 + $0x60] sm:$0xff]
      %v4324 = vld [vmem:[%s3 + $0x68] sm:$0xff]
      %v4325 = vld [vmem:[%s3 + $0x70] sm:$0xff]
      %v4326 = vld [vmem:[%s3 + $0x78] sm:$0xff]
      %v4327 = vld [vmem:[%s3 + $0x80] sm:$0xff]
      %v4328 = vld [vmem:[%s3 + $0x88] sm:$0xff]
      %v4329 = vld [vmem:[%s3 + $0x90] sm:$0xff]
      %v4330 = vld [vmem:[%s3 + $0x98] sm:$0xff]
      %v4331 = vld [vmem:[%s3 + $0xa0] sm:$0xff]
      %v4332 = vld [vmem:[%s3 + $0xa8] sm:$0xff]
      %v4333 = vld [vmem:[%s3 + $0xb0] sm:$0xff]
      %v4334 = vld [vmem:[%s3 + $0xb8] sm:$0xff]
      %v4335 = vld [vmem:[%s3 + $0xc0] sm:$0xff]
      %v4336 = vld [vmem:[%s3 + $0xc8] sm:$0xff]
      %v4337 = vld [vmem:[%s3 + $0xd0] sm:$0xff]
      %v4338 = vld [vmem:[%s3 + $0xd8] sm:$0xff]
      %v4339 = vld [vmem:[%s3 + $0xe0] sm:$0xff]
      %v4340 = vld [vmem:[%s3 + $0xe8] sm:$0xff]
      %v4341 = vld [vmem:[%s3 + $0xf0] sm:$0xff]
      %v4342 = vld [vmem:[%s3 + $0xf8] sm:$0xff]
      %v4343 = vld [vmem:[%s3 + $0x100] sm:$0xff]
      %v4344 = vld [vmem:[%s3 + $0x108] sm:$0xff]
      %v4345 = vld [vmem:[%s3 + $0x110] sm:$0xff]
      %v4346 = vld [vmem:[%s3 + $0x118] sm:$0xff]
      %v4347 = vld [vmem:[%s3 + $0x120] sm:$0xff]
      %v4348 = vld [vmem:[%s3 + $0x128] sm:$0xff]
      %v4349 = vld [vmem:[%s3 + $0x130] sm:$0xff]
      %v4350 = vld [vmem:[%s3 + $0x138] sm:$0xff]
      %v4351 = vld [vmem:[%s3 + $0x140] sm:$0xff]
      %v4352 = vld [vmem:[%s3 + $0x148] sm:$0xff]
      %v4353 = vld [vmem:[%s3 + $0x150] sm:$0xff]
      %v4354 = vld [vmem:[%s3 + $0x158] sm:$0xff]
      %v4355 = vld [vmem:[%s3 + $0x160] sm:$0xff]
      %v4356 = vld [vmem:[%s3 + $0x168] sm:$0xff]
      %v4357 = vld [vmem:[%s3 + $0x170] sm:$0xff]
      %v4358 = vld [vmem:[%s3 + $0x178] sm:$0xff]
      %v4359 = vld [vmem:[%s3 + $0x180] sm:$0xff]
      %v4360 = vld [vmem:[%s3 + $0x188] sm:$0xff]
      %v4361 = vld [vmem:[%s3 + $0x190] sm:$0xff]
      %v4362 = vld [vmem:[%s3 + $0x198] sm:$0xff]
      %v4363 = vld [vmem:[%s3 + $0x1a0] sm:$0xff]
      %v4364 = vld [vmem:[%s3 + $0x1a8] sm:$0xff]
      %v4365 = vld [vmem:[%s3 + $0x1b0] sm:$0xff]
      %v4366 = vld [vmem:[%s3 + $0x1b8] sm:$0xff]
      %v4367 = vld [vmem:[%s3 + $0x1c0] sm:$0xff]
      %v4368 = vld [vmem:[%s3 + $0x1c8] sm:$0xff]
      %v4369 = vld [vmem:[%s3 + $0x1d0] sm:$0xff]
      %v4370 = vld [vmem:[%s3 + $0x1d8] sm:$0xff]
      %v4371 = vld [vmem:[%s3 + $0x1e0] sm:$0xff]
      %v4372 = vld [vmem:[%s3 + $0x1e8] sm:$0xff]
      %v4373 = vld [vmem:[%s3 + $0x1f0] sm:$0xff]
      %v4374 = vld [vmem:[%s3 + $0x1f8] sm:$0xff]
      %v4375 = vld [vmem:[%s3 + $0x200] sm:$0xff]
      %v4376 = vld [vmem:[%s3 + $0x208] sm:$0xff]
      %v4377 = vld [vmem:[%s3 + $0x210] sm:$0xff]
      %v4378 = vld [vmem:[%s3 + $0x218] sm:$0xff]
      %v4379 = vld [vmem:[%s3 + $0x220] sm:$0xff]
      %v4380 = vld [vmem:[%s3 + $0x228] sm:$0xff]
      %v4381 = vld [vmem:[%s3 + $0x230] sm:$0xff]
      %v4382 = vld [vmem:[%s3 + $0x238] sm:$0xff]
      %v4383 = vld [vmem:[%s3 + $0x240] sm:$0xff]
      %v4384 = vld [vmem:[%s3 + $0x248] sm:$0xff]
      %v4385 = vld [vmem:[%s3 + $0x250] sm:$0xff]
      %v4386 = vld [vmem:[%s3 + $0x258] sm:$0xff]
      %v4387 = vld [vmem:[%s3 + $0x260] sm:$0xff]
      %v4388 = vld [vmem:[%s3 + $0x268] sm:$0xff]
      %v4389 = vld [vmem:[%s3 + $0x270] sm:$0xff]
      %v4390 = vld [vmem:[%s3 + $0x278] sm:$0xff]
      %v4391 = vld [vmem:[%s3 + $0x280] sm:$0xff]
      %v4392 = vld [vmem:[%s3 + $0x288] sm:$0xff]
      %v4393 = vld [vmem:[%s3 + $0x290] sm:$0xff]
      %v4394 = vld [vmem:[%s3 + $0x298] sm:$0xff]
      %v4395 = vld [vmem:[%s3 + $0x2a0] sm:$0xff]
      %v4396 = vld [vmem:[%s3 + $0x2a8] sm:$0xff]
      %v4397 = vld [vmem:[%s3 + $0x2b0] sm:$0xff]
      %v4398 = vld [vmem:[%s3 + $0x2b8] sm:$0xff]
      %v4399 = vld [vmem:[%s3 + $0x2c0] sm:$0xff]
      %v4400 = vld [vmem:[%s3 + $0x2c8] sm:$0xff]
      %v4401 = vld [vmem:[%s3 + $0x2d0] sm:$0xff]
      %v4402 = vld [vmem:[%s3 + $0x2d8] sm:$0xff]
      %v4403 = vld [vmem:[%s3 + $0x2e0] sm:$0xff]
      %v4404 = vld [vmem:[%s3 + $0x2e8] sm:$0xff]
      %v4405 = vld [vmem:[%s3 + $0x2f0] sm:$0xff]
      %v4406 = vld [vmem:[%s3 + $0x2f8] sm:$0xff]
      %v4407 = vld [vmem:[%s3 + $0x300] sm:$0xff]
      %v4408 = vld [vmem:[%s3 + $0x308] sm:$0xff]
      %v4409 = vld [vmem:[%s3 + $0x310] sm:$0xff]
      %v4410 = vld [vmem:[%s3 + $0x318] sm:$0xff]
      %v4411 = vld [vmem:[%s3 + $0x320] sm:$0xff]
      %v4412 = vld [vmem:[%s3 + $0x328] sm:$0xff]
      %v4413 = vld [vmem:[%s3 + $0x330] sm:$0xff]
      %v4414 = vld [vmem:[%s3 + $0x338] sm:$0xff]
      %v4415 = vld [vmem:[%s3 + $0x340] sm:$0xff]
      %v4416 = vld [vmem:[%s3 + $0x348] sm:$0xff]
      %v4417 = vld [vmem:[%s3 + $0x350] sm:$0xff]
      %v4418 = vld [vmem:[%s3 + $0x358] sm:$0xff]
      %v4419 = vld [vmem:[%s3 + $0x360] sm:$0xff]
      %v4420 = vld [vmem:[%s3 + $0x368] sm:$0xff]
      %v4421 = vld [vmem:[%s3 + $0x370] sm:$0xff]
      %v4422 = vld [vmem:[%s3 + $0x378] sm:$0xff]
      %v4423 = vld [vmem:[%s3 + $0x380] sm:$0xff]
      %v4424 = vld [vmem:[%s3 + $0x388] sm:$0xff]
      %v4425 = vld [vmem:[%s3 + $0x390] sm:$0xff]
      %v4426 = vld [vmem:[%s3 + $0x398] sm:$0xff]
      %v4427 = vld [vmem:[%s3 + $0x3a0] sm:$0xff]
      %v4428 = vld [vmem:[%s3 + $0x3a8] sm:$0xff]
      %v4429 = vld [vmem:[%s3 + $0x3b0] sm:$0xff]
      %v4430 = vld [vmem:[%s3 + $0x3b8] sm:$0xff]
      %v4431 = vld [vmem:[%s3 + $0x3c0] sm:$0xff]
      %v4432 = vld [vmem:[%s3 + $0x3c8] sm:$0xff]
      %v4433 = vld [vmem:[%s3 + $0x3d0] sm:$0xff]
      %v4434 = vld [vmem:[%s3 + $0x3d8] sm:$0xff]
      %v4435 = vld [vmem:[%s3 + $0x3e0] sm:$0xff]
      %v4436 = vld [vmem:[%s3 + $0x3e8] sm:$0xff]
      %v4437 = vld [vmem:[%s3 + $0x3f0] sm:$0xff]
      %v4438 = vld [vmem:[%s3 + $0x3f8] sm:$0xff]
      %v4567 = vunpack.c.l.b16 %v4311
      %v4568 = vunpack.c.h.b16 %v4311
      %v4569 = vunpack.c.l.b16 %v4312
      %v4570 = vunpack.c.h.b16 %v4312
      %v4571 = vunpack.c.l.b16 %v4313
      %v4572 = vunpack.c.h.b16 %v4313
      %v4573 = vunpack.c.l.b16 %v4314
      %v4574 = vunpack.c.h.b16 %v4314
      %v4575 = vunpack.c.l.b16 %v4315
      %v4576 = vunpack.c.h.b16 %v4315
      %v4577 = vunpack.c.l.b16 %v4316
      %v4578 = vunpack.c.h.b16 %v4316
      %v4579 = vunpack.c.l.b16 %v4317
      %v4580 = vunpack.c.h.b16 %v4317
      %v4581 = vunpack.c.l.b16 %v4318
      %v4582 = vunpack.c.h.b16 %v4318
      %v4583 = vunpack.c.l.b16 %v4319
      %v4584 = vunpack.c.h.b16 %v4319
      %v4585 = vunpack.c.l.b16 %v4320
      %v4586 = vunpack.c.h.b16 %v4320
      %v4587 = vunpack.c.l.b16 %v4321
      %v4588 = vunpack.c.h.b16 %v4321
      %v4589 = vunpack.c.l.b16 %v4322
      %v4590 = vunpack.c.h.b16 %v4322
      %v4591 = vunpack.c.l.b16 %v4323
      %v4592 = vunpack.c.h.b16 %v4323
      %v4593 = vunpack.c.l.b16 %v4324
      %v4594 = vunpack.c.h.b16 %v4324
      %v4595 = vunpack.c.l.b16 %v4325
      %v4596 = vunpack.c.h.b16 %v4325
      %v4597 = vunpack.c.l.b16 %v4326
      %v4598 = vunpack.c.h.b16 %v4326
      %v4599 = vunpack.c.l.b16 %v4327
      %v4600 = vunpack.c.h.b16 %v4327
      %v4601 = vunpack.c.l.b16 %v4328
      %v4602 = vunpack.c.h.b16 %v4328
      %v4603 = vunpack.c.l.b16 %v4329
      %v4604 = vunpack.c.h.b16 %v4329
      %v4605 = vunpack.c.l.b16 %v4330
      %v4606 = vunpack.c.h.b16 %v4330
      %v4607 = vunpack.c.l.b16 %v4331
      %v4608 = vunpack.c.h.b16 %v4331
      %v4609 = vunpack.c.l.b16 %v4332
      %v4610 = vunpack.c.h.b16 %v4332
      %v4611 = vunpack.c.l.b16 %v4333
      %v4612 = vunpack.c.h.b16 %v4333
      %v4613 = vunpack.c.l.b16 %v4334
      %v4614 = vunpack.c.h.b16 %v4334
      %v4615 = vunpack.c.l.b16 %v4335
      %v4616 = vunpack.c.h.b16 %v4335
      %v4617 = vunpack.c.l.b16 %v4336
      %v4618 = vunpack.c.h.b16 %v4336
      %v4619 = vunpack.c.l.b16 %v4337
      %v4620 = vunpack.c.h.b16 %v4337
      %v4621 = vunpack.c.l.b16 %v4338
      %v4622 = vunpack.c.h.b16 %v4338
      %v4623 = vunpack.c.l.b16 %v4339
      %v4624 = vunpack.c.h.b16 %v4339
      %v4625 = vunpack.c.l.b16 %v4340
      %v4626 = vunpack.c.h.b16 %v4340
      %v4627 = vunpack.c.l.b16 %v4341
      %v4628 = vunpack.c.h.b16 %v4341
      %v4629 = vunpack.c.l.b16 %v4342
      %v4630 = vunpack.c.h.b16 %v4342
      %v4631 = vunpack.c.l.b16 %v4343
      %v4632 = vunpack.c.h.b16 %v4343
      %v4633 = vunpack.c.l.b16 %v4344
      %v4634 = vunpack.c.h.b16 %v4344
      %v4635 = vunpack.c.l.b16 %v4345
      %v4636 = vunpack.c.h.b16 %v4345
      %v4637 = vunpack.c.l.b16 %v4346
      %v4638 = vunpack.c.h.b16 %v4346
      %v4639 = vunpack.c.l.b16 %v4347
      %v4640 = vunpack.c.h.b16 %v4347
      %v4641 = vunpack.c.l.b16 %v4348
      %v4642 = vunpack.c.h.b16 %v4348
      %v4643 = vunpack.c.l.b16 %v4349
      %v4644 = vunpack.c.h.b16 %v4349
      %v4645 = vunpack.c.l.b16 %v4350
      %v4646 = vunpack.c.h.b16 %v4350
      %v4647 = vunpack.c.l.b16 %v4351
      %v4648 = vunpack.c.h.b16 %v4351
      %v4649 = vunpack.c.l.b16 %v4352
      %v4650 = vunpack.c.h.b16 %v4352
      %v4651 = vunpack.c.l.b16 %v4353
      %v4652 = vunpack.c.h.b16 %v4353
      %v4653 = vunpack.c.l.b16 %v4354
      %v4654 = vunpack.c.h.b16 %v4354
      %v4655 = vunpack.c.l.b16 %v4355
      %v4656 = vunpack.c.h.b16 %v4355
      %v4657 = vunpack.c.l.b16 %v4356
      %v4658 = vunpack.c.h.b16 %v4356
      %v4659 = vunpack.c.l.b16 %v4357
      %v4660 = vunpack.c.h.b16 %v4357
      %v4661 = vunpack.c.l.b16 %v4358
      %v4662 = vunpack.c.h.b16 %v4358
      %v4663 = vunpack.c.l.b16 %v4359
      %v4664 = vunpack.c.h.b16 %v4359
      %v4665 = vunpack.c.l.b16 %v4360
      %v4666 = vunpack.c.h.b16 %v4360
      %v4667 = vunpack.c.l.b16 %v4361
      %v4668 = vunpack.c.h.b16 %v4361
      %v4669 = vunpack.c.l.b16 %v4362
      %v4670 = vunpack.c.h.b16 %v4362
      %v4671 = vunpack.c.l.b16 %v4363
      %v4672 = vunpack.c.h.b16 %v4363
      %v4673 = vunpack.c.l.b16 %v4364
      %v4674 = vunpack.c.h.b16 %v4364
      %v4675 = vunpack.c.l.b16 %v4365
      %v4676 = vunpack.c.h.b16 %v4365
      %v4677 = vunpack.c.l.b16 %v4366
      %v4678 = vunpack.c.h.b16 %v4366
      %v4679 = vunpack.c.l.b16 %v4367
      %v4680 = vunpack.c.h.b16 %v4367
      %v4681 = vunpack.c.l.b16 %v4368
      %v4682 = vunpack.c.h.b16 %v4368
      %v4683 = vunpack.c.l.b16 %v4369
      %v4684 = vunpack.c.h.b16 %v4369
      %v4685 = vunpack.c.l.b16 %v4370
      %v4686 = vunpack.c.h.b16 %v4370
      %v4687 = vunpack.c.l.b16 %v4371
      %v4688 = vunpack.c.h.b16 %v4371
      %v4689 = vunpack.c.l.b16 %v4372
      %v4690 = vunpack.c.h.b16 %v4372
      %v4691 = vunpack.c.l.b16 %v4373
      %v4692 = vunpack.c.h.b16 %v4373
      %v4693 = vunpack.c.l.b16 %v4374
      %v4694 = vunpack.c.h.b16 %v4374
      %v4695 = vunpack.c.l.b16 %v4375
      %v4696 = vunpack.c.h.b16 %v4375
      %v4697 = vunpack.c.l.b16 %v4376
      %v4698 = vunpack.c.h.b16 %v4376
      %v4699 = vunpack.c.l.b16 %v4377
      %v4700 = vunpack.c.h.b16 %v4377
      %v4701 = vunpack.c.l.b16 %v4378
      %v4702 = vunpack.c.h.b16 %v4378
      %v4703 = vunpack.c.l.b16 %v4379
      %v4704 = vunpack.c.h.b16 %v4379
      %v4705 = vunpack.c.l.b16 %v4380
      %v4706 = vunpack.c.h.b16 %v4380
      %v4707 = vunpack.c.l.b16 %v4381
      %v4708 = vunpack.c.h.b16 %v4381
      %v4709 = vunpack.c.l.b16 %v4382
      %v4710 = vunpack.c.h.b16 %v4382
      %v4711 = vunpack.c.l.b16 %v4383
      %v4712 = vunpack.c.h.b16 %v4383
      %v4713 = vunpack.c.l.b16 %v4384
      %v4714 = vunpack.c.h.b16 %v4384
      %v4715 = vunpack.c.l.b16 %v4385
      %v4716 = vunpack.c.h.b16 %v4385
      %v4717 = vunpack.c.l.b16 %v4386
      %v4718 = vunpack.c.h.b16 %v4386
      %v4719 = vunpack.c.l.b16 %v4387
      %v4720 = vunpack.c.h.b16 %v4387
      %v4721 = vunpack.c.l.b16 %v4388
      %v4722 = vunpack.c.h.b16 %v4388
      %v4723 = vunpack.c.l.b16 %v4389
      %v4724 = vunpack.c.h.b16 %v4389
      %v4725 = vunpack.c.l.b16 %v4390
      %v4726 = vunpack.c.h.b16 %v4390
      %v4727 = vunpack.c.l.b16 %v4391
      %v4728 = vunpack.c.h.b16 %v4391
      %v4729 = vunpack.c.l.b16 %v4392
      %v4730 = vunpack.c.h.b16 %v4392
      %v4731 = vunpack.c.l.b16 %v4393
      %v4732 = vunpack.c.h.b16 %v4393
      %v4733 = vunpack.c.l.b16 %v4394
      %v4734 = vunpack.c.h.b16 %v4394
      %v4735 = vunpack.c.l.b16 %v4395
      %v4736 = vunpack.c.h.b16 %v4395
      %v4737 = vunpack.c.l.b16 %v4396
      %v4738 = vunpack.c.h.b16 %v4396
      %v4739 = vunpack.c.l.b16 %v4397
      %v4740 = vunpack.c.h.b16 %v4397
      %v4741 = vunpack.c.l.b16 %v4398
      %v4742 = vunpack.c.h.b16 %v4398
      %v4743 = vunpack.c.l.b16 %v4399
      %v4744 = vunpack.c.h.b16 %v4399
      %v4745 = vunpack.c.l.b16 %v4400
      %v4746 = vunpack.c.h.b16 %v4400
      %v4747 = vunpack.c.l.b16 %v4401
      %v4748 = vunpack.c.h.b16 %v4401
      %v4749 = vunpack.c.l.b16 %v4402
      %v4750 = vunpack.c.h.b16 %v4402
      %v4751 = vunpack.c.l.b16 %v4403
      %v4752 = vunpack.c.h.b16 %v4403
      %v4753 = vunpack.c.l.b16 %v4404
      %v4754 = vunpack.c.h.b16 %v4404
      %v4755 = vunpack.c.l.b16 %v4405
      %v4756 = vunpack.c.h.b16 %v4405
      %v4757 = vunpack.c.l.b16 %v4406
      %v4758 = vunpack.c.h.b16 %v4406
      %v4759 = vunpack.c.l.b16 %v4407
      %v4760 = vunpack.c.h.b16 %v4407
      %v4761 = vunpack.c.l.b16 %v4408
      %v4762 = vunpack.c.h.b16 %v4408
      %v4763 = vunpack.c.l.b16 %v4409
      %v4764 = vunpack.c.h.b16 %v4409
      %v4765 = vunpack.c.l.b16 %v4410
      %v4766 = vunpack.c.h.b16 %v4410
      %v4767 = vunpack.c.l.b16 %v4411
      %v4768 = vunpack.c.h.b16 %v4411
      %v4769 = vunpack.c.l.b16 %v4412
      %v4770 = vunpack.c.h.b16 %v4412
      %v4771 = vunpack.c.l.b16 %v4413
      %v4772 = vunpack.c.h.b16 %v4413
      %v4773 = vunpack.c.l.b16 %v4414
      %v4774 = vunpack.c.h.b16 %v4414
      %v4775 = vunpack.c.l.b16 %v4415
      %v4776 = vunpack.c.h.b16 %v4415
      %v4777 = vunpack.c.l.b16 %v4416
      %v4778 = vunpack.c.h.b16 %v4416
      %v4779 = vunpack.c.l.b16 %v4417
      %v4780 = vunpack.c.h.b16 %v4417
      %v4781 = vunpack.c.l.b16 %v4418
      %v4782 = vunpack.c.h.b16 %v4418
      %v4783 = vunpack.c.l.b16 %v4419
      %v4784 = vunpack.c.h.b16 %v4419
      %v4785 = vunpack.c.l.b16 %v4420
      %v4786 = vunpack.c.h.b16 %v4420
      %v4787 = vunpack.c.l.b16 %v4421
      %v4788 = vunpack.c.h.b16 %v4421
      %v4789 = vunpack.c.l.b16 %v4422
      %v4790 = vunpack.c.h.b16 %v4422
      %v4791 = vunpack.c.l.b16 %v4423
      %v4792 = vunpack.c.h.b16 %v4423
      %v4793 = vunpack.c.l.b16 %v4424
      %v4794 = vunpack.c.h.b16 %v4424
      %v4795 = vunpack.c.l.b16 %v4425
      %v4796 = vunpack.c.h.b16 %v4425
      %v4797 = vunpack.c.l.b16 %v4426
      %v4798 = vunpack.c.h.b16 %v4426
      %v4799 = vunpack.c.l.b16 %v4427
      %v4800 = vunpack.c.h.b16 %v4427
      %v4801 = vunpack.c.l.b16 %v4428
      %v4802 = vunpack.c.h.b16 %v4428
      %v4803 = vunpack.c.l.b16 %v4429
      %v4804 = vunpack.c.h.b16 %v4429
      %v4805 = vunpack.c.l.b16 %v4430
      %v4806 = vunpack.c.h.b16 %v4430
      %v4807 = vunpack.c.l.b16 %v4431
      %v4808 = vunpack.c.h.b16 %v4431
      %v4809 = vunpack.c.l.b16 %v4432
      %v4810 = vunpack.c.h.b16 %v4432
      %v4811 = vunpack.c.l.b16 %v4433
      %v4812 = vunpack.c.h.b16 %v4433
      %v4813 = vunpack.c.l.b16 %v4434
      %v4814 = vunpack.c.h.b16 %v4434
      %v4815 = vunpack.c.l.b16 %v4435
      %v4816 = vunpack.c.h.b16 %v4435
      %v4817 = vunpack.c.l.b16 %v4436
      %v4818 = vunpack.c.h.b16 %v4436
      %v4819 = vunpack.c.l.b16 %v4437
      %v4820 = vunpack.c.h.b16 %v4437
      %v4821 = vunpack.c.l.b16 %v4438
      %v4822 = vunpack.c.h.b16 %v4438
      %v4823 = vpack.c.b16 %v4599, %v4567
      %v4824 = vpack.c.b16 %v4600, %v4568
      %v4825 = vpack.c.b16 %v4601, %v4569
      %v4826 = vpack.c.b16 %v4602, %v4570
      %v4827 = vpack.c.b16 %v4603, %v4571
      %v4828 = vpack.c.b16 %v4604, %v4572
      %v4829 = vpack.c.b16 %v4605, %v4573
      %v4830 = vpack.c.b16 %v4606, %v4574
      %v4831 = vpack.c.b16 %v4607, %v4575
      %v4832 = vpack.c.b16 %v4608, %v4576
      %v4833 = vpack.c.b16 %v4609, %v4577
      %v4834 = vpack.c.b16 %v4610, %v4578
      %v4835 = vpack.c.b16 %v4611, %v4579
      %v4836 = vpack.c.b16 %v4612, %v4580
      %v4837 = vpack.c.b16 %v4613, %v4581
      %v4838 = vpack.c.b16 %v4614, %v4582
      %v4839 = vpack.c.b16 %v4615, %v4583
      %v4840 = vpack.c.b16 %v4616, %v4584
      %v4841 = vpack.c.b16 %v4617, %v4585
      %v4842 = vpack.c.b16 %v4618, %v4586
      %v4843 = vpack.c.b16 %v4619, %v4587
      %v4844 = vpack.c.b16 %v4620, %v4588
      %v4845 = vpack.c.b16 %v4621, %v4589
      %v4846 = vpack.c.b16 %v4622, %v4590
      %v4847 = vpack.c.b16 %v4623, %v4591
      %v4848 = vpack.c.b16 %v4624, %v4592
      %v4849 = vpack.c.b16 %v4625, %v4593
      %v4850 = vpack.c.b16 %v4626, %v4594
      %v4851 = vpack.c.b16 %v4627, %v4595
      %v4852 = vpack.c.b16 %v4628, %v4596
      %v4853 = vpack.c.b16 %v4629, %v4597
      %v4854 = vpack.c.b16 %v4630, %v4598
      %v4855 = vpack.c.b16 %v4663, %v4631
      %v4856 = vpack.c.b16 %v4664, %v4632
      %v4857 = vpack.c.b16 %v4665, %v4633
      %v4858 = vpack.c.b16 %v4666, %v4634
      %v4859 = vpack.c.b16 %v4667, %v4635
      %v4860 = vpack.c.b16 %v4668, %v4636
      %v4861 = vpack.c.b16 %v4669, %v4637
      %v4862 = vpack.c.b16 %v4670, %v4638
      %v4863 = vpack.c.b16 %v4671, %v4639
      %v4864 = vpack.c.b16 %v4672, %v4640
      %v4865 = vpack.c.b16 %v4673, %v4641
      %v4866 = vpack.c.b16 %v4674, %v4642
      %v4867 = vpack.c.b16 %v4675, %v4643
      %v4868 = vpack.c.b16 %v4676, %v4644
      %v4869 = vpack.c.b16 %v4677, %v4645
      %v4870 = vpack.c.b16 %v4678, %v4646
      %v4871 = vpack.c.b16 %v4679, %v4647
      %v4872 = vpack.c.b16 %v4680, %v4648
      %v4873 = vpack.c.b16 %v4681, %v4649
      %v4874 = vpack.c.b16 %v4682, %v4650
      %v4875 = vpack.c.b16 %v4683, %v4651
      %v4876 = vpack.c.b16 %v4684, %v4652
      %v4877 = vpack.c.b16 %v4685, %v4653
      %v4878 = vpack.c.b16 %v4686, %v4654
      %v4879 = vpack.c.b16 %v4687, %v4655
      %v4880 = vpack.c.b16 %v4688, %v4656
      %v4881 = vpack.c.b16 %v4689, %v4657
      %v4882 = vpack.c.b16 %v4690, %v4658
      %v4883 = vpack.c.b16 %v4691, %v4659
      %v4884 = vpack.c.b16 %v4692, %v4660
      %v4885 = vpack.c.b16 %v4693, %v4661
      %v4886 = vpack.c.b16 %v4694, %v4662
      %v4887 = vpack.c.b16 %v4727, %v4695
      %v4888 = vpack.c.b16 %v4728, %v4696
      %v4889 = vpack.c.b16 %v4729, %v4697
      %v4890 = vpack.c.b16 %v4730, %v4698
      %v4891 = vpack.c.b16 %v4731, %v4699
      %v4892 = vpack.c.b16 %v4732, %v4700
      %v4893 = vpack.c.b16 %v4733, %v4701
      %v4894 = vpack.c.b16 %v4734, %v4702
      %v4895 = vpack.c.b16 %v4735, %v4703
      %v4896 = vpack.c.b16 %v4736, %v4704
      %v4897 = vpack.c.b16 %v4737, %v4705
      %v4898 = vpack.c.b16 %v4738, %v4706
      %v4899 = vpack.c.b16 %v4739, %v4707
      %v4900 = vpack.c.b16 %v4740, %v4708
      %v4901 = vpack.c.b16 %v4741, %v4709
      %v4902 = vpack.c.b16 %v4742, %v4710
      %v4903 = vpack.c.b16 %v4743, %v4711
      %v4904 = vpack.c.b16 %v4744, %v4712
      %v4905 = vpack.c.b16 %v4745, %v4713
      %v4906 = vpack.c.b16 %v4746, %v4714
      %v4907 = vpack.c.b16 %v4747, %v4715
      %v4908 = vpack.c.b16 %v4748, %v4716
      %v4909 = vpack.c.b16 %v4749, %v4717
      %v4910 = vpack.c.b16 %v4750, %v4718
      %v4911 = vpack.c.b16 %v4751, %v4719
      %v4912 = vpack.c.b16 %v4752, %v4720
      %v4913 = vpack.c.b16 %v4753, %v4721
      %v4914 = vpack.c.b16 %v4754, %v4722
      %v4915 = vpack.c.b16 %v4755, %v4723
      %v4916 = vpack.c.b16 %v4756, %v4724
      %v4917 = vpack.c.b16 %v4757, %v4725
      %v4918 = vpack.c.b16 %v4758, %v4726
      %v4919 = vpack.c.b16 %v4791, %v4759
      %v4920 = vpack.c.b16 %v4792, %v4760
      %v4921 = vpack.c.b16 %v4793, %v4761
      %v4922 = vpack.c.b16 %v4794, %v4762
      %v4923 = vpack.c.b16 %v4795, %v4763
      %v4924 = vpack.c.b16 %v4796, %v4764
      %v4925 = vpack.c.b16 %v4797, %v4765
      %v4926 = vpack.c.b16 %v4798, %v4766
      %v4927 = vpack.c.b16 %v4799, %v4767
      %v4928 = vpack.c.b16 %v4800, %v4768
      %v4929 = vpack.c.b16 %v4801, %v4769
      %v4930 = vpack.c.b16 %v4802, %v4770
      %v4931 = vpack.c.b16 %v4803, %v4771
      %v4932 = vpack.c.b16 %v4804, %v4772
      %v4933 = vpack.c.b16 %v4805, %v4773
      %v4934 = vpack.c.b16 %v4806, %v4774
      %v4935 = vpack.c.b16 %v4807, %v4775
      %v4936 = vpack.c.b16 %v4808, %v4776
      %v4937 = vpack.c.b16 %v4809, %v4777
      %v4938 = vpack.c.b16 %v4810, %v4778
      %v4939 = vpack.c.b16 %v4811, %v4779
      %v4940 = vpack.c.b16 %v4812, %v4780
      %v4941 = vpack.c.b16 %v4813, %v4781
      %v4942 = vpack.c.b16 %v4814, %v4782
      %v4943 = vpack.c.b16 %v4815, %v4783
      %v4944 = vpack.c.b16 %v4816, %v4784
      %v4945 = vpack.c.b16 %v4817, %v4785
      %v4946 = vpack.c.b16 %v4818, %v4786
      %v4947 = vpack.c.b16 %v4819, %v4787
      %v4948 = vpack.c.b16 %v4820, %v4788
      %v4949 = vpack.c.b16 %v4821, %v4789
      %v4950 = vpack.c.b16 %v4822, %v4790
      %v5080 = vsel %vm4147, %v4309, 0
      %v5083 = vsel %vm4147, %v4310, 0
      %5085 = vmatprep.subr.bf16.mxu0 %v4824
      %5086 = vmatpush1.bf16.msra.mxu0 %v4823
      %5087 = vmatprep.subr.bf16.mxu0 %v4856
      %5088 = vmatpush1.bf16.msra.mxu0 %v4855
      %5089 = vmatprep.subr.bf16.mxu0 %v4888
      %5090 = vmatpush1.bf16.msra.mxu0 %v4887
      %5091 = vmatprep.subr.bf16.mxu0 %v4920
      %5092 = vmatpush1.bf16.msra.mxu0 %v4919
      %5093 = vmatprep.subr.bf16.mxu0 0
      %5094 = vmatpush1.bf16.msra.mxu0 0
      %5095 = vmatprep.subr.bf16.mxu0 0
      %5096 = vmatpush1.bf16.msra.mxu0 0
      %5097 = vmatprep.subr.bf16.mxu0 0
      %5098 = vmatpush1.bf16.msra.mxu0 0
      %5099 = vmatprep.subr.bf16.mxu0 0
      %5100 = vmatpush1.bf16.msra.mxu0 0
      %5101 = vmatprep.subr.bf16.mxu0 0
      %5102 = vmatpush1.bf16.msra.mxu0 0
      %5103 = vmatprep.subr.bf16.mxu0 0
      %5104 = vmatpush1.bf16.msra.mxu0 0
      %5105 = vmatprep.subr.bf16.mxu0 0
      %5106 = vmatpush1.bf16.msra.mxu0 0
      %5107 = vmatprep.subr.bf16.mxu0 0
      %5108 = vmatpush1.bf16.msra.mxu0 0
      %5109 = vmatprep.subr.bf16.mxu0 0
      %5110 = vmatpush1.bf16.msra.mxu0 0
      %5111 = vmatprep.subr.bf16.mxu0 0
      %5112 = vmatpush1.bf16.msra.mxu0 0
      %5113 = vmatprep.subr.bf16.mxu0 0
      %5114 = vmatpush1.bf16.msra.mxu0 0
      %5115 = vmatprep.subr.bf16.mxu0 0
      %5116 = vmatpush1.bf16.msra.mxu0 0
      %5117 = vmatprep.mubr.bf16.mxu0 0
      %5118 = vmatmul.mubr.bf16.gmra.mrb[0].mxu0 %v5080
      %v5119 = vpop.f32.mrb[0].mxu0
      %v5120 = vadd.f32 %v327, %v5119
      %v5121 = vpop.f32.mrb[0].mxu0
      %v5122 = vadd.f32 %v328, %v5121
      %v5123 = vpop.f32.mrb[0].mxu0
      %v5124 = vadd.f32 %v359, %v5123
      %v5125 = vpop.f32.mrb[0].mxu0
      %v5126 = vadd.f32 %v360, %v5125
      %5127 = vmatprep.mubr.bf16.mxu0 0
      %5128 = vmatmul.mubr.bf16.gmra.mrb[0].mxu0 %v5083
      %v5129 = vpop.f32.mrb[0].mxu0
      %v5130 = vadd.f32 %v391, %v5129
      %v5131 = vpop.f32.mrb[0].mxu0
      %v5132 = vadd.f32 %v392, %v5131
      %v5133 = vpop.f32.mrb[0].mxu0
      %v5134 = vadd.f32 %v423, %v5133
      %v5135 = vpop.f32.mrb[0].mxu0
      %v5136 = vadd.f32 %v424, %v5135
      %5137 = vdwg.mxu0
      %5138 = vmatprep.subr.bf16.mxu0 %v4826
      %5139 = vmatpush1.bf16.msra.mxu0 %v4825
      %5140 = vmatprep.subr.bf16.mxu0 %v4858
      %5141 = vmatpush1.bf16.msra.mxu0 %v4857
      %5142 = vmatprep.subr.bf16.mxu0 %v4890
      %5143 = vmatpush1.bf16.msra.mxu0 %v4889
      %5144 = vmatprep.subr.bf16.mxu0 %v4922
      %5145 = vmatpush1.bf16.msra.mxu0 %v4921
      %5146 = vmatprep.subr.bf16.mxu0 0
      %5147 = vmatpush1.bf16.msra.mxu0 0
      %5148 = vmatprep.subr.bf16.mxu0 0
      %5149 = vmatpush1.bf16.msra.mxu0 0
      %5150 = vmatprep.subr.bf16.mxu0 0
      %5151 = vmatpush1.bf16.msra.mxu0 0
      %5152 = vmatprep.subr.bf16.mxu0 0
      %5153 = vmatpush1.bf16.msra.mxu0 0
      %5154 = vmatprep.subr.bf16.mxu0 0
      %5155 = vmatpush1.bf16.msra.mxu0 0
      %5156 = vmatprep.subr.bf16.mxu0 0
      %5157 = vmatpush1.bf16.msra.mxu0 0
      %5158 = vmatprep.subr.bf16.mxu0 0
      %5159 = vmatpush1.bf16.msra.mxu0 0
      %5160 = vmatprep.subr.bf16.mxu0 0
      %5161 = vmatpush1.bf16.msra.mxu0 0
      %5162 = vmatprep.subr.bf16.mxu0 0
      %5163 = vmatpush1.bf16.msra.mxu0 0
      %5164 = vmatprep.subr.bf16.mxu0 0
      %5165 = vmatpush1.bf16.msra.mxu0 0
      %5166 = vmatprep.subr.bf16.mxu0 0
      %5167 = vmatpush1.bf16.msra.mxu0 0
      %5168 = vmatprep.subr.bf16.mxu0 0
      %5169 = vmatpush1.bf16.msra.mxu0 0
      %5170 = vmatprep.mubr.bf16.mxu0 0
      %5171 = vmatmul.mubr.bf16.gmra.mrb[0].mxu0 %v5080
      %v5172 = vpop.f32.mrb[0].mxu0
      %v5173 = vadd.f32 %v329, %v5172
      %v5174 = vpop.f32.mrb[0].mxu0
      %v5175 = vadd.f32 %v330, %v5174
      %v5176 = vpop.f32.mrb[0].mxu0
      %v5177 = vadd.f32 %v361, %v5176
      %v5178 = vpop.f32.mrb[0].mxu0
      %v5179 = vadd.f32 %v362, %v5178
      %5180 = vmatprep.mubr.bf16.mxu0 0
      %5181 = vmatmul.mubr.bf16.gmra.mrb[0].mxu0 %v5083
      %v5182 = vpop.f32.mrb[0].mxu0
      %v5183 = vadd.f32 %v393, %v5182
      %v5184 = vpop.f32.mrb[0].mxu0
      %v5185 = vadd.f32 %v394, %v5184
      %v5186 = vpop.f32.mrb[0].mxu0
      %v5187 = vadd.f32 %v425, %v5186
      %v5188 = vpop.f32.mrb[0].mxu0
      %v5189 = vadd.f32 %v426, %v5188
      %5190 = vdwg.mxu0
      %5191 = vmatprep.subr.bf16.mxu0 %v4828
      %5192 = vmatpush1.bf16.msra.mxu0 %v4827
      %5193 = vmatprep.subr.bf16.mxu0 %v4860
      %5194 = vmatpush1.bf16.msra.mxu0 %v4859
      %5195 = vmatprep.subr.bf16.mxu0 %v4892
      %5196 = vmatpush1.bf16.msra.mxu0 %v4891
      %5197 = vmatprep.subr.bf16.mxu0 %v4924
      %5198 = vmatpush1.bf16.msra.mxu0 %v4923
      %5199 = vmatprep.subr.bf16.mxu0 0
      %5200 = vmatpush1.bf16.msra.mxu0 0
      %5201 = vmatprep.subr.bf16.mxu0 0
      %5202 = vmatpush1.bf16.msra.mxu0 0
      %5203 = vmatprep.subr.bf16.mxu0 0
      %5204 = vmatpush1.bf16.msra.mxu0 0
      %5205 = vmatprep.subr.bf16.mxu0 0
      %5206 = vmatpush1.bf16.msra.mxu0 0
      %5207 = vmatprep.subr.bf16.mxu0 0
      %5208 = vmatpush1.bf16.msra.mxu0 0
      %5209 = vmatprep.subr.bf16.mxu0 0
      %5210 = vmatpush1.bf16.msra.mxu0 0
      %5211 = vmatprep.subr.bf16.mxu0 0
      %5212 = vmatpush1.bf16.msra.mxu0 0
      %5213 = vmatprep.subr.bf16.mxu0 0
      %5214 = vmatpush1.bf16.msra.mxu0 0
      %5215 = vmatprep.subr.bf16.mxu0 0
      %5216 = vmatpush1.bf16.msra.mxu0 0
      %5217 = vmatprep.subr.bf16.mxu0 0
      %5218 = vmatpush1.bf16.msra.mxu0 0
      %5219 = vmatprep.subr.bf16.mxu0 0
      %5220 = vmatpush1.bf16.msra.mxu0 0
      %5221 = vmatprep.subr.bf16.mxu0 0
      %5222 = vmatpush1.bf16.msra.mxu0 0
      %5223 = vmatprep.mubr.bf16.mxu0 0
      %5224 = vmatmul.mubr.bf16.gmra.mrb[0].mxu0 %v5080
      %v5225 = vpop.f32.mrb[0].mxu0
      %v5226 = vadd.f32 %v331, %v5225
      %v5227 = vpop.f32.mrb[0].mxu0
      %v5228 = vadd.f32 %v332, %v5227
      %v5229 = vpop.f32.mrb[0].mxu0
      %v5230 = vadd.f32 %v363, %v5229
      %v5231 = vpop.f32.mrb[0].mxu0
      %v5232 = vadd.f32 %v364, %v5231
      %5233 = vmatprep.mubr.bf16.mxu0 0
      %5234 = vmatmul.mubr.bf16.gmra.mrb[0].mxu0 %v5083
      %v5235 = vpop.f32.mrb[0].mxu0
      %v5236 = vadd.f32 %v395, %v5235
      %v5237 = vpop.f32.mrb[0].mxu0
      %v5238 = vadd.f32 %v396, %v5237
      %v5239 = vpop.f32.mrb[0].mxu0
      %v5240 = vadd.f32 %v427, %v5239
      %v5241 = vpop.f32.mrb[0].mxu0
      %v5242 = vadd.f32 %v428, %v5241
      %5243 = vdwg.mxu0
      %5244 = vmatprep.subr.bf16.mxu0 %v4830
      %5245 = vmatpush1.bf16.msra.mxu0 %v4829
      %5246 = vmatprep.subr.bf16.mxu0 %v4862
      %5247 = vmatpush1.bf16.msra.mxu0 %v4861
      %5248 = vmatprep.subr.bf16.mxu0 %v4894
      %5249 = vmatpush1.bf16.msra.mxu0 %v4893
      %5250 = vmatprep.subr.bf16.mxu0 %v4926
      %5251 = vmatpush1.bf16.msra.mxu0 %v4925
      %5252 = vmatprep.subr.bf16.mxu0 0
      %5253 = vmatpush1.bf16.msra.mxu0 0
      %5254 = vmatprep.subr.bf16.mxu0 0
      %5255 = vmatpush1.bf16.msra.mxu0 0
      %5256 = vmatprep.subr.bf16.mxu0 0
      %5257 = vmatpush1.bf16.msra.mxu0 0
      %5258 = vmatprep.subr.bf16.mxu0 0
      %5259 = vmatpush1.bf16.msra.mxu0 0
      %5260 = vmatprep.subr.bf16.mxu0 0
      %5261 = vmatpush1.bf16.msra.mxu0 0
      %5262 = vmatprep.subr.bf16.mxu0 0
      %5263 = vmatpush1.bf16.msra.mxu0 0
      %5264 = vmatprep.subr.bf16.mxu0 0
      %5265 = vmatpush1.bf16.msra.mxu0 0
      %5266 = vmatprep.subr.bf16.mxu0 0
      %5267 = vmatpush1.bf16.msra.mxu0 0
      %5268 = vmatprep.subr.bf16.mxu0 0
      %5269 = vmatpush1.bf16.msra.mxu0 0
      %5270 = vmatprep.subr.bf16.mxu0 0
      %5271 = vmatpush1.bf16.msra.mxu0 0
      %5272 = vmatprep.subr.bf16.mxu0 0
      %5273 = vmatpush1.bf16.msra.mxu0 0
      %5274 = vmatprep.subr.bf16.mxu0 0
      %5275 = vmatpush1.bf16.msra.mxu0 0
      %5276 = vmatprep.mubr.bf16.mxu0 0
      %5277 = vmatmul.mubr.bf16.gmra.mrb[0].mxu0 %v5080
      %v5278 = vpop.f32.mrb[0].mxu0
      %v5279 = vadd.f32 %v333, %v5278
      %v5280 = vpop.f32.mrb[0].mxu0
      %v5281 = vadd.f32 %v334, %v5280
      %v5282 = vpop.f32.mrb[0].mxu0
      %v5283 = vadd.f32 %v365, %v5282
      %v5284 = vpop.f32.mrb[0].mxu0
      %v5285 = vadd.f32 %v366, %v5284
      %5286 = vmatprep.mubr.bf16.mxu0 0
      %5287 = vmatmul.mubr.bf16.gmra.mrb[0].mxu0 %v5083
      %v5288 = vpop.f32.mrb[0].mxu0
      %v5289 = vadd.f32 %v397, %v5288
      %v5290 = vpop.f32.mrb[0].mxu0
      %v5291 = vadd.f32 %v398, %v5290
      %v5292 = vpop.f32.mrb[0].mxu0
      %v5293 = vadd.f32 %v429, %v5292
      %v5294 = vpop.f32.mrb[0].mxu0
      %v5295 = vadd.f32 %v430, %v5294
      %5296 = vdwg.mxu0
      %5297 = vmatprep.subr.bf16.mxu0 %v4832
      %5298 = vmatpush1.bf16.msra.mxu0 %v4831
      %5299 = vmatprep.subr.bf16.mxu0 %v4864
      %5300 = vmatpush1.bf16.msra.mxu0 %v4863
      %5301 = vmatprep.subr.bf16.mxu0 %v4896
      %5302 = vmatpush1.bf16.msra.mxu0 %v4895
      %5303 = vmatprep.subr.bf16.mxu0 %v4928
      %5304 = vmatpush1.bf16.msra.mxu0 %v4927
      %5305 = vmatprep.subr.bf16.mxu0 0
      %5306 = vmatpush1.bf16.msra.mxu0 0
      %5307 = vmatprep.subr.bf16.mxu0 0
      %5308 = vmatpush1.bf16.msra.mxu0 0
      %5309 = vmatprep.subr.bf16.mxu0 0
      %5310 = vmatpush1.bf16.msra.mxu0 0
      %5311 = vmatprep.subr.bf16.mxu0 0
      %5312 = vmatpush1.bf16.msra.mxu0 0
      %5313 = vmatprep.subr.bf16.mxu0 0
      %5314 = vmatpush1.bf16.msra.mxu0 0
      %5315 = vmatprep.subr.bf16.mxu0 0
      %5316 = vmatpush1.bf16.msra.mxu0 0
      %5317 = vmatprep.subr.bf16.mxu0 0
      %5318 = vmatpush1.bf16.msra.mxu0 0
      %5319 = vmatprep.subr.bf16.mxu0 0
      %5320 = vmatpush1.bf16.msra.mxu0 0
      %5321 = vmatprep.subr.bf16.mxu0 0
      %5322 = vmatpush1.bf16.msra.mxu0 0
      %5323 = vmatprep.subr.bf16.mxu0 0
      %5324 = vmatpush1.bf16.msra.mxu0 0
      %5325 = vmatprep.subr.bf16.mxu0 0
      %5326 = vmatpush1.bf16.msra.mxu0 0
      %5327 = vmatprep.subr.bf16.mxu0 0
      %5328 = vmatpush1.bf16.msra.mxu0 0
      %5329 = vmatprep.mubr.bf16.mxu0 0
      %5330 = vmatmul.mubr.bf16.gmra.mrb[0].mxu0 %v5080
      %v5331 = vpop.f32.mrb[0].mxu0
      %v5332 = vadd.f32 %v335, %v5331
      %v5333 = vpop.f32.mrb[0].mxu0
      %v5334 = vadd.f32 %v336, %v5333
      %v5335 = vpop.f32.mrb[0].mxu0
      %v5336 = vadd.f32 %v367, %v5335
      %v5337 = vpop.f32.mrb[0].mxu0
      %v5338 = vadd.f32 %v368, %v5337
      %5339 = vmatprep.mubr.bf16.mxu0 0
      %5340 = vmatmul.mubr.bf16.gmra.mrb[0].mxu0 %v5083
      %v5341 = vpop.f32.mrb[0].mxu0
      %v5342 = vadd.f32 %v399, %v5341
      %v5343 = vpop.f32.mrb[0].mxu0
      %v5344 = vadd.f32 %v400, %v5343
      %v5345 = vpop.f32.mrb[0].mxu0
      %v5346 = vadd.f32 %v431, %v5345
      %v5347 = vpop.f32.mrb[0].mxu0
      %v5348 = vadd.f32 %v432, %v5347
      %5349 = vdwg.mxu0
      %5350 = vmatprep.subr.bf16.mxu0 %v4834
      %5351 = vmatpush1.bf16.msra.mxu0 %v4833
      %5352 = vmatprep.subr.bf16.mxu0 %v4866
      %5353 = vmatpush1.bf16.msra.mxu0 %v4865
      %5354 = vmatprep.subr.bf16.mxu0 %v4898
      %5355 = vmatpush1.bf16.msra.mxu0 %v4897
      %5356 = vmatprep.subr.bf16.mxu0 %v4930
      %5357 = vmatpush1.bf16.msra.mxu0 %v4929
      %5358 = vmatprep.subr.bf16.mxu0 0
      %5359 = vmatpush1.bf16.msra.mxu0 0
      %5360 = vmatprep.subr.bf16.mxu0 0
      %5361 = vmatpush1.bf16.msra.mxu0 0
      %5362 = vmatprep.subr.bf16.mxu0 0
      %5363 = vmatpush1.bf16.msra.mxu0 0
      %5364 = vmatprep.subr.bf16.mxu0 0
      %5365 = vmatpush1.bf16.msra.mxu0 0
      %5366 = vmatprep.subr.bf16.mxu0 0
      %5367 = vmatpush1.bf16.msra.mxu0 0
      %5368 = vmatprep.subr.bf16.mxu0 0
      %5369 = vmatpush1.bf16.msra.mxu0 0
      %5370 = vmatprep.subr.bf16.mxu0 0
      %5371 = vmatpush1.bf16.msra.mxu0 0
      %5372 = vmatprep.subr.bf16.mxu0 0
      %5373 = vmatpush1.bf16.msra.mxu0 0
      %5374 = vmatprep.subr.bf16.mxu0 0
      %5375 = vmatpush1.bf16.msra.mxu0 0
      %5376 = vmatprep.subr.bf16.mxu0 0
      %5377 = vmatpush1.bf16.msra.mxu0 0
      %5378 = vmatprep.subr.bf16.mxu0 0
      %5379 = vmatpush1.bf16.msra.mxu0 0
      %5380 = vmatprep.subr.bf16.mxu0 0
      %5381 = vmatpush1.bf16.msra.mxu0 0
      %5382 = vmatprep.mubr.bf16.mxu0 0
      %5383 = vmatmul.mubr.bf16.gmra.mrb[0].mxu0 %v5080
      %v5384 = vpop.f32.mrb[0].mxu0
      %v5385 = vadd.f32 %v337, %v5384
      %v5386 = vpop.f32.mrb[0].mxu0
      %v5387 = vadd.f32 %v338, %v5386
      %v5388 = vpop.f32.mrb[0].mxu0
      %v5389 = vadd.f32 %v369, %v5388
      %v5390 = vpop.f32.mrb[0].mxu0
      %v5391 = vadd.f32 %v370, %v5390
      %5392 = vmatprep.mubr.bf16.mxu0 0
      %5393 = vmatmul.mubr.bf16.gmra.mrb[0].mxu0 %v5083
      %v5394 = vpop.f32.mrb[0].mxu0
      %v5395 = vadd.f32 %v401, %v5394
      %v5396 = vpop.f32.mrb[0].mxu0
      %v5397 = vadd.f32 %v402, %v5396
      %v5398 = vpop.f32.mrb[0].mxu0
      %v5399 = vadd.f32 %v433, %v5398
      %v5400 = vpop.f32.mrb[0].mxu0
      %v5401 = vadd.f32 %v434, %v5400
      %5402 = vdwg.mxu0
      %5403 = vmatprep.subr.bf16.mxu0 %v4836
      %5404 = vmatpush1.bf16.msra.mxu0 %v4835
      %5405 = vmatprep.subr.bf16.mxu0 %v4868
      %5406 = vmatpush1.bf16.msra.mxu0 %v4867
      %5407 = vmatprep.subr.bf16.mxu0 %v4900
      %5408 = vmatpush1.bf16.msra.mxu0 %v4899
      %5409 = vmatprep.subr.bf16.mxu0 %v4932
      %5410 = vmatpush1.bf16.msra.mxu0 %v4931
      %5411 = vmatprep.subr.bf16.mxu0 0
      %5412 = vmatpush1.bf16.msra.mxu0 0
      %5413 = vmatprep.subr.bf16.mxu0 0
      %5414 = vmatpush1.bf16.msra.mxu0 0
      %5415 = vmatprep.subr.bf16.mxu0 0
      %5416 = vmatpush1.bf16.msra.mxu0 0
      %5417 = vmatprep.subr.bf16.mxu0 0
      %5418 = vmatpush1.bf16.msra.mxu0 0
      %5419 = vmatprep.subr.bf16.mxu0 0
      %5420 = vmatpush1.bf16.msra.mxu0 0
      %5421 = vmatprep.subr.bf16.mxu0 0
      %5422 = vmatpush1.bf16.msra.mxu0 0
      %5423 = vmatprep.subr.bf16.mxu0 0
      %5424 = vmatpush1.bf16.msra.mxu0 0
      %5425 = vmatprep.subr.bf16.mxu0 0
      %5426 = vmatpush1.bf16.msra.mxu0 0
      %5427 = vmatprep.subr.bf16.mxu0 0
      %5428 = vmatpush1.bf16.msra.mxu0 0
      %5429 = vmatprep.subr.bf16.mxu0 0
      %5430 = vmatpush1.bf16.msra.mxu0 0
      %5431 = vmatprep.subr.bf16.mxu0 0
      %5432 = vmatpush1.bf16.msra.mxu0 0
      %5433 = vmatprep.subr.bf16.mxu0 0
      %5434 = vmatpush1.bf16.msra.mxu0 0
      %5435 = vmatprep.mubr.bf16.mxu0 0
      %5436 = vmatmul.mubr.bf16.gmra.mrb[0].mxu0 %v5080
      %v5437 = vpop.f32.mrb[0].mxu0
      %v5438 = vadd.f32 %v339, %v5437
      %v5439 = vpop.f32.mrb[0].mxu0
      %v5440 = vadd.f32 %v340, %v5439
      %v5441 = vpop.f32.mrb[0].mxu0
      %v5442 = vadd.f32 %v371, %v5441
      %v5443 = vpop.f32.mrb[0].mxu0
      %v5444 = vadd.f32 %v372, %v5443
      %5445 = vmatprep.mubr.bf16.mxu0 0
      %5446 = vmatmul.mubr.bf16.gmra.mrb[0].mxu0 %v5083
      %v5447 = vpop.f32.mrb[0].mxu0
      %v5448 = vadd.f32 %v403, %v5447
      %v5449 = vpop.f32.mrb[0].mxu0
      %v5450 = vadd.f32 %v404, %v5449
      %v5451 = vpop.f32.mrb[0].mxu0
      %v5452 = vadd.f32 %v435, %v5451
      %v5453 = vpop.f32.mrb[0].mxu0
      %v5454 = vadd.f32 %v436, %v5453
      %5455 = vdwg.mxu0
      %5456 = vmatprep.subr.bf16.mxu0 %v4838
      %5457 = vmatpush1.bf16.msra.mxu0 %v4837
      %5458 = vmatprep.subr.bf16.mxu0 %v4870
      %5459 = vmatpush1.bf16.msra.mxu0 %v4869
      %5460 = vmatprep.subr.bf16.mxu0 %v4902
      %5461 = vmatpush1.bf16.msra.mxu0 %v4901
      %5462 = vmatprep.subr.bf16.mxu0 %v4934
      %5463 = vmatpush1.bf16.msra.mxu0 %v4933
      %5464 = vmatprep.subr.bf16.mxu0 0
      %5465 = vmatpush1.bf16.msra.mxu0 0
      %5466 = vmatprep.subr.bf16.mxu0 0
      %5467 = vmatpush1.bf16.msra.mxu0 0
      %5468 = vmatprep.subr.bf16.mxu0 0
      %5469 = vmatpush1.bf16.msra.mxu0 0
      %5470 = vmatprep.subr.bf16.mxu0 0
      %5471 = vmatpush1.bf16.msra.mxu0 0
      %5472 = vmatprep.subr.bf16.mxu0 0
      %5473 = vmatpush1.bf16.msra.mxu0 0
      %5474 = vmatprep.subr.bf16.mxu0 0
      %5475 = vmatpush1.bf16.msra.mxu0 0
      %5476 = vmatprep.subr.bf16.mxu0 0
      %5477 = vmatpush1.bf16.msra.mxu0 0
      %5478 = vmatprep.subr.bf16.mxu0 0
      %5479 = vmatpush1.bf16.msra.mxu0 0
      %5480 = vmatprep.subr.bf16.mxu0 0
      %5481 = vmatpush1.bf16.msra.mxu0 0
      %5482 = vmatprep.subr.bf16.mxu0 0
      %5483 = vmatpush1.bf16.msra.mxu0 0
      %5484 = vmatprep.subr.bf16.mxu0 0
      %5485 = vmatpush1.bf16.msra.mxu0 0
      %5486 = vmatprep.subr.bf16.mxu0 0
      %5487 = vmatpush1.bf16.msra.mxu0 0
      %5488 = vmatprep.mubr.bf16.mxu0 0
      %5489 = vmatmul.mubr.bf16.gmra.mrb[0].mxu0 %v5080
      %v5490 = vpop.f32.mrb[0].mxu0
      %v5491 = vadd.f32 %v341, %v5490
      %v5492 = vpop.f32.mrb[0].mxu0
      %v5493 = vadd.f32 %v342, %v5492
      %v5494 = vpop.f32.mrb[0].mxu0
      %v5495 = vadd.f32 %v373, %v5494
      %v5496 = vpop.f32.mrb[0].mxu0
      %v5497 = vadd.f32 %v374, %v5496
      %5498 = vmatprep.mubr.bf16.mxu0 0
      %5499 = vmatmul.mubr.bf16.gmra.mrb[0].mxu0 %v5083
      %v5500 = vpop.f32.mrb[0].mxu0
      %v5501 = vadd.f32 %v405, %v5500
      %v5502 = vpop.f32.mrb[0].mxu0
      %v5503 = vadd.f32 %v406, %v5502
      %v5504 = vpop.f32.mrb[0].mxu0
      %v5505 = vadd.f32 %v437, %v5504
      %v5506 = vpop.f32.mrb[0].mxu0
      %v5507 = vadd.f32 %v438, %v5506
      %5508 = vdwg.mxu0
      %5509 = vmatprep.subr.bf16.mxu0 %v4840
      %5510 = vmatpush1.bf16.msra.mxu0 %v4839
      %5511 = vmatprep.subr.bf16.mxu0 %v4872
      %5512 = vmatpush1.bf16.msra.mxu0 %v4871
      %5513 = vmatprep.subr.bf16.mxu0 %v4904
      %5514 = vmatpush1.bf16.msra.mxu0 %v4903
      %5515 = vmatprep.subr.bf16.mxu0 %v4936
      %5516 = vmatpush1.bf16.msra.mxu0 %v4935
      %5517 = vmatprep.subr.bf16.mxu0 0
      %5518 = vmatpush1.bf16.msra.mxu0 0
      %5519 = vmatprep.subr.bf16.mxu0 0
      %5520 = vmatpush1.bf16.msra.mxu0 0
      %5521 = vmatprep.subr.bf16.mxu0 0
      %5522 = vmatpush1.bf16.msra.mxu0 0
      %5523 = vmatprep.subr.bf16.mxu0 0
      %5524 = vmatpush1.bf16.msra.mxu0 0
      %5525 = vmatprep.subr.bf16.mxu0 0
      %5526 = vmatpush1.bf16.msra.mxu0 0
      %5527 = vmatprep.subr.bf16.mxu0 0
      %5528 = vmatpush1.bf16.msra.mxu0 0
      %5529 = vmatprep.subr.bf16.mxu0 0
      %5530 = vmatpush1.bf16.msra.mxu0 0
      %5531 = vmatprep.subr.bf16.mxu0 0
      %5532 = vmatpush1.bf16.msra.mxu0 0
      %5533 = vmatprep.subr.bf16.mxu0 0
      %5534 = vmatpush1.bf16.msra.mxu0 0
      %5535 = vmatprep.subr.bf16.mxu0 0
      %5536 = vmatpush1.bf16.msra.mxu0 0
      %5537 = vmatprep.subr.bf16.mxu0 0
      %5538 = vmatpush1.bf16.msra.mxu0 0
      %5539 = vmatprep.subr.bf16.mxu0 0
      %5540 = vmatpush1.bf16.msra.mxu0 0
      %5541 = vmatprep.mubr.bf16.mxu0 0
      %5542 = vmatmul.mubr.bf16.gmra.mrb[0].mxu0 %v5080
      %v5543 = vpop.f32.mrb[0].mxu0
      %v5544 = vadd.f32 %v343, %v5543
      %v5545 = vpop.f32.mrb[0].mxu0
      %v5546 = vadd.f32 %v344, %v5545
      %v5547 = vpop.f32.mrb[0].mxu0
      %v5548 = vadd.f32 %v375, %v5547
      %v5549 = vpop.f32.mrb[0].mxu0
      %v5550 = vadd.f32 %v376, %v5549
      %5551 = vmatprep.mubr.bf16.mxu0 0
      %5552 = vmatmul.mubr.bf16.gmra.mrb[0].mxu0 %v5083
      %v5553 = vpop.f32.mrb[0].mxu0
      %v5554 = vadd.f32 %v407, %v5553
      %v5555 = vpop.f32.mrb[0].mxu0
      %v5556 = vadd.f32 %v408, %v5555
      %v5557 = vpop.f32.mrb[0].mxu0
      %v5558 = vadd.f32 %v439, %v5557
      %v5559 = vpop.f32.mrb[0].mxu0
      %v5560 = vadd.f32 %v440, %v5559
      %5561 = vdwg.mxu0
      %5562 = vmatprep.subr.bf16.mxu0 %v4842
      %5563 = vmatpush1.bf16.msra.mxu0 %v4841
      %5564 = vmatprep.subr.bf16.mxu0 %v4874
      %5565 = vmatpush1.bf16.msra.mxu0 %v4873
      %5566 = vmatprep.subr.bf16.mxu0 %v4906
      %5567 = vmatpush1.bf16.msra.mxu0 %v4905
      %5568 = vmatprep.subr.bf16.mxu0 %v4938
      %5569 = vmatpush1.bf16.msra.mxu0 %v4937
      %5570 = vmatprep.subr.bf16.mxu0 0
      %5571 = vmatpush1.bf16.msra.mxu0 0
      %5572 = vmatprep.subr.bf16.mxu0 0
      %5573 = vmatpush1.bf16.msra.mxu0 0
      %5574 = vmatprep.subr.bf16.mxu0 0
      %5575 = vmatpush1.bf16.msra.mxu0 0
      %5576 = vmatprep.subr.bf16.mxu0 0
      %5577 = vmatpush1.bf16.msra.mxu0 0
      %5578 = vmatprep.subr.bf16.mxu0 0
      %5579 = vmatpush1.bf16.msra.mxu0 0
      %5580 = vmatprep.subr.bf16.mxu0 0
      %5581 = vmatpush1.bf16.msra.mxu0 0
      %5582 = vmatprep.subr.bf16.mxu0 0
      %5583 = vmatpush1.bf16.msra.mxu0 0
      %5584 = vmatprep.subr.bf16.mxu0 0
      %5585 = vmatpush1.bf16.msra.mxu0 0
      %5586 = vmatprep.subr.bf16.mxu0 0
      %5587 = vmatpush1.bf16.msra.mxu0 0
      %5588 = vmatprep.subr.bf16.mxu0 0
      %5589 = vmatpush1.bf16.msra.mxu0 0
      %5590 = vmatprep.subr.bf16.mxu0 0
      %5591 = vmatpush1.bf16.msra.mxu0 0
      %5592 = vmatprep.subr.bf16.mxu0 0
      %5593 = vmatpush1.bf16.msra.mxu0 0
      %5594 = vmatprep.mubr.bf16.mxu0 0
      %5595 = vmatmul.mubr.bf16.gmra.mrb[0].mxu0 %v5080
      %v5596 = vpop.f32.mrb[0].mxu0
      %v5597 = vadd.f32 %v345, %v5596
      %v5598 = vpop.f32.mrb[0].mxu0
      %v5599 = vadd.f32 %v346, %v5598
      %v5600 = vpop.f32.mrb[0].mxu0
      %v5601 = vadd.f32 %v377, %v5600
      %v5602 = vpop.f32.mrb[0].mxu0
      %v5603 = vadd.f32 %v378, %v5602
      %5604 = vmatprep.mubr.bf16.mxu0 0
      %5605 = vmatmul.mubr.bf16.gmra.mrb[0].mxu0 %v5083
      %v5606 = vpop.f32.mrb[0].mxu0
      %v5607 = vadd.f32 %v409, %v5606
      %v5608 = vpop.f32.mrb[0].mxu0
      %v5609 = vadd.f32 %v410, %v5608
      %v5610 = vpop.f32.mrb[0].mxu0
      %v5611 = vadd.f32 %v441, %v5610
      %v5612 = vpop.f32.mrb[0].mxu0
      %v5613 = vadd.f32 %v442, %v5612
      %5614 = vdwg.mxu0
      %5615 = vmatprep.subr.bf16.mxu0 %v4844
      %5616 = vmatpush1.bf16.msra.mxu0 %v4843
      %5617 = vmatprep.subr.bf16.mxu0 %v4876
      %5618 = vmatpush1.bf16.msra.mxu0 %v4875
      %5619 = vmatprep.subr.bf16.mxu0 %v4908
      %5620 = vmatpush1.bf16.msra.mxu0 %v4907
      %5621 = vmatprep.subr.bf16.mxu0 %v4940
      %5622 = vmatpush1.bf16.msra.mxu0 %v4939
      %5623 = vmatprep.subr.bf16.mxu0 0
      %5624 = vmatpush1.bf16.msra.mxu0 0
      %5625 = vmatprep.subr.bf16.mxu0 0
      %5626 = vmatpush1.bf16.msra.mxu0 0
      %5627 = vmatprep.subr.bf16.mxu0 0
      %5628 = vmatpush1.bf16.msra.mxu0 0
      %5629 = vmatprep.subr.bf16.mxu0 0
      %5630 = vmatpush1.bf16.msra.mxu0 0
      %5631 = vmatprep.subr.bf16.mxu0 0
      %5632 = vmatpush1.bf16.msra.mxu0 0
      %5633 = vmatprep.subr.bf16.mxu0 0
      %5634 = vmatpush1.bf16.msra.mxu0 0
      %5635 = vmatprep.subr.bf16.mxu0 0
      %5636 = vmatpush1.bf16.msra.mxu0 0
      %5637 = vmatprep.subr.bf16.mxu0 0
      %5638 = vmatpush1.bf16.msra.mxu0 0
      %5639 = vmatprep.subr.bf16.mxu0 0
      %5640 = vmatpush1.bf16.msra.mxu0 0
      %5641 = vmatprep.subr.bf16.mxu0 0
      %5642 = vmatpush1.bf16.msra.mxu0 0
      %5643 = vmatprep.subr.bf16.mxu0 0
      %5644 = vmatpush1.bf16.msra.mxu0 0
      %5645 = vmatprep.subr.bf16.mxu0 0
      %5646 = vmatpush1.bf16.msra.mxu0 0
      %5647 = vmatprep.mubr.bf16.mxu0 0
      %5648 = vmatmul.mubr.bf16.gmra.mrb[0].mxu0 %v5080
      %v5649 = vpop.f32.mrb[0].mxu0
      %v5650 = vadd.f32 %v347, %v5649
      %v5651 = vpop.f32.mrb[0].mxu0
      %v5652 = vadd.f32 %v348, %v5651
      %v5653 = vpop.f32.mrb[0].mxu0
      %v5654 = vadd.f32 %v379, %v5653
      %v5655 = vpop.f32.mrb[0].mxu0
      %v5656 = vadd.f32 %v380, %v5655
      %5657 = vmatprep.mubr.bf16.mxu0 0
      %5658 = vmatmul.mubr.bf16.gmra.mrb[0].mxu0 %v5083
      %v5659 = vpop.f32.mrb[0].mxu0
      %v5660 = vadd.f32 %v411, %v5659
      %v5661 = vpop.f32.mrb[0].mxu0
      %v5662 = vadd.f32 %v412, %v5661
      %v5663 = vpop.f32.mrb[0].mxu0
      %v5664 = vadd.f32 %v443, %v5663
      %v5665 = vpop.f32.mrb[0].mxu0
      %v5666 = vadd.f32 %v444, %v5665
      %5667 = vdwg.mxu0
      %5668 = vmatprep.subr.bf16.mxu0 %v4846
      %5669 = vmatpush1.bf16.msra.mxu0 %v4845
      %5670 = vmatprep.subr.bf16.mxu0 %v4878
      %5671 = vmatpush1.bf16.msra.mxu0 %v4877
      %5672 = vmatprep.subr.bf16.mxu0 %v4910
      %5673 = vmatpush1.bf16.msra.mxu0 %v4909
      %5674 = vmatprep.subr.bf16.mxu0 %v4942
      %5675 = vmatpush1.bf16.msra.mxu0 %v4941
      %5676 = vmatprep.subr.bf16.mxu0 0
      %5677 = vmatpush1.bf16.msra.mxu0 0
      %5678 = vmatprep.subr.bf16.mxu0 0
      %5679 = vmatpush1.bf16.msra.mxu0 0
      %5680 = vmatprep.subr.bf16.mxu0 0
      %5681 = vmatpush1.bf16.msra.mxu0 0
      %5682 = vmatprep.subr.bf16.mxu0 0
      %5683 = vmatpush1.bf16.msra.mxu0 0
      %5684 = vmatprep.subr.bf16.mxu0 0
      %5685 = vmatpush1.bf16.msra.mxu0 0
      %5686 = vmatprep.subr.bf16.mxu0 0
      %5687 = vmatpush1.bf16.msra.mxu0 0
      %5688 = vmatprep.subr.bf16.mxu0 0
      %5689 = vmatpush1.bf16.msra.mxu0 0
      %5690 = vmatprep.subr.bf16.mxu0 0
      %5691 = vmatpush1.bf16.msra.mxu0 0
      %5692 = vmatprep.subr.bf16.mxu0 0
      %5693 = vmatpush1.bf16.msra.mxu0 0
      %5694 = vmatprep.subr.bf16.mxu0 0
      %5695 = vmatpush1.bf16.msra.mxu0 0
      %5696 = vmatprep.subr.bf16.mxu0 0
      %5697 = vmatpush1.bf16.msra.mxu0 0
      %5698 = vmatprep.subr.bf16.mxu0 0
      %5699 = vmatpush1.bf16.msra.mxu0 0
      %5700 = vmatprep.mubr.bf16.mxu0 0
      %5701 = vmatmul.mubr.bf16.gmra.mrb[0].mxu0 %v5080
      %v5702 = vpop.f32.mrb[0].mxu0
      %v5703 = vadd.f32 %v349, %v5702
      %v5704 = vpop.f32.mrb[0].mxu0
      %v5705 = vadd.f32 %v350, %v5704
      %v5706 = vpop.f32.mrb[0].mxu0
      %v5707 = vadd.f32 %v381, %v5706
      %v5708 = vpop.f32.mrb[0].mxu0
      %v5709 = vadd.f32 %v382, %v5708
      %5710 = vmatprep.mubr.bf16.mxu0 0
      %5711 = vmatmul.mubr.bf16.gmra.mrb[0].mxu0 %v5083
      %v5712 = vpop.f32.mrb[0].mxu0
      %v5713 = vadd.f32 %v413, %v5712
      %v5714 = vpop.f32.mrb[0].mxu0
      %v5715 = vadd.f32 %v414, %v5714
      %v5716 = vpop.f32.mrb[0].mxu0
      %v5717 = vadd.f32 %v445, %v5716
      %v5718 = vpop.f32.mrb[0].mxu0
      %v5719 = vadd.f32 %v446, %v5718
      %5720 = vdwg.mxu0
      %5721 = vmatprep.subr.bf16.mxu0 %v4848
      %5722 = vmatpush1.bf16.msra.mxu0 %v4847
      %5723 = vmatprep.subr.bf16.mxu0 %v4880
      %5724 = vmatpush1.bf16.msra.mxu0 %v4879
      %5725 = vmatprep.subr.bf16.mxu0 %v4912
      %5726 = vmatpush1.bf16.msra.mxu0 %v4911
      %5727 = vmatprep.subr.bf16.mxu0 %v4944
      %5728 = vmatpush1.bf16.msra.mxu0 %v4943
      %5729 = vmatprep.subr.bf16.mxu0 0
      %5730 = vmatpush1.bf16.msra.mxu0 0
      %5731 = vmatprep.subr.bf16.mxu0 0
      %5732 = vmatpush1.bf16.msra.mxu0 0
      %5733 = vmatprep.subr.bf16.mxu0 0
      %5734 = vmatpush1.bf16.msra.mxu0 0
      %5735 = vmatprep.subr.bf16.mxu0 0
      %5736 = vmatpush1.bf16.msra.mxu0 0
      %5737 = vmatprep.subr.bf16.mxu0 0
      %5738 = vmatpush1.bf16.msra.mxu0 0
      %5739 = vmatprep.subr.bf16.mxu0 0
      %5740 = vmatpush1.bf16.msra.mxu0 0
      %5741 = vmatprep.subr.bf16.mxu0 0
      %5742 = vmatpush1.bf16.msra.mxu0 0
      %5743 = vmatprep.subr.bf16.mxu0 0
      %5744 = vmatpush1.bf16.msra.mxu0 0
      %5745 = vmatprep.subr.bf16.mxu0 0
      %5746 = vmatpush1.bf16.msra.mxu0 0
      %5747 = vmatprep.subr.bf16.mxu0 0
      %5748 = vmatpush1.bf16.msra.mxu0 0
      %5749 = vmatprep.subr.bf16.mxu0 0
      %5750 = vmatpush1.bf16.msra.mxu0 0
      %5751 = vmatprep.subr.bf16.mxu0 0
      %5752 = vmatpush1.bf16.msra.mxu0 0
      %5753 = vmatprep.mubr.bf16.mxu0 0
      %5754 = vmatmul.mubr.bf16.gmra.mrb[0].mxu0 %v5080
      %v5755 = vpop.f32.mrb[0].mxu0
      %v5756 = vadd.f32 %v351, %v5755
      %v5757 = vpop.f32.mrb[0].mxu0
      %v5758 = vadd.f32 %v352, %v5757
      %v5759 = vpop.f32.mrb[0].mxu0
      %v5760 = vadd.f32 %v383, %v5759
      %v5761 = vpop.f32.mrb[0].mxu0
      %v5762 = vadd.f32 %v384, %v5761
      %5763 = vmatprep.mubr.bf16.mxu0 0
      %5764 = vmatmul.mubr.bf16.gmra.mrb[0].mxu0 %v5083
      %v5765 = vpop.f32.mrb[0].mxu0
      %v5766 = vadd.f32 %v415, %v5765
      %v5767 = vpop.f32.mrb[0].mxu0
      %v5768 = vadd.f32 %v416, %v5767
      %v5769 = vpop.f32.mrb[0].mxu0
      %v5770 = vadd.f32 %v447, %v5769
      %v5771 = vpop.f32.mrb[0].mxu0
      %v5772 = vadd.f32 %v448, %v5771
      %5773 = vdwg.mxu0
      %5774 = vmatprep.subr.bf16.mxu0 %v4850
      %5775 = vmatpush1.bf16.msra.mxu0 %v4849
      %5776 = vmatprep.subr.bf16.mxu0 %v4882
      %5777 = vmatpush1.bf16.msra.mxu0 %v4881
      %5778 = vmatprep.subr.bf16.mxu0 %v4914
      %5779 = vmatpush1.bf16.msra.mxu0 %v4913
      %5780 = vmatprep.subr.bf16.mxu0 %v4946
      %5781 = vmatpush1.bf16.msra.mxu0 %v4945
      %5782 = vmatprep.subr.bf16.mxu0 0
      %5783 = vmatpush1.bf16.msra.mxu0 0
      %5784 = vmatprep.subr.bf16.mxu0 0
      %5785 = vmatpush1.bf16.msra.mxu0 0
      %5786 = vmatprep.subr.bf16.mxu0 0
      %5787 = vmatpush1.bf16.msra.mxu0 0
      %5788 = vmatprep.subr.bf16.mxu0 0
      %5789 = vmatpush1.bf16.msra.mxu0 0
      %5790 = vmatprep.subr.bf16.mxu0 0
      %5791 = vmatpush1.bf16.msra.mxu0 0
      %5792 = vmatprep.subr.bf16.mxu0 0
      %5793 = vmatpush1.bf16.msra.mxu0 0
      %5794 = vmatprep.subr.bf16.mxu0 0
      %5795 = vmatpush1.bf16.msra.mxu0 0
      %5796 = vmatprep.subr.bf16.mxu0 0
      %5797 = vmatpush1.bf16.msra.mxu0 0
      %5798 = vmatprep.subr.bf16.mxu0 0
      %5799 = vmatpush1.bf16.msra.mxu0 0
      %5800 = vmatprep.subr.bf16.mxu0 0
      %5801 = vmatpush1.bf16.msra.mxu0 0
      %5802 = vmatprep.subr.bf16.mxu0 0
      %5803 = vmatpush1.bf16.msra.mxu0 0
      %5804 = vmatprep.subr.bf16.mxu0 0
      %5805 = vmatpush1.bf16.msra.mxu0 0
      %5806 = vmatprep.mubr.bf16.mxu0 0
      %5807 = vmatmul.mubr.bf16.gmra.mrb[0].mxu0 %v5080
      %v5808 = vpop.f32.mrb[0].mxu0
      %v5809 = vadd.f32 %v353, %v5808
      %v5810 = vpop.f32.mrb[0].mxu0
      %v5811 = vadd.f32 %v354, %v5810
      %v5812 = vpop.f32.mrb[0].mxu0
      %v5813 = vadd.f32 %v385, %v5812
      %v5814 = vpop.f32.mrb[0].mxu0
      %v5815 = vadd.f32 %v386, %v5814
      %5816 = vmatprep.mubr.bf16.mxu0 0
      %5817 = vmatmul.mubr.bf16.gmra.mrb[0].mxu0 %v5083
      %v5818 = vpop.f32.mrb[0].mxu0
      %v5819 = vadd.f32 %v417, %v5818
      %v5820 = vpop.f32.mrb[0].mxu0
      %v5821 = vadd.f32 %v418, %v5820
      %v5822 = vpop.f32.mrb[0].mxu0
      %v5823 = vadd.f32 %v449, %v5822
      %v5824 = vpop.f32.mrb[0].mxu0
      %v5825 = vadd.f32 %v450, %v5824
      %5826 = vdwg.mxu0
      %5827 = vmatprep.subr.bf16.mxu0 %v4852
      %5828 = vmatpush1.bf16.msra.mxu0 %v4851
      %5829 = vmatprep.subr.bf16.mxu0 %v4884
      %5830 = vmatpush1.bf16.msra.mxu0 %v4883
      %5831 = vmatprep.subr.bf16.mxu0 %v4916
      %5832 = vmatpush1.bf16.msra.mxu0 %v4915
      %5833 = vmatprep.subr.bf16.mxu0 %v4948
      %5834 = vmatpush1.bf16.msra.mxu0 %v4947
      %5835 = vmatprep.subr.bf16.mxu0 0
      %5836 = vmatpush1.bf16.msra.mxu0 0
      %5837 = vmatprep.subr.bf16.mxu0 0
      %5838 = vmatpush1.bf16.msra.mxu0 0
      %5839 = vmatprep.subr.bf16.mxu0 0
      %5840 = vmatpush1.bf16.msra.mxu0 0
      %5841 = vmatprep.subr.bf16.mxu0 0
      %5842 = vmatpush1.bf16.msra.mxu0 0
      %5843 = vmatprep.subr.bf16.mxu0 0
      %5844 = vmatpush1.bf16.msra.mxu0 0
      %5845 = vmatprep.subr.bf16.mxu0 0
      %5846 = vmatpush1.bf16.msra.mxu0 0
      %5847 = vmatprep.subr.bf16.mxu0 0
      %5848 = vmatpush1.bf16.msra.mxu0 0
      %5849 = vmatprep.subr.bf16.mxu0 0
      %5850 = vmatpush1.bf16.msra.mxu0 0
      %5851 = vmatprep.subr.bf16.mxu0 0
      %5852 = vmatpush1.bf16.msra.mxu0 0
      %5853 = vmatprep.subr.bf16.mxu0 0
      %5854 = vmatpush1.bf16.msra.mxu0 0
      %5855 = vmatprep.subr.bf16.mxu0 0
      %5856 = vmatpush1.bf16.msra.mxu0 0
      %5857 = vmatprep.subr.bf16.mxu0 0
      %5858 = vmatpush1.bf16.msra.mxu0 0
      %5859 = vmatprep.mubr.bf16.mxu0 0
      %5860 = vmatmul.mubr.bf16.gmra.mrb[0].mxu0 %v5080
      %v5861 = vpop.f32.mrb[0].mxu0
      %v5862 = vadd.f32 %v355, %v5861
      %v5863 = vpop.f32.mrb[0].mxu0
      %v5864 = vadd.f32 %v356, %v5863
      %v5865 = vpop.f32.mrb[0].mxu0
      %v5866 = vadd.f32 %v387, %v5865
      %v5867 = vpop.f32.mrb[0].mxu0
      %v5868 = vadd.f32 %v388, %v5867
      %5869 = vmatprep.mubr.bf16.mxu0 0
      %5870 = vmatmul.mubr.bf16.gmra.mrb[0].mxu0 %v5083
      %v5871 = vpop.f32.mrb[0].mxu0
      %v5872 = vadd.f32 %v419, %v5871
      %v5873 = vpop.f32.mrb[0].mxu0
      %v5874 = vadd.f32 %v420, %v5873
      %v5875 = vpop.f32.mrb[0].mxu0
      %v5876 = vadd.f32 %v451, %v5875
      %v5877 = vpop.f32.mrb[0].mxu0
      %v5878 = vadd.f32 %v452, %v5877
      %5879 = vdwg.mxu0
      %5880 = vmatprep.subr.bf16.mxu0 %v4854
      %5881 = vmatpush1.bf16.msra.mxu0 %v4853
      %5882 = vmatprep.subr.bf16.mxu0 %v4886
      %5883 = vmatpush1.bf16.msra.mxu0 %v4885
      %5884 = vmatprep.subr.bf16.mxu0 %v4918
      %5885 = vmatpush1.bf16.msra.mxu0 %v4917
      %5886 = vmatprep.subr.bf16.mxu0 %v4950
      %5887 = vmatpush1.bf16.msra.mxu0 %v4949
      %5888 = vmatprep.subr.bf16.mxu0 0
      %5889 = vmatpush1.bf16.msra.mxu0 0
      %5890 = vmatprep.subr.bf16.mxu0 0
      %5891 = vmatpush1.bf16.msra.mxu0 0
      %5892 = vmatprep.subr.bf16.mxu0 0
      %5893 = vmatpush1.bf16.msra.mxu0 0
      %5894 = vmatprep.subr.bf16.mxu0 0
      %5895 = vmatpush1.bf16.msra.mxu0 0
      %5896 = vmatprep.subr.bf16.mxu0 0
      %5897 = vmatpush1.bf16.msra.mxu0 0
      %5898 = vmatprep.subr.bf16.mxu0 0
      %5899 = vmatpush1.bf16.msra.mxu0 0
      %5900 = vmatprep.subr.bf16.mxu0 0
      %5901 = vmatpush1.bf16.msra.mxu0 0
      %5902 = vmatprep.subr.bf16.mxu0 0
      %5903 = vmatpush1.bf16.msra.mxu0 0
      %5904 = vmatprep.subr.bf16.mxu0 0
      %5905 = vmatpush1.bf16.msra.mxu0 0
      %5906 = vmatprep.subr.bf16.mxu0 0
      %5907 = vmatpush1.bf16.msra.mxu0 0
      %5908 = vmatprep.subr.bf16.mxu0 0
      %5909 = vmatpush1.bf16.msra.mxu0 0
      %5910 = vmatprep.subr.bf16.mxu0 0
      %5911 = vmatpush1.bf16.msra.mxu0 0
      %5912 = vmatprep.mubr.bf16.mxu0 0
      %5913 = vmatmul.mubr.bf16.gmra.mrb[0].mxu0 %v5080
      %v5914 = vpop.f32.mrb[0].mxu0
      %v5915 = vadd.f32 %v357, %v5914
      %v5916 = vpop.f32.mrb[0].mxu0
      %v5917 = vadd.f32 %v358, %v5916
      %v5918 = vpop.f32.mrb[0].mxu0
      %v5919 = vadd.f32 %v389, %v5918
      %v5920 = vpop.f32.mrb[0].mxu0
      %v5921 = vadd.f32 %v390, %v5920
      %5922 = vmatprep.mubr.bf16.mxu0 0
      %5923 = vmatmul.mubr.bf16.gmra.mrb[0].mxu0 %v5083
      %v5924 = vpop.f32.mrb[0].mxu0
      %v5925 = vadd.f32 %v421, %v5924
      %v5926 = vpop.f32.mrb[0].mxu0
      %v5927 = vadd.f32 %v422, %v5926
      %v5928 = vpop.f32.mrb[0].mxu0
      %v5929 = vadd.f32 %v453, %v5928
      %v5930 = vpop.f32.mrb[0].mxu0
      %v5931 = vadd.f32 %v454, %v5930
      %5932 = vdwg.mxu0
      %5933 = vst [vmem:[%s325] sm:$0xff] %v5120
      %5934 = vst [vmem:[%s325 + $0x8] sm:$0xff] %v5122
      %5935 = vst [vmem:[%s325 + $0x10] sm:$0xff] %v5173
      %5936 = vst [vmem:[%s325 + $0x18] sm:$0xff] %v5175
      %5937 = vst [vmem:[%s325 + $0x20] sm:$0xff] %v5226
      %5938 = vst [vmem:[%s325 + $0x28] sm:$0xff] %v5228
      %5939 = vst [vmem:[%s325 + $0x30] sm:$0xff] %v5279
      %5940 = vst [vmem:[%s325 + $0x38] sm:$0xff] %v5281
      %5941 = vst [vmem:[%s325 + $0x40] sm:$0xff] %v5332
      %5942 = vst [vmem:[%s325 + $0x48] sm:$0xff] %v5334
      %5943 = vst [vmem:[%s325 + $0x50] sm:$0xff] %v5385
      %5944 = vst [vmem:[%s325 + $0x58] sm:$0xff] %v5387
      %5945 = vst [vmem:[%s325 + $0x60] sm:$0xff] %v5438
      %5946 = vst [vmem:[%s325 + $0x68] sm:$0xff] %v5440
      %5947 = vst [vmem:[%s325 + $0x70] sm:$0xff] %v5491
      %5948 = vst [vmem:[%s325 + $0x78] sm:$0xff] %v5493
      %5949 = vst [vmem:[%s325 + $0x80] sm:$0xff] %v5544
      %5950 = vst [vmem:[%s325 + $0x88] sm:$0xff] %v5546
      %5951 = vst [vmem:[%s325 + $0x90] sm:$0xff] %v5597
      %5952 = vst [vmem:[%s325 + $0x98] sm:$0xff] %v5599
      %5953 = vst [vmem:[%s325 + $0xa0] sm:$0xff] %v5650
      %5954 = vst [vmem:[%s325 + $0xa8] sm:$0xff] %v5652
      %5955 = vst [vmem:[%s325 + $0xb0] sm:$0xff] %v5703
      %5956 = vst [vmem:[%s325 + $0xb8] sm:$0xff] %v5705
      %5957 = vst [vmem:[%s325 + $0xc0] sm:$0xff] %v5756
      %5958 = vst [vmem:[%s325 + $0xc8] sm:$0xff] %v5758
      %5959 = vst [vmem:[%s325 + $0xd0] sm:$0xff] %v5809
      %5960 = vst [vmem:[%s325 + $0xd8] sm:$0xff] %v5811
      %5961 = vst [vmem:[%s325 + $0xe0] sm:$0xff] %v5862
      %5962 = vst [vmem:[%s325 + $0xe8] sm:$0xff] %v5864
      %5963 = vst [vmem:[%s325 + $0xf0] sm:$0xff] %v5915
      %5964 = vst [vmem:[%s325 + $0xf8] sm:$0xff] %v5917
      %5965 = vst [vmem:[%s325 + $0x100] sm:$0xff] %v5124
      %5966 = vst [vmem:[%s325 + $0x108] sm:$0xff] %v5126
      %5967 = vst [vmem:[%s325 + $0x110] sm:$0xff] %v5177
      %5968 = vst [vmem:[%s325 + $0x118] sm:$0xff] %v5179
      %5969 = vst [vmem:[%s325 + $0x120] sm:$0xff] %v5230
      %5970 = vst [vmem:[%s325 + $0x128] sm:$0xff] %v5232
      %5971 = vst [vmem:[%s325 + $0x130] sm:$0xff] %v5283
      %5972 = vst [vmem:[%s325 + $0x138] sm:$0xff] %v5285
      %5973 = vst [vmem:[%s325 + $0x140] sm:$0xff] %v5336
      %5974 = vst [vmem:[%s325 + $0x148] sm:$0xff] %v5338
      %5975 = vst [vmem:[%s325 + $0x150] sm:$0xff] %v5389
      %5976 = vst [vmem:[%s325 + $0x158] sm:$0xff] %v5391
      %5977 = vst [vmem:[%s325 + $0x160] sm:$0xff] %v5442
      %5978 = vst [vmem:[%s325 + $0x168] sm:$0xff] %v5444
      %5979 = vst [vmem:[%s325 + $0x170] sm:$0xff] %v5495
      %5980 = vst [vmem:[%s325 + $0x178] sm:$0xff] %v5497
      %5981 = vst [vmem:[%s325 + $0x180] sm:$0xff] %v5548
      %5982 = vst [vmem:[%s325 + $0x188] sm:$0xff] %v5550
      %5983 = vst [vmem:[%s325 + $0x190] sm:$0xff] %v5601
      %5984 = vst [vmem:[%s325 + $0x198] sm:$0xff] %v5603
      %5985 = vst [vmem:[%s325 + $0x1a0] sm:$0xff] %v5654
      %5986 = vst [vmem:[%s325 + $0x1a8] sm:$0xff] %v5656
      %5987 = vst [vmem:[%s325 + $0x1b0] sm:$0xff] %v5707
      %5988 = vst [vmem:[%s325 + $0x1b8] sm:$0xff] %v5709
      %5989 = vst [vmem:[%s325 + $0x1c0] sm:$0xff] %v5760
      %5990 = vst [vmem:[%s325 + $0x1c8] sm:$0xff] %v5762
      %5991 = vst [vmem:[%s325 + $0x1d0] sm:$0xff] %v5813
      %5992 = vst [vmem:[%s325 + $0x1d8] sm:$0xff] %v5815
      %5993 = vst [vmem:[%s325 + $0x1e0] sm:$0xff] %v5866
      %5994 = vst [vmem:[%s325 + $0x1e8] sm:$0xff] %v5868
      %5995 = vst [vmem:[%s325 + $0x1f0] sm:$0xff] %v5919
      %5996 = vst [vmem:[%s325 + $0x1f8] sm:$0xff] %v5921
      %5997 = vst [vmem:[%s325 + $0x200] sm:$0xff] %v5130
      %5998 = vst [vmem:[%s325 + $0x208] sm:$0xff] %v5132
      %5999 = vst [vmem:[%s325 + $0x210] sm:$0xff] %v5183
      %6000 = vst [vmem:[%s325 + $0x218] sm:$0xff] %v5185
      %6001 = vst [vmem:[%s325 + $0x220] sm:$0xff] %v5236
      %6002 = vst [vmem:[%s325 + $0x228] sm:$0xff] %v5238
      %6003 = vst [vmem:[%s325 + $0x230] sm:$0xff] %v5289
      %6004 = vst [vmem:[%s325 + $0x238] sm:$0xff] %v5291
      %6005 = vst [vmem:[%s325 + $0x240] sm:$0xff] %v5342
      %6006 = vst [vmem:[%s325 + $0x248] sm:$0xff] %v5344
      %6007 = vst [vmem:[%s325 + $0x250] sm:$0xff] %v5395
      %6008 = vst [vmem:[%s325 + $0x258] sm:$0xff] %v5397
      %6009 = vst [vmem:[%s325 + $0x260] sm:$0xff] %v5448
      %6010 = vst [vmem:[%s325 + $0x268] sm:$0xff] %v5450
      %6011 = vst [vmem:[%s325 + $0x270] sm:$0xff] %v5501
      %6012 = vst [vmem:[%s325 + $0x278] sm:$0xff] %v5503
      %6013 = vst [vmem:[%s325 + $0x280] sm:$0xff] %v5554
      %6014 = vst [vmem:[%s325 + $0x288] sm:$0xff] %v5556
      %6015 = vst [vmem:[%s325 + $0x290] sm:$0xff] %v5607
      %6016 = vst [vmem:[%s325 + $0x298] sm:$0xff] %v5609
      %6017 = vst [vmem:[%s325 + $0x2a0] sm:$0xff] %v5660
      %6018 = vst [vmem:[%s325 + $0x2a8] sm:$0xff] %v5662
      %6019 = vst [vmem:[%s325 + $0x2b0] sm:$0xff] %v5713
      %6020 = vst [vmem:[%s325 + $0x2b8] sm:$0xff] %v5715
      %6021 = vst [vmem:[%s325 + $0x2c0] sm:$0xff] %v5766
      %6022 = vst [vmem:[%s325 + $0x2c8] sm:$0xff] %v5768
      %6023 = vst [vmem:[%s325 + $0x2d0] sm:$0xff] %v5819
      %6024 = vst [vmem:[%s325 + $0x2d8] sm:$0xff] %v5821
      %6025 = vst [vmem:[%s325 + $0x2e0] sm:$0xff] %v5872
      %6026 = vst [vmem:[%s325 + $0x2e8] sm:$0xff] %v5874
      %6027 = vst [vmem:[%s325 + $0x2f0] sm:$0xff] %v5925
      %6028 = vst [vmem:[%s325 + $0x2f8] sm:$0xff] %v5927
      %6029 = vst [vmem:[%s325 + $0x300] sm:$0xff] %v5134
      %6030 = vst [vmem:[%s325 + $0x308] sm:$0xff] %v5136
      %6031 = vst [vmem:[%s325 + $0x310] sm:$0xff] %v5187
      %6032 = vst [vmem:[%s325 + $0x318] sm:$0xff] %v5189
      %6033 = vst [vmem:[%s325 + $0x320] sm:$0xff] %v5240
      %6034 = vst [vmem:[%s325 + $0x328] sm:$0xff] %v5242
      %6035 = vst [vmem:[%s325 + $0x330] sm:$0xff] %v5293
      %6036 = vst [vmem:[%s325 + $0x338] sm:$0xff] %v5295
      %6037 = vst [vmem:[%s325 + $0x340] sm:$0xff] %v5346
      %6038 = vst [vmem:[%s325 + $0x348] sm:$0xff] %v5348
      %6039 = vst [vmem:[%s325 + $0x350] sm:$0xff] %v5399
      %6040 = vst [vmem:[%s325 + $0x358] sm:$0xff] %v5401
      %6041 = vst [vmem:[%s325 + $0x360] sm:$0xff] %v5452
      %6042 = vst [vmem:[%s325 + $0x368] sm:$0xff] %v5454
      %6043 = vst [vmem:[%s325 + $0x370] sm:$0xff] %v5505
      %6044 = vst [vmem:[%s325 + $0x378] sm:$0xff] %v5507
      %6045 = vst [vmem:[%s325 + $0x380] sm:$0xff] %v5558
      %6046 = vst [vmem:[%s325 + $0x388] sm:$0xff] %v5560
      %6047 = vst [vmem:[%s325 + $0x390] sm:$0xff] %v5611
      %6048 = vst [vmem:[%s325 + $0x398] sm:$0xff] %v5613
      %6049 = vst [vmem:[%s325 + $0x3a0] sm:$0xff] %v5664
      %6050 = vst [vmem:[%s325 + $0x3a8] sm:$0xff] %v5666
      %6051 = vst [vmem:[%s325 + $0x3b0] sm:$0xff] %v5717
      %6052 = vst [vmem:[%s325 + $0x3b8] sm:$0xff] %v5719
      %6053 = vst [vmem:[%s325 + $0x3c0] sm:$0xff] %v5770
      %6054 = vst [vmem:[%s325 + $0x3c8] sm:$0xff] %v5772
      %6055 = vst [vmem:[%s325 + $0x3d0] sm:$0xff] %v5823
      %6056 = vst [vmem:[%s325 + $0x3d8] sm:$0xff] %v5825
      %6057 = vst [vmem:[%s325 + $0x3e0] sm:$0xff] %v5876
      %6058 = vst [vmem:[%s325 + $0x3e8] sm:$0xff] %v5878
      %6059 = vst [vmem:[%s325 + $0x3f0] sm:$0xff] %v5929
      %6060 = vst [vmem:[%s325 + $0x3f8] sm:$0xff] %v5931
      %p6061 = scmp.lt.s32.totalorder %s19, 1
      %s6062 = scalar_select %p6061, %s19, 1
      %s6063 = smul.addr %s6062, 128
      %s6064 = smul.addr %s6063, 8
      %s6065 = scalar_lea.vmem %s8, %s6064
      // Predicated region
      $region53: #{deam_forward.1} parent=51 // pred_check
        %p6066 = pneg %p215
      $region54: #{deam_forward.1} parent=51 // pred_check_branch
        %6068 = sbr.rel (%p6066) target = $region56
      $region55: #{deam_forward.1} parent=51 // pred_region
        _
      $region56: #{deam_forward.1} parent=51 // pred_fallthru
        _
    $region52: #{deam_forward.1} parent=5 // pred_fallthru
      _
    %p6069 = scmp.le.s32.totalorder 2, %s14
    // Predicated region
    $region57: #{deam_forward.1} parent=5 // pred_check
      %p6070 = pneg %p6069
    $region58: #{deam_forward.1} parent=5 // pred_check_branch
      %6072 = sbr.rel (%p6070) target = $region60
    $region59: #{deam_forward.1} parent=5 // pred_region
      %s6073 = ssub.s32 %s14, 2
      // Predicated region
      $region61: #{deam_forward.1} parent=59 // pred_check
        %p6074 = pneg %p221
      $region62: #{deam_forward.1} parent=59 // pred_check_branch
        %6076 = sbr.rel (%p6074) target = $region64
      $region63: #{deam_forward.1} parent=59 // pred_region
        %p6077 = scmp.lt.s32.totalorder %s20, 1
        %s6078 = scalar_select %p6077, %s20, 1
        %s6079 = smul.addr %s6078, 128
        %s6080 = smul.addr %s6079, 8
        %s6081 = scalar_lea.vmem %s8, %s6080
      $region64: #{deam_forward.1} parent=59 // pred_fallthru
        _
    $region60: #{deam_forward.1} parent=5 // pred_fallthru
      _
  $region6: #{deam_forward.1} parent=0 // loop_footer
    %s18 = sadd.s32 1, %s14
  $region7: #{deam_forward.1} parent=0 // loop_footer_branch
    %13 = sbr.rel target = $region3
  $region8: #{deam_forward.1} parent=0 // loop_exit
    _

</llo_original>
